<compile_context>
chip_gen: v7x
topology: tpu7x:2x2x1
jax: 0.10.0
libtpu: 0.0.40
codegen_flags: <defaults>
</compile_context>

<pallas_src>
import functools

import jax
import jax.numpy as jnp
from jax.experimental import pallas as pl
from jax.experimental.pallas import tpu as pltpu

# ----------------------------- model config ---------------------------------
VOCAB = 32
HIDDEN = 128          # stands in for mpnet's 768
NUM_HEADS = 4
HEAD_DIM = HIDDEN // NUM_HEADS
FFN = 256             # stands in for mpnet's 3072
NUM_LAYERS = 2
MAX_SEQ = 8
LN_EPS = 1e-12
ATTN_SCALE = 1.0 / (HEAD_DIM ** 0.5)
NEG_INF = -1e9


# ----------------------------- in-kernel helpers ------------------------------
def _layer_norm(h, g, b):
    mu = jnp.mean(h, axis=-1, keepdims=True)
    var = jnp.mean((h - mu) ** 2, axis=-1, keepdims=True)
    return (h - mu) * jax.lax.rsqrt(var + LN_EPS) * g + b


def _mm(a, w, b=None):
    # bf16 MXU matmul with f32 accumulation; bias add in f32.
    y = jnp.dot(a.astype(w.dtype), w, preferred_element_type=jnp.float32)
    return y if b is None else y + b


def _heads_major(x):
    """(rows, heads, head_dim) -> (heads, rows, head_dim), lane-layout aware."""
    if hasattr(pltpu, "einshape"):
        return pltpu.einshape("mhd->hmd", x)
    return jnp.transpose(x, (1, 0, 2))


def _rows_major(x):
    """(heads, rows, head_dim) -> (rows, heads, head_dim)."""
    if hasattr(pltpu, "einshape"):
        return pltpu.einshape("hmd->mhd", x)
    return jnp.transpose(x, (1, 0, 2))


# ----------------------------- fused encoder kernel ---------------------------
def _encoder_kernel(ids_ref, mask_ref,
                    emb_ref, pos_ref, emb_ln_g_ref, emb_ln_b_ref,
                    wqkv_ref, bqkv_ref, wo_ref, bo_ref,
                    ln1_g_ref, ln1_b_ref,
                    w1_ref, b1_ref, w2_ref, b2_ref,
                    ln2_g_ref, ln2_b_ref,
                    head_w_ref, head_b_ref,
                    o_ref, *, seq_len, batch_tile):
    """Whole encoder for one batch tile (batch_tile sequences) per grid step.

    Activations stay in VMEM in lane-dense [batch_tile*S, 128] layout.
    """
    bs = batch_tile * seq_len
    ids = ids_ref[0]                   # (bs, 1)  int32 token ids (tile, seq-major)
    mrow = mask_ref[0]                 # (1, bs)  f32 {0,1} padding mask

    # ---- token embedding gather as a one-hot MXU matmul (exact, no XLA gather)
    onehot = (ids == jax.lax.broadcasted_iota(jnp.int32, (bs, VOCAB), 1)
              ).astype(jnp.float32)                                     # (bs, V)
    x2 = jnp.dot(onehot, emb_ref[...], preferred_element_type=jnp.float32)
    x2 = x2 + jnp.tile(pos_ref[0:seq_len, :], (batch_tile, 1))          # + pos
    x2 = _layer_norm(x2, emb_ln_g_ref[...], emb_ln_b_ref[...])

    # ---- block-diagonal structure of the tile (row r belongs to sequence r//S),
    #      built from iota compares (no integer division needed).
    r_of = jax.lax.broadcasted_iota(jnp.int32, (bs, batch_tile), 0)
    b_of = jax.lax.broadcasted_iota(jnp.int32, (bs, batch_tile), 1)
    memb = ((r_of >= b_of * seq_len) & (r_of < (b_of + 1) * seq_len)
            ).astype(jnp.float32)                                       # (bs, BT)
    b_of2 = jax.lax.broadcasted_iota(jnp.int32, (batch_tile, bs), 0)
    r_of2 = jax.lax.broadcasted_iota(jnp.int32, (batch_tile, bs), 1)
    membt = ((r_of2 >= b_of2 * seq_len) & (r_of2 < (b_of2 + 1) * seq_len)
             ).astype(jnp.float32)                                      # (BT, bs)
    pool = membt * mrow                      # mask-weighted membership, (BT, bs)
    # additive bias: 0 where key is a valid token of the SAME sequence, else -1e9
    valid = jnp.dot(memb, pool, preferred_element_type=jnp.float32)     # (bs, bs)
    bias = (valid - 1.0) * (-NEG_INF) * (-1.0)
    bias = (valid - 1.0) * 1e9                                          # 0 / -1e9

    for li in range(NUM_LAYERS):      # unrolled at trace time (2 layers)
        # Fused QKV projection: one (bs, D) @ (D, 3D) bf16 matmul + bias add.
        qkv = _mm(x2, wqkv_ref[li], bqkv_ref[li])                       # (bs, 3D)
        # 128-lane-aligned splits, then head-major relayout (no unaligned slices).
        q3 = qkv[:, 0 * HIDDEN:1 * HIDDEN].reshape(bs, NUM_HEADS, HEAD_DIM)
        k3 = qkv[:, 1 * HIDDEN:2 * HIDDEN].reshape(bs, NUM_HEADS, HEAD_DIM)
        v3 = qkv[:, 2 * HIDDEN:3 * HIDDEN].reshape(bs, NUM_HEADS, HEAD_DIM)
        qh = _heads_major(q3).astype(jnp.bfloat16)                      # (H, bs, hd)
        kh = _heads_major(k3).astype(jnp.bfloat16)
        vh = _heads_major(v3).astype(jnp.bfloat16)

        # All heads in a single leading-batch-dim MXU matmul (bf16, f32 acc).
        s = jnp.einsum("hqd,hkd->hqk", qh, kh,
                       preferred_element_type=jnp.float32)              # (H, bs, bs)
        s = s * ATTN_SCALE + bias[None]
        s = s - jnp.max(s, axis=-1, keepdims=True)
        p = jnp.exp(s)
        p = p / jnp.sum(p, axis=-1, keepdims=True)   # exact softmax (parity)
        ctx = jnp.einsum("hqk,hkd->hqd", p.astype(jnp.bfloat16), vh,
                         preferred_element_type=jnp.float32)            # (H, bs, hd)
        ctx = _rows_major(ctx).reshape(bs, HIDDEN)                      # (bs, D)

        attn_out = _mm(ctx, wo_ref[li], bo_ref[li])
        x2 = _layer_norm(x2 + attn_out, ln1_g_ref[li], ln1_b_ref[li])

        # TODO(synk): mpnet uses exact (erf) GELU; tanh approximation kept here.
        ff = jax.nn.gelu(_mm(x2, w1_ref[li], b1_ref[li]), approximate=True)
        ff = _mm(ff, w2_ref[li], b2_ref[li])
        x2 = _layer_norm(x2 + ff, ln2_g_ref[li], ln2_b_ref[li])

    # ---- masked mean pooling as (BT, bs) @ (bs, D) MXU matmul, fused with head.
    pooled = jnp.dot(pool, x2, preferred_element_type=jnp.float32)      # (BT, D)
    cnt = jnp.maximum(jnp.sum(pool, axis=-1, keepdims=True), 1e-9)      # (BT, 1)
    pooled = pooled / cnt
    o_ref[0] = _mm(pooled, head_w_ref[...], head_b_ref[...])            # (BT, D)


# ----------------------------- wrapper ----------------------------------------
def sentence_transformer_with_head(params, token_ids, attn_mask, *, batch_tile=None):
    """token_ids: (B, S) int32, attn_mask: (B, S) float32 {0,1} -> (B, HIDDEN).

    batch_tile: sequences processed per grid step.  Default = B (one grid step,
    maximal MXU rows; best on single-TensorCore v5e/v6e).  On v7x pass
    batch_tile = B // 2 so the "parallel" grid uses both TensorCores.
    """
    # TODO(synk): the original forward tokenizes raw strings; tokenization has no
    # Pallas equivalent, so token ids + attention mask are taken as inputs.
    B, S = token_ids.shape
    D = HIDDEN
    if batch_tile is None:
        batch_tile = B
    assert B % batch_tile == 0, "batch must be divisible by batch_tile"
    num_tiles = B // batch_tile
    bs = batch_tile * S

    ids = token_ids.astype(jnp.int32).reshape(num_tiles, bs, 1)
    mask = attn_mask.astype(jnp.float32).reshape(num_tiles, 1, bs)

    weights = (
        params["emb"], params["pos"],
        params["emb_ln_g"], params["emb_ln_b"],
        params["wqkv"], params["bqkv"], params["wo"], params["bo"],
        params["ln1_g"], params["ln1_b"],
        params["w1"], params["b1"], params["w2"], params["b2"],
        params["ln2_g"], params["ln2_b"],
        params["head_w"], params["head_b"],
    )

    # Replicated (weight) operands: constant index map -> DMA'd once, resident.
    # TODO(synk): at real mpnet size (768/3072/12 layers) weights exceed VMEM;
    # stream one layer per grid step (or pltpu.emit_pipeline) instead.
    def rep(arr):
        nd = arr.ndim
        return pl.BlockSpec(arr.shape, lambda t, _nd=nd: (0,) * _nd)

    kernel = functools.partial(_encoder_kernel, seq_len=S, batch_tile=batch_tile)

    out = pl.pallas_call(
        kernel,
        out_shape=jax.ShapeDtypeStruct((num_tiles, batch_tile, D), jnp.float32),
        grid=(num_tiles,),
        in_specs=[
            pl.BlockSpec((1, bs, 1), lambda t: (t, 0, 0)),   # token ids (column)
            pl.BlockSpec((1, 1, bs), lambda t: (t, 0, 0)),   # padding mask (row)
        ] + [rep(w) for w in weights],
        out_specs=pl.BlockSpec((1, batch_tile, D), lambda t: (t, 0, 0)),
        compiler_params=pltpu.CompilerParams(
            dimension_semantics=("parallel",)),   # 2-TC sharding on v7x when num_tiles>1
    )(ids, mask, *weights)
    return out.reshape(B, D)


# ----------------------------- parameters ------------------------------------
def init_params(key):
    k = jax.random.split(key, 8)

    def w(kk, *shape):
        return (jax.random.normal(kk, shape, jnp.float32) * 0.02
                ).astype(jnp.bfloat16)          # matmul weights stored bf16

    L, D, F = NUM_LAYERS, HIDDEN, FFN
    return {
        "emb": jax.random.normal(k[0], (VOCAB, D), jnp.float32) * 0.02,
        "pos": jax.random.normal(k[1], (MAX_SEQ, D), jnp.float32) * 0.02,
        "emb_ln_g": jnp.ones((1, D), jnp.float32),
        "emb_ln_b": jnp.zeros((1, D), jnp.float32),
        "wqkv": w(k[2], L, D, 3 * D),           # fused Q|K|V projection
        "bqkv": jnp.zeros((L, 1, 3 * D), jnp.float32),
        "wo": w(k[3], L, D, D),
        "bo": jnp.zeros((L, 1, D), jnp.float32),
        "ln1_g": jnp.ones((L, 1, D), jnp.float32),
        "ln1_b": jnp.zeros((L, 1, D), jnp.float32),
        "w1": w(k[4], L, D, F),
        "b1": jnp.zeros((L, 1, F), jnp.float32),
        "w2": w(k[5], L, F, D),
        "b2": jnp.zeros((L, 1, D), jnp.float32),
        "ln2_g": jnp.ones((L, 1, D), jnp.float32),
        "ln2_b": jnp.zeros((L, 1, D), jnp.float32),
        "head_w": w(k[6], D, D),                # nn.Linear(768,768) analogue
        "head_b": jnp.zeros((1, D), jnp.float32),
    }


# ----------------------------- main -------------------------------------------
if __name__ == "__main__":
    key = jax.random.PRNGKey(0)
    pkey, dkey = jax.random.split(key)
    params = init_params(pkey)

    B, S = 2, MAX_SEQ
    token_ids = jax.random.randint(dkey, (B, S), 0, VOCAB, dtype=jnp.int32)
    # second sentence is padded after 5 tokens
    attn_mask = jnp.array(
        [[1, 1, 1, 1, 1, 1, 1, 1],
         [1, 1, 1, 1, 1, 0, 0, 0]], dtype=jnp.float32)

    fwd = jax.jit(sentence_transformer_with_head)
    out = jax.block_until_ready(fwd(params, token_ids, attn_mask))
    assert out.shape == (B, HIDDEN) and out.dtype == jnp.float32
    assert bool(jnp.all(jnp.isfinite(out)))
    print("KERNEL_OK")
</pallas_src>

<mosaic_0001>
module attributes {stable_mosaic.version = 11 : i64} {
  func.func @_encoder_kernel(%arg0: i32, %arg1: memref<1x16x1xi32, #tpu.memory_space<vmem>>, %arg2: memref<1x1x16xf32, #tpu.memory_space<vmem>>, %arg3: memref<32x128xf32, #tpu.memory_space<vmem>>, %arg4: memref<8x128xf32, #tpu.memory_space<vmem>>, %arg5: memref<1x128xf32, #tpu.memory_space<vmem>>, %arg6: memref<1x128xf32, #tpu.memory_space<vmem>>, %arg7: memref<2x128x384xbf16, #tpu.memory_space<vmem>>, %arg8: memref<2x1x384xf32, #tpu.memory_space<vmem>>, %arg9: memref<2x128x128xbf16, #tpu.memory_space<vmem>>, %arg10: memref<2x1x128xf32, #tpu.memory_space<vmem>>, %arg11: memref<2x1x128xf32, #tpu.memory_space<vmem>>, %arg12: memref<2x1x128xf32, #tpu.memory_space<vmem>>, %arg13: memref<2x128x256xbf16, #tpu.memory_space<vmem>>, %arg14: memref<2x1x256xf32, #tpu.memory_space<vmem>>, %arg15: memref<2x256x128xbf16, #tpu.memory_space<vmem>>, %arg16: memref<2x1x128xf32, #tpu.memory_space<vmem>>, %arg17: memref<2x1x128xf32, #tpu.memory_space<vmem>>, %arg18: memref<2x1x128xf32, #tpu.memory_space<vmem>>, %arg19: memref<128x128xbf16, #tpu.memory_space<vmem>>, %arg20: memref<1x128xf32, #tpu.memory_space<vmem>>, %arg21: memref<1x2x128xf32, #tpu.memory_space<vmem>>) attributes {dimension_semantics = [#tpu.dimension_semantics<parallel>], iteration_bounds = array<i64: 1>, scalar_prefetch = 0 : i64, scratch_operands = 0 : i64, tpu.core_type = #tpu.core_type<tc>, window_params = [{transform_indices = @transform_0, window_bounds = array<i64: 1, 16, 1>}, {transform_indices = @transform_1, window_bounds = array<i64: 1, 1, 16>}, {pipeline_mode = #tpu.pipeline_mode<synchronous>, transform_indices = @transform_2, window_bounds = array<i64: 32, 128>}, {pipeline_mode = #tpu.pipeline_mode<synchronous>, transform_indices = @transform_3, window_bounds = array<i64: 8, 128>}, {pipeline_mode = #tpu.pipeline_mode<synchronous>, transform_indices = @transform_4, window_bounds = array<i64: 1, 128>}, {pipeline_mode = #tpu.pipeline_mode<synchronous>, transform_indices = @transform_5, window_bounds = array<i64: 1, 128>}, {pipeline_mode = #tpu.pipeline_mode<synchronous>, transform_indices = @transform_6, window_bounds = array<i64: 2, 128, 384>}, {pipeline_mode = #tpu.pipeline_mode<synchronous>, transform_indices = @transform_7, window_bounds = array<i64: 2, 1, 384>}, {pipeline_mode = #tpu.pipeline_mode<synchronous>, transform_indices = @transform_8, window_bounds = array<i64: 2, 128, 128>}, {pipeline_mode = #tpu.pipeline_mode<synchronous>, transform_indices = @transform_9, window_bounds = array<i64: 2, 1, 128>}, {pipeline_mode = #tpu.pipeline_mode<synchronous>, transform_indices = @transform_10, window_bounds = array<i64: 2, 1, 128>}, {pipeline_mode = #tpu.pipeline_mode<synchronous>, transform_indices = @transform_11, window_bounds = array<i64: 2, 1, 128>}, {pipeline_mode = #tpu.pipeline_mode<synchronous>, transform_indices = @transform_12, window_bounds = array<i64: 2, 128, 256>}, {pipeline_mode = #tpu.pipeline_mode<synchronous>, transform_indices = @transform_13, window_bounds = array<i64: 2, 1, 256>}, {pipeline_mode = #tpu.pipeline_mode<synchronous>, transform_indices = @transform_14, window_bounds = array<i64: 2, 256, 128>}, {pipeline_mode = #tpu.pipeline_mode<synchronous>, transform_indices = @transform_15, window_bounds = array<i64: 2, 1, 128>}, {pipeline_mode = #tpu.pipeline_mode<synchronous>, transform_indices = @transform_16, window_bounds = array<i64: 2, 1, 128>}, {pipeline_mode = #tpu.pipeline_mode<synchronous>, transform_indices = @transform_17, window_bounds = array<i64: 2, 1, 128>}, {pipeline_mode = #tpu.pipeline_mode<synchronous>, transform_indices = @transform_18, window_bounds = array<i64: 128, 128>}, {pipeline_mode = #tpu.pipeline_mode<synchronous>, transform_indices = @transform_19, window_bounds = array<i64: 1, 128>}, {transform_indices = @transform_20, window_bounds = array<i64: 1, 2, 128>}]} {
    %c0 = arith.constant 0 : index
    %c0_0 = arith.constant 0 : index
    %c0_1 = arith.constant 0 : index
    %0 = vector.load %arg1[%c0, %c0_0, %c0_1] : memref<1x16x1xi32, #tpu.memory_space<vmem>>, vector<1x16x1xi32>
    %1 = vector.shape_cast %0 : vector<1x16x1xi32> to vector<16x1xi32>
    %c0_2 = arith.constant 0 : index
    %c0_3 = arith.constant 0 : index
    %c0_4 = arith.constant 0 : index
    %2 = vector.load %arg2[%c0_2, %c0_3, %c0_4] : memref<1x1x16xf32, #tpu.memory_space<vmem>>, vector<1x1x16xf32>
    %3 = vector.shape_cast %2 : vector<1x1x16xf32> to vector<1x16xf32>
    %4 = tpu.iota {dimensions = array<i32: 1>} : vector<16x32xi32>
    %5 = vector.broadcast %1 : vector<16x1xi32> to vector<16x32xi32>
    %6 = arith.cmpi eq, %5, %4 : vector<16x32xi32>
    %7 = arith.extui %6 : vector<16x32xi1> to vector<16x32xi32>
    %8 = arith.sitofp %7 : vector<16x32xi32> to vector<16x32xf32>
    %c0_5 = arith.constant 0 : index
    %c0_6 = arith.constant 0 : index
    %9 = vector.load %arg3[%c0_5, %c0_6] : memref<32x128xf32, #tpu.memory_space<vmem>>, vector<32x128xf32>
    %cst = arith.constant dense<0.000000e+00> : vector<16x128xf32>
    %10 = tpu.matmul %8, %9, %cst {dimension_numbers = #tpu.dot_dimension_numbers<[1], [0], [0], [1], [0, 0, 1, 1], [], []>} : vector<16x32xf32>, vector<32x128xf32>, vector<16x128xf32> -> vector<16x128xf32>
    %c0_7 = arith.constant 0 : index
    %c0_8 = arith.constant 0 : index
    %11 = vector.load %arg4[%c0_7, %c0_8] : memref<8x128xf32, #tpu.memory_space<vmem>>, vector<8x128xf32>
    %12 = tpu.concatenate %11, %11 in 0 : vector<8x128xf32>, vector<8x128xf32> -> vector<16x128xf32>
    %13 = arith.addf %10, %12 : vector<16x128xf32>
    %c0_9 = arith.constant 0 : index
    %c0_10 = arith.constant 0 : index
    %14 = vector.load %arg5[%c0_9, %c0_10] : memref<1x128xf32, #tpu.memory_space<vmem>>, vector<1x128xf32>
    %c0_11 = arith.constant 0 : index
    %c0_12 = arith.constant 0 : index
    %15 = vector.load %arg6[%c0_11, %c0_12] : memref<1x128xf32, #tpu.memory_space<vmem>>, vector<1x128xf32>
    %cst_13 = arith.constant dense<0.000000e+00> : vector<16xf32>
    %16 = vector.multi_reduction <add>, %13, %cst_13 [1] : vector<16x128xf32> to vector<16xf32>
    %17 = vector.shape_cast %16 : vector<16xf32> to vector<16x1xf32>
    %cst_14 = arith.constant 1.280000e+02 : f32
    %18 = vector.broadcast %cst_14 : f32 to vector<16x1xf32>
    %19 = arith.divf %17, %18 : vector<16x1xf32>
    %20 = vector.broadcast %19 : vector<16x1xf32> to vector<16x128xf32>
    %21 = arith.subf %13, %20 : vector<16x128xf32>
    %22 = arith.mulf %21, %21 : vector<16x128xf32>
    %cst_15 = arith.constant dense<0.000000e+00> : vector<16xf32>
    %23 = vector.multi_reduction <add>, %22, %cst_15 [1] : vector<16x128xf32> to vector<16xf32>
    %24 = vector.shape_cast %23 : vector<16xf32> to vector<16x1xf32>
    %cst_16 = arith.constant 1.280000e+02 : f32
    %25 = vector.broadcast %cst_16 : f32 to vector<16x1xf32>
    %26 = arith.divf %24, %25 : vector<16x1xf32>
    %27 = vector.broadcast %19 : vector<16x1xf32> to vector<16x128xf32>
    %28 = arith.subf %13, %27 : vector<16x128xf32>
    %cst_17 = arith.constant 9.99999996E-13 : f32
    %29 = vector.broadcast %cst_17 : f32 to vector<16x1xf32>
    %30 = arith.addf %26, %29 : vector<16x1xf32>
    %31 = math.rsqrt %30 : vector<16x1xf32>
    %32 = vector.broadcast %31 : vector<16x1xf32> to vector<16x128xf32>
    %33 = arith.mulf %28, %32 : vector<16x128xf32>
    %34 = vector.broadcast %14 : vector<1x128xf32> to vector<16x128xf32>
    %35 = arith.mulf %33, %34 : vector<16x128xf32>
    %36 = vector.broadcast %15 : vector<1x128xf32> to vector<16x128xf32>
    %37 = arith.addf %35, %36 : vector<16x128xf32>
    %38 = tpu.iota {dimensions = array<i32: 0>} : vector<16x2xi32>
    %39 = tpu.iota {dimensions = array<i32: 1>} : vector<16x2xi32>
    %c8_i32 = arith.constant 8 : i32
    %40 = vector.broadcast %c8_i32 : i32 to vector<16x2xi32>
    %41 = arith.muli %39, %40 : vector<16x2xi32>
    %42 = arith.cmpi sge, %38, %41 : vector<16x2xi32>
    %c1_i32 = arith.constant 1 : i32
    %43 = vector.broadcast %c1_i32 : i32 to vector<16x2xi32>
    %44 = arith.addi %39, %43 : vector<16x2xi32>
    %c8_i32_18 = arith.constant 8 : i32
    %45 = vector.broadcast %c8_i32_18 : i32 to vector<16x2xi32>
    %46 = arith.muli %44, %45 : vector<16x2xi32>
    %47 = arith.cmpi slt, %38, %46 : vector<16x2xi32>
    %48 = arith.andi %42, %47 : vector<16x2xi1>
    %49 = arith.extui %48 : vector<16x2xi1> to vector<16x2xi32>
    %50 = arith.sitofp %49 : vector<16x2xi32> to vector<16x2xf32>
    %51 = tpu.iota {dimensions = array<i32: 0>} : vector<2x16xi32>
    %52 = tpu.iota {dimensions = array<i32: 1>} : vector<2x16xi32>
    %c8_i32_19 = arith.constant 8 : i32
    %53 = vector.broadcast %c8_i32_19 : i32 to vector<2x16xi32>
    %54 = arith.muli %51, %53 : vector<2x16xi32>
    %55 = arith.cmpi sge, %52, %54 : vector<2x16xi32>
    %c1_i32_20 = arith.constant 1 : i32
    %56 = vector.broadcast %c1_i32_20 : i32 to vector<2x16xi32>
    %57 = arith.addi %51, %56 : vector<2x16xi32>
    %c8_i32_21 = arith.constant 8 : i32
    %58 = vector.broadcast %c8_i32_21 : i32 to vector<2x16xi32>
    %59 = arith.muli %57, %58 : vector<2x16xi32>
    %60 = arith.cmpi slt, %52, %59 : vector<2x16xi32>
    %61 = arith.andi %55, %60 : vector<2x16xi1>
    %62 = arith.extui %61 : vector<2x16xi1> to vector<2x16xi32>
    %63 = arith.sitofp %62 : vector<2x16xi32> to vector<2x16xf32>
    %64 = vector.broadcast %3 : vector<1x16xf32> to vector<2x16xf32>
    %65 = arith.mulf %63, %64 : vector<2x16xf32>
    %cst_22 = arith.constant dense<0.000000e+00> : vector<16x16xf32>
    %66 = tpu.matmul %50, %65, %cst_22 {dimension_numbers = #tpu.dot_dimension_numbers<[1], [0], [0], [1], [0, 0, 1, 1], [], []>} : vector<16x2xf32>, vector<2x16xf32>, vector<16x16xf32> -> vector<16x16xf32>
    %cst_23 = arith.constant 1.000000e+00 : f32
    %67 = vector.broadcast %cst_23 : f32 to vector<16x16xf32>
    %68 = arith.subf %66, %67 : vector<16x16xf32>
    %cst_24 = arith.constant 1.000000e+09 : f32
    %69 = vector.broadcast %cst_24 : f32 to vector<16x16xf32>
    %70 = arith.mulf %68, %69 : vector<16x16xf32>
    %c0_25 = arith.constant 0 : index
    %c0_26 = arith.constant 0 : index
    %c0_27 = arith.constant 0 : index
    %71 = vector.load %arg7[%c0_25, %c0_26, %c0_27] : memref<2x128x384xbf16, #tpu.memory_space<vmem>>, vector<1x128x384xbf16>
    %72 = vector.shape_cast %71 : vector<1x128x384xbf16> to vector<128x384xbf16>
    %c0_28 = arith.constant 0 : index
    %c0_29 = arith.constant 0 : index
    %c0_30 = arith.constant 0 : index
    %73 = vector.load %arg8[%c0_28, %c0_29, %c0_30] : memref<2x1x384xf32, #tpu.memory_space<vmem>>, vector<1x1x384xf32>
    %74 = vector.shape_cast %73 : vector<1x1x384xf32> to vector<1x384xf32>
    %75 = arith.truncf %37 : vector<16x128xf32> to vector<16x128xbf16>
    %cst_31 = arith.constant dense<0.000000e+00> : vector<16x384xf32>
    %76 = tpu.matmul %75, %72, %cst_31 {dimension_numbers = #tpu.dot_dimension_numbers<[1], [0], [0], [1], [0, 0, 1, 1], [], []>} : vector<16x128xbf16>, vector<128x384xbf16>, vector<16x384xf32> -> vector<16x384xf32>
    %77 = vector.broadcast %74 : vector<1x384xf32> to vector<16x384xf32>
    %78 = arith.addf %76, %77 : vector<16x384xf32>
    %79 = vector.extract_strided_slice %78 {offsets = [0, 0], sizes = [16, 128], strides = [1, 1]} : vector<16x384xf32> to vector<16x128xf32>
    %80 = vector.shape_cast %79 : vector<16x128xf32> to vector<16x4x32xf32>
    %81 = vector.extract_strided_slice %78 {offsets = [0, 128], sizes = [16, 128], strides = [1, 1]} : vector<16x384xf32> to vector<16x128xf32>
    %82 = vector.shape_cast %81 : vector<16x128xf32> to vector<16x4x32xf32>
    %83 = vector.extract_strided_slice %78 {offsets = [0, 256], sizes = [16, 128], strides = [1, 1]} : vector<16x384xf32> to vector<16x128xf32>
    %84 = vector.shape_cast %83 : vector<16x128xf32> to vector<16x4x32xf32>
    %85 = tpu.transpose %80, [1, 0, 2] : vector<16x4x32xf32> -> vector<4x16x32xf32>
    %86 = arith.truncf %85 : vector<4x16x32xf32> to vector<4x16x32xbf16>
    %87 = tpu.transpose %82, [1, 0, 2] : vector<16x4x32xf32> -> vector<4x16x32xf32>
    %88 = arith.truncf %87 : vector<4x16x32xf32> to vector<4x16x32xbf16>
    %89 = tpu.transpose %84, [1, 0, 2] : vector<16x4x32xf32> -> vector<4x16x32xf32>
    %90 = arith.truncf %89 : vector<4x16x32xf32> to vector<4x16x32xbf16>
    "tpu.trace_start"() <{level = 10 : i32, message = "hqd,hkd->hqk"}> : () -> ()
    %cst_32 = arith.constant dense<0.000000e+00> : vector<4x16x16xf32>
    %91 = tpu.matmul %86, %88, %cst_32 {dimension_numbers = #tpu.dot_dimension_numbers<[2], [2], [1], [1], [0, 0, 0, 1, 1, 1], [0], [0]>} : vector<4x16x32xbf16>, vector<4x16x32xbf16>, vector<4x16x16xf32> -> vector<4x16x16xf32>
    "tpu.trace_stop"() : () -> ()
    %cst_33 = arith.constant 0.176776692 : f32
    %92 = vector.broadcast %cst_33 : f32 to vector<4x16x16xf32>
    %93 = arith.mulf %91, %92 : vector<4x16x16xf32>
    %94 = vector.shape_cast %70 : vector<16x16xf32> to vector<1x16x16xf32>
    %95 = vector.broadcast %94 : vector<1x16x16xf32> to vector<4x16x16xf32>
    %96 = arith.addf %93, %95 : vector<4x16x16xf32>
    %cst_34 = arith.constant dense<0xFF800000> : vector<4x16xf32>
    %97 = vector.multi_reduction <maximumf>, %96, %cst_34 [2] : vector<4x16x16xf32> to vector<4x16xf32>
    %98 = vector.shape_cast %97 : vector<4x16xf32> to vector<4x16x1xf32>
    %99 = vector.broadcast %98 : vector<4x16x1xf32> to vector<4x16x16xf32>
    %100 = arith.subf %96, %99 : vector<4x16x16xf32>
    %101 = math.exp %100 : vector<4x16x16xf32>
    %cst_35 = arith.constant dense<0.000000e+00> : vector<4x16xf32>
    %102 = vector.multi_reduction <add>, %101, %cst_35 [2] : vector<4x16x16xf32> to vector<4x16xf32>
    %103 = vector.shape_cast %102 : vector<4x16xf32> to vector<4x16x1xf32>
    %104 = vector.broadcast %103 : vector<4x16x1xf32> to vector<4x16x16xf32>
    %105 = arith.divf %101, %104 : vector<4x16x16xf32>
    %106 = arith.truncf %105 : vector<4x16x16xf32> to vector<4x16x16xbf16>
    "tpu.trace_start"() <{level = 10 : i32, message = "hqk,hkd->hqd"}> : () -> ()
    %cst_36 = arith.constant dense<0.000000e+00> : vector<4x16x32xf32>
    %107 = tpu.matmul %106, %90, %cst_36 {dimension_numbers = #tpu.dot_dimension_numbers<[2], [1], [1], [2], [0, 0, 0, 1, 1, 2], [0], [0]>} : vector<4x16x16xbf16>, vector<4x16x32xbf16>, vector<4x16x32xf32> -> vector<4x16x32xf32>
    "tpu.trace_stop"() : () -> ()
    %108 = tpu.transpose %107, [1, 0, 2] : vector<4x16x32xf32> -> vector<16x4x32xf32>
    %109 = vector.shape_cast %108 : vector<16x4x32xf32> to vector<16x128xf32>
    %c0_37 = arith.constant 0 : index
    %c0_38 = arith.constant 0 : index
    %c0_39 = arith.constant 0 : index
    %110 = vector.load %arg9[%c0_37, %c0_38, %c0_39] : memref<2x128x128xbf16, #tpu.memory_space<vmem>>, vector<1x128x128xbf16>
    %111 = vector.shape_cast %110 : vector<1x128x128xbf16> to vector<128x128xbf16>
    %c0_40 = arith.constant 0 : index
    %c0_41 = arith.constant 0 : index
    %c0_42 = arith.constant 0 : index
    %112 = vector.load %arg10[%c0_40, %c0_41, %c0_42] : memref<2x1x128xf32, #tpu.memory_space<vmem>>, vector<1x1x128xf32>
    %113 = vector.shape_cast %112 : vector<1x1x128xf32> to vector<1x128xf32>
    %114 = arith.truncf %109 : vector<16x128xf32> to vector<16x128xbf16>
    %cst_43 = arith.constant dense<0.000000e+00> : vector<16x128xf32>
    %115 = tpu.matmul %114, %111, %cst_43 {dimension_numbers = #tpu.dot_dimension_numbers<[1], [0], [0], [1], [0, 0, 1, 1], [], []>} : vector<16x128xbf16>, vector<128x128xbf16>, vector<16x128xf32> -> vector<16x128xf32>
    %116 = vector.broadcast %113 : vector<1x128xf32> to vector<16x128xf32>
    %117 = arith.addf %115, %116 : vector<16x128xf32>
    %118 = arith.addf %37, %117 : vector<16x128xf32>
    %c0_44 = arith.constant 0 : index
    %c0_45 = arith.constant 0 : index
    %c0_46 = arith.constant 0 : index
    %119 = vector.load %arg11[%c0_44, %c0_45, %c0_46] : memref<2x1x128xf32, #tpu.memory_space<vmem>>, vector<1x1x128xf32>
    %120 = vector.shape_cast %119 : vector<1x1x128xf32> to vector<1x128xf32>
    %c0_47 = arith.constant 0 : index
    %c0_48 = arith.constant 0 : index
    %c0_49 = arith.constant 0 : index
    %121 = vector.load %arg12[%c0_47, %c0_48, %c0_49] : memref<2x1x128xf32, #tpu.memory_space<vmem>>, vector<1x1x128xf32>
    %122 = vector.shape_cast %121 : vector<1x1x128xf32> to vector<1x128xf32>
    %cst_50 = arith.constant dense<0.000000e+00> : vector<16xf32>
    %123 = vector.multi_reduction <add>, %118, %cst_50 [1] : vector<16x128xf32> to vector<16xf32>
    %124 = vector.shape_cast %123 : vector<16xf32> to vector<16x1xf32>
    %cst_51 = arith.constant 1.280000e+02 : f32
    %125 = vector.broadcast %cst_51 : f32 to vector<16x1xf32>
    %126 = arith.divf %124, %125 : vector<16x1xf32>
    %127 = vector.broadcast %126 : vector<16x1xf32> to vector<16x128xf32>
    %128 = arith.subf %118, %127 : vector<16x128xf32>
    %129 = arith.mulf %128, %128 : vector<16x128xf32>
    %cst_52 = arith.constant dense<0.000000e+00> : vector<16xf32>
    %130 = vector.multi_reduction <add>, %129, %cst_52 [1] : vector<16x128xf32> to vector<16xf32>
    %131 = vector.shape_cast %130 : vector<16xf32> to vector<16x1xf32>
    %cst_53 = arith.constant 1.280000e+02 : f32
    %132 = vector.broadcast %cst_53 : f32 to vector<16x1xf32>
    %133 = arith.divf %131, %132 : vector<16x1xf32>
    %134 = vector.broadcast %126 : vector<16x1xf32> to vector<16x128xf32>
    %135 = arith.subf %118, %134 : vector<16x128xf32>
    %cst_54 = arith.constant 9.99999996E-13 : f32
    %136 = vector.broadcast %cst_54 : f32 to vector<16x1xf32>
    %137 = arith.addf %133, %136 : vector<16x1xf32>
    %138 = math.rsqrt %137 : vector<16x1xf32>
    %139 = vector.broadcast %138 : vector<16x1xf32> to vector<16x128xf32>
    %140 = arith.mulf %135, %139 : vector<16x128xf32>
    %141 = vector.broadcast %120 : vector<1x128xf32> to vector<16x128xf32>
    %142 = arith.mulf %140, %141 : vector<16x128xf32>
    %143 = vector.broadcast %122 : vector<1x128xf32> to vector<16x128xf32>
    %144 = arith.addf %142, %143 : vector<16x128xf32>
    %c0_55 = arith.constant 0 : index
    %c0_56 = arith.constant 0 : index
    %c0_57 = arith.constant 0 : index
    %145 = vector.load %arg13[%c0_55, %c0_56, %c0_57] : memref<2x128x256xbf16, #tpu.memory_space<vmem>>, vector<1x128x256xbf16>
    %146 = vector.shape_cast %145 : vector<1x128x256xbf16> to vector<128x256xbf16>
    %c0_58 = arith.constant 0 : index
    %c0_59 = arith.constant 0 : index
    %c0_60 = arith.constant 0 : index
    %147 = vector.load %arg14[%c0_58, %c0_59, %c0_60] : memref<2x1x256xf32, #tpu.memory_space<vmem>>, vector<1x1x256xf32>
    %148 = vector.shape_cast %147 : vector<1x1x256xf32> to vector<1x256xf32>
    %149 = arith.truncf %144 : vector<16x128xf32> to vector<16x128xbf16>
    %cst_61 = arith.constant dense<0.000000e+00> : vector<16x256xf32>
    %150 = tpu.matmul %149, %146, %cst_61 {dimension_numbers = #tpu.dot_dimension_numbers<[1], [0], [0], [1], [0, 0, 1, 1], [], []>} : vector<16x128xbf16>, vector<128x256xbf16>, vector<16x256xf32> -> vector<16x256xf32>
    %151 = vector.broadcast %148 : vector<1x256xf32> to vector<16x256xf32>
    %152 = arith.addf %150, %151 : vector<16x256xf32>
    %153 = arith.mulf %152, %152 : vector<16x256xf32>
    %154 = arith.mulf %152, %153 : vector<16x256xf32>
    %cst_62 = arith.constant 4.471500e-02 : f32
    %155 = vector.broadcast %cst_62 : f32 to vector<16x256xf32>
    %156 = arith.mulf %155, %154 : vector<16x256xf32>
    %157 = arith.addf %152, %156 : vector<16x256xf32>
    %cst_63 = arith.constant 0.797884583 : f32
    %158 = vector.broadcast %cst_63 : f32 to vector<16x256xf32>
    %159 = arith.mulf %158, %157 : vector<16x256xf32>
    %160 = math.tanh %159 : vector<16x256xf32>
    %cst_64 = arith.constant 1.000000e+00 : f32
    %161 = vector.broadcast %cst_64 : f32 to vector<16x256xf32>
    %162 = arith.addf %161, %160 : vector<16x256xf32>
    %cst_65 = arith.constant 5.000000e-01 : f32
    %163 = vector.broadcast %cst_65 : f32 to vector<16x256xf32>
    %164 = arith.mulf %163, %162 : vector<16x256xf32>
    %165 = arith.mulf %152, %164 : vector<16x256xf32>
    %c0_66 = arith.constant 0 : index
    %c0_67 = arith.constant 0 : index
    %c0_68 = arith.constant 0 : index
    %166 = vector.load %arg15[%c0_66, %c0_67, %c0_68] : memref<2x256x128xbf16, #tpu.memory_space<vmem>>, vector<1x256x128xbf16>
    %167 = vector.shape_cast %166 : vector<1x256x128xbf16> to vector<256x128xbf16>
    %c0_69 = arith.constant 0 : index
    %c0_70 = arith.constant 0 : index
    %c0_71 = arith.constant 0 : index
    %168 = vector.load %arg16[%c0_69, %c0_70, %c0_71] : memref<2x1x128xf32, #tpu.memory_space<vmem>>, vector<1x1x128xf32>
    %169 = vector.shape_cast %168 : vector<1x1x128xf32> to vector<1x128xf32>
    %170 = arith.truncf %165 : vector<16x256xf32> to vector<16x256xbf16>
    %cst_72 = arith.constant dense<0.000000e+00> : vector<16x128xf32>
    %171 = tpu.matmul %170, %167, %cst_72 {dimension_numbers = #tpu.dot_dimension_numbers<[1], [0], [0], [1], [0, 0, 1, 1], [], []>} : vector<16x256xbf16>, vector<256x128xbf16>, vector<16x128xf32> -> vector<16x128xf32>
    %172 = vector.broadcast %169 : vector<1x128xf32> to vector<16x128xf32>
    %173 = arith.addf %171, %172 : vector<16x128xf32>
    %174 = arith.addf %144, %173 : vector<16x128xf32>
    %c0_73 = arith.constant 0 : index
    %c0_74 = arith.constant 0 : index
    %c0_75 = arith.constant 0 : index
    %175 = vector.load %arg17[%c0_73, %c0_74, %c0_75] : memref<2x1x128xf32, #tpu.memory_space<vmem>>, vector<1x1x128xf32>
    %176 = vector.shape_cast %175 : vector<1x1x128xf32> to vector<1x128xf32>
    %c0_76 = arith.constant 0 : index
    %c0_77 = arith.constant 0 : index
    %c0_78 = arith.constant 0 : index
    %177 = vector.load %arg18[%c0_76, %c0_77, %c0_78] : memref<2x1x128xf32, #tpu.memory_space<vmem>>, vector<1x1x128xf32>
    %178 = vector.shape_cast %177 : vector<1x1x128xf32> to vector<1x128xf32>
    %cst_79 = arith.constant dense<0.000000e+00> : vector<16xf32>
    %179 = vector.multi_reduction <add>, %174, %cst_79 [1] : vector<16x128xf32> to vector<16xf32>
    %180 = vector.shape_cast %179 : vector<16xf32> to vector<16x1xf32>
    %cst_80 = arith.constant 1.280000e+02 : f32
    %181 = vector.broadcast %cst_80 : f32 to vector<16x1xf32>
    %182 = arith.divf %180, %181 : vector<16x1xf32>
    %183 = vector.broadcast %182 : vector<16x1xf32> to vector<16x128xf32>
    %184 = arith.subf %174, %183 : vector<16x128xf32>
    %185 = arith.mulf %184, %184 : vector<16x128xf32>
    %cst_81 = arith.constant dense<0.000000e+00> : vector<16xf32>
    %186 = vector.multi_reduction <add>, %185, %cst_81 [1] : vector<16x128xf32> to vector<16xf32>
    %187 = vector.shape_cast %186 : vector<16xf32> to vector<16x1xf32>
    %cst_82 = arith.constant 1.280000e+02 : f32
    %188 = vector.broadcast %cst_82 : f32 to vector<16x1xf32>
    %189 = arith.divf %187, %188 : vector<16x1xf32>
    %190 = vector.broadcast %182 : vector<16x1xf32> to vector<16x128xf32>
    %191 = arith.subf %174, %190 : vector<16x128xf32>
    %cst_83 = arith.constant 9.99999996E-13 : f32
    %192 = vector.broadcast %cst_83 : f32 to vector<16x1xf32>
    %193 = arith.addf %189, %192 : vector<16x1xf32>
    %194 = math.rsqrt %193 : vector<16x1xf32>
    %195 = vector.broadcast %194 : vector<16x1xf32> to vector<16x128xf32>
    %196 = arith.mulf %191, %195 : vector<16x128xf32>
    %197 = vector.broadcast %176 : vector<1x128xf32> to vector<16x128xf32>
    %198 = arith.mulf %196, %197 : vector<16x128xf32>
    %199 = vector.broadcast %178 : vector<1x128xf32> to vector<16x128xf32>
    %200 = arith.addf %198, %199 : vector<16x128xf32>
    %c1 = arith.constant 1 : index
    %c0_84 = arith.constant 0 : index
    %c0_85 = arith.constant 0 : index
    %201 = vector.load %arg7[%c1, %c0_84, %c0_85] : memref<2x128x384xbf16, #tpu.memory_space<vmem>>, vector<1x128x384xbf16>
    %202 = vector.shape_cast %201 : vector<1x128x384xbf16> to vector<128x384xbf16>
    %c1_86 = arith.constant 1 : index
    %c0_87 = arith.constant 0 : index
    %c0_88 = arith.constant 0 : index
    %203 = vector.load %arg8[%c1_86, %c0_87, %c0_88] : memref<2x1x384xf32, #tpu.memory_space<vmem>>, vector<1x1x384xf32>
    %204 = vector.shape_cast %203 : vector<1x1x384xf32> to vector<1x384xf32>
    %205 = arith.truncf %200 : vector<16x128xf32> to vector<16x128xbf16>
    %cst_89 = arith.constant dense<0.000000e+00> : vector<16x384xf32>
    %206 = tpu.matmul %205, %202, %cst_89 {dimension_numbers = #tpu.dot_dimension_numbers<[1], [0], [0], [1], [0, 0, 1, 1], [], []>} : vector<16x128xbf16>, vector<128x384xbf16>, vector<16x384xf32> -> vector<16x384xf32>
    %207 = vector.broadcast %204 : vector<1x384xf32> to vector<16x384xf32>
    %208 = arith.addf %206, %207 : vector<16x384xf32>
    %209 = vector.extract_strided_slice %208 {offsets = [0, 0], sizes = [16, 128], strides = [1, 1]} : vector<16x384xf32> to vector<16x128xf32>
    %210 = vector.shape_cast %209 : vector<16x128xf32> to vector<16x4x32xf32>
    %211 = vector.extract_strided_slice %208 {offsets = [0, 128], sizes = [16, 128], strides = [1, 1]} : vector<16x384xf32> to vector<16x128xf32>
    %212 = vector.shape_cast %211 : vector<16x128xf32> to vector<16x4x32xf32>
    %213 = vector.extract_strided_slice %208 {offsets = [0, 256], sizes = [16, 128], strides = [1, 1]} : vector<16x384xf32> to vector<16x128xf32>
    %214 = vector.shape_cast %213 : vector<16x128xf32> to vector<16x4x32xf32>
    %215 = tpu.transpose %210, [1, 0, 2] : vector<16x4x32xf32> -> vector<4x16x32xf32>
    %216 = arith.truncf %215 : vector<4x16x32xf32> to vector<4x16x32xbf16>
    %217 = tpu.transpose %212, [1, 0, 2] : vector<16x4x32xf32> -> vector<4x16x32xf32>
    %218 = arith.truncf %217 : vector<4x16x32xf32> to vector<4x16x32xbf16>
    %219 = tpu.transpose %214, [1, 0, 2] : vector<16x4x32xf32> -> vector<4x16x32xf32>
    %220 = arith.truncf %219 : vector<4x16x32xf32> to vector<4x16x32xbf16>
    "tpu.trace_start"() <{level = 10 : i32, message = "hqd,hkd->hqk"}> : () -> ()
    %cst_90 = arith.constant dense<0.000000e+00> : vector<4x16x16xf32>
    %221 = tpu.matmul %216, %218, %cst_90 {dimension_numbers = #tpu.dot_dimension_numbers<[2], [2], [1], [1], [0, 0, 0, 1, 1, 1], [0], [0]>} : vector<4x16x32xbf16>, vector<4x16x32xbf16>, vector<4x16x16xf32> -> vector<4x16x16xf32>
    "tpu.trace_stop"() : () -> ()
    %cst_91 = arith.constant 0.176776692 : f32
    %222 = vector.broadcast %cst_91 : f32 to vector<4x16x16xf32>
    %223 = arith.mulf %221, %222 : vector<4x16x16xf32>
    %224 = vector.shape_cast %70 : vector<16x16xf32> to vector<1x16x16xf32>
    %225 = vector.broadcast %224 : vector<1x16x16xf32> to vector<4x16x16xf32>
    %226 = arith.addf %223, %225 : vector<4x16x16xf32>
    %cst_92 = arith.constant dense<0xFF800000> : vector<4x16xf32>
    %227 = vector.multi_reduction <maximumf>, %226, %cst_92 [2] : vector<4x16x16xf32> to vector<4x16xf32>
    %228 = vector.shape_cast %227 : vector<4x16xf32> to vector<4x16x1xf32>
    %229 = vector.broadcast %228 : vector<4x16x1xf32> to vector<4x16x16xf32>
    %230 = arith.subf %226, %229 : vector<4x16x16xf32>
    %231 = math.exp %230 : vector<4x16x16xf32>
    %cst_93 = arith.constant dense<0.000000e+00> : vector<4x16xf32>
    %232 = vector.multi_reduction <add>, %231, %cst_93 [2] : vector<4x16x16xf32> to vector<4x16xf32>
    %233 = vector.shape_cast %232 : vector<4x16xf32> to vector<4x16x1xf32>
    %234 = vector.broadcast %233 : vector<4x16x1xf32> to vector<4x16x16xf32>
    %235 = arith.divf %231, %234 : vector<4x16x16xf32>
    %236 = arith.truncf %235 : vector<4x16x16xf32> to vector<4x16x16xbf16>
    "tpu.trace_start"() <{level = 10 : i32, message = "hqk,hkd->hqd"}> : () -> ()
    %cst_94 = arith.constant dense<0.000000e+00> : vector<4x16x32xf32>
    %237 = tpu.matmul %236, %220, %cst_94 {dimension_numbers = #tpu.dot_dimension_numbers<[2], [1], [1], [2], [0, 0, 0, 1, 1, 2], [0], [0]>} : vector<4x16x16xbf16>, vector<4x16x32xbf16>, vector<4x16x32xf32> -> vector<4x16x32xf32>
    "tpu.trace_stop"() : () -> ()
    %238 = tpu.transpose %237, [1, 0, 2] : vector<4x16x32xf32> -> vector<16x4x32xf32>
    %239 = vector.shape_cast %238 : vector<16x4x32xf32> to vector<16x128xf32>
    %c1_95 = arith.constant 1 : index
    %c0_96 = arith.constant 0 : index
    %c0_97 = arith.constant 0 : index
    %240 = vector.load %arg9[%c1_95, %c0_96, %c0_97] : memref<2x128x128xbf16, #tpu.memory_space<vmem>>, vector<1x128x128xbf16>
    %241 = vector.shape_cast %240 : vector<1x128x128xbf16> to vector<128x128xbf16>
    %c1_98 = arith.constant 1 : index
    %c0_99 = arith.constant 0 : index
    %c0_100 = arith.constant 0 : index
    %242 = vector.load %arg10[%c1_98, %c0_99, %c0_100] : memref<2x1x128xf32, #tpu.memory_space<vmem>>, vector<1x1x128xf32>
    %243 = vector.shape_cast %242 : vector<1x1x128xf32> to vector<1x128xf32>
    %244 = arith.truncf %239 : vector<16x128xf32> to vector<16x128xbf16>
    %cst_101 = arith.constant dense<0.000000e+00> : vector<16x128xf32>
    %245 = tpu.matmul %244, %241, %cst_101 {dimension_numbers = #tpu.dot_dimension_numbers<[1], [0], [0], [1], [0, 0, 1, 1], [], []>} : vector<16x128xbf16>, vector<128x128xbf16>, vector<16x128xf32> -> vector<16x128xf32>
    %246 = vector.broadcast %243 : vector<1x128xf32> to vector<16x128xf32>
    %247 = arith.addf %245, %246 : vector<16x128xf32>
    %248 = arith.addf %200, %247 : vector<16x128xf32>
    %c1_102 = arith.constant 1 : index
    %c0_103 = arith.constant 0 : index
    %c0_104 = arith.constant 0 : index
    %249 = vector.load %arg11[%c1_102, %c0_103, %c0_104] : memref<2x1x128xf32, #tpu.memory_space<vmem>>, vector<1x1x128xf32>
    %250 = vector.shape_cast %249 : vector<1x1x128xf32> to vector<1x128xf32>
    %c1_105 = arith.constant 1 : index
    %c0_106 = arith.constant 0 : index
    %c0_107 = arith.constant 0 : index
    %251 = vector.load %arg12[%c1_105, %c0_106, %c0_107] : memref<2x1x128xf32, #tpu.memory_space<vmem>>, vector<1x1x128xf32>
    %252 = vector.shape_cast %251 : vector<1x1x128xf32> to vector<1x128xf32>
    %cst_108 = arith.constant dense<0.000000e+00> : vector<16xf32>
    %253 = vector.multi_reduction <add>, %248, %cst_108 [1] : vector<16x128xf32> to vector<16xf32>
    %254 = vector.shape_cast %253 : vector<16xf32> to vector<16x1xf32>
    %cst_109 = arith.constant 1.280000e+02 : f32
    %255 = vector.broadcast %cst_109 : f32 to vector<16x1xf32>
    %256 = arith.divf %254, %255 : vector<16x1xf32>
    %257 = vector.broadcast %256 : vector<16x1xf32> to vector<16x128xf32>
    %258 = arith.subf %248, %257 : vector<16x128xf32>
    %259 = arith.mulf %258, %258 : vector<16x128xf32>
    %cst_110 = arith.constant dense<0.000000e+00> : vector<16xf32>
    %260 = vector.multi_reduction <add>, %259, %cst_110 [1] : vector<16x128xf32> to vector<16xf32>
    %261 = vector.shape_cast %260 : vector<16xf32> to vector<16x1xf32>
    %cst_111 = arith.constant 1.280000e+02 : f32
    %262 = vector.broadcast %cst_111 : f32 to vector<16x1xf32>
    %263 = arith.divf %261, %262 : vector<16x1xf32>
    %264 = vector.broadcast %256 : vector<16x1xf32> to vector<16x128xf32>
    %265 = arith.subf %248, %264 : vector<16x128xf32>
    %cst_112 = arith.constant 9.99999996E-13 : f32
    %266 = vector.broadcast %cst_112 : f32 to vector<16x1xf32>
    %267 = arith.addf %263, %266 : vector<16x1xf32>
    %268 = math.rsqrt %267 : vector<16x1xf32>
    %269 = vector.broadcast %268 : vector<16x1xf32> to vector<16x128xf32>
    %270 = arith.mulf %265, %269 : vector<16x128xf32>
    %271 = vector.broadcast %250 : vector<1x128xf32> to vector<16x128xf32>
    %272 = arith.mulf %270, %271 : vector<16x128xf32>
    %273 = vector.broadcast %252 : vector<1x128xf32> to vector<16x128xf32>
    %274 = arith.addf %272, %273 : vector<16x128xf32>
    %c1_113 = arith.constant 1 : index
    %c0_114 = arith.constant 0 : index
    %c0_115 = arith.constant 0 : index
    %275 = vector.load %arg13[%c1_113, %c0_114, %c0_115] : memref<2x128x256xbf16, #tpu.memory_space<vmem>>, vector<1x128x256xbf16>
    %276 = vector.shape_cast %275 : vector<1x128x256xbf16> to vector<128x256xbf16>
    %c1_116 = arith.constant 1 : index
    %c0_117 = arith.constant 0 : index
    %c0_118 = arith.constant 0 : index
    %277 = vector.load %arg14[%c1_116, %c0_117, %c0_118] : memref<2x1x256xf32, #tpu.memory_space<vmem>>, vector<1x1x256xf32>
    %278 = vector.shape_cast %277 : vector<1x1x256xf32> to vector<1x256xf32>
    %279 = arith.truncf %274 : vector<16x128xf32> to vector<16x128xbf16>
    %cst_119 = arith.constant dense<0.000000e+00> : vector<16x256xf32>
    %280 = tpu.matmul %279, %276, %cst_119 {dimension_numbers = #tpu.dot_dimension_numbers<[1], [0], [0], [1], [0, 0, 1, 1], [], []>} : vector<16x128xbf16>, vector<128x256xbf16>, vector<16x256xf32> -> vector<16x256xf32>
    %281 = vector.broadcast %278 : vector<1x256xf32> to vector<16x256xf32>
    %282 = arith.addf %280, %281 : vector<16x256xf32>
    %283 = arith.mulf %282, %282 : vector<16x256xf32>
    %284 = arith.mulf %282, %283 : vector<16x256xf32>
    %cst_120 = arith.constant 4.471500e-02 : f32
    %285 = vector.broadcast %cst_120 : f32 to vector<16x256xf32>
    %286 = arith.mulf %285, %284 : vector<16x256xf32>
    %287 = arith.addf %282, %286 : vector<16x256xf32>
    %cst_121 = arith.constant 0.797884583 : f32
    %288 = vector.broadcast %cst_121 : f32 to vector<16x256xf32>
    %289 = arith.mulf %288, %287 : vector<16x256xf32>
    %290 = math.tanh %289 : vector<16x256xf32>
    %cst_122 = arith.constant 1.000000e+00 : f32
    %291 = vector.broadcast %cst_122 : f32 to vector<16x256xf32>
    %292 = arith.addf %291, %290 : vector<16x256xf32>
    %cst_123 = arith.constant 5.000000e-01 : f32
    %293 = vector.broadcast %cst_123 : f32 to vector<16x256xf32>
    %294 = arith.mulf %293, %292 : vector<16x256xf32>
    %295 = arith.mulf %282, %294 : vector<16x256xf32>
    %c1_124 = arith.constant 1 : index
    %c0_125 = arith.constant 0 : index
    %c0_126 = arith.constant 0 : index
    %296 = vector.load %arg15[%c1_124, %c0_125, %c0_126] : memref<2x256x128xbf16, #tpu.memory_space<vmem>>, vector<1x256x128xbf16>
    %297 = vector.shape_cast %296 : vector<1x256x128xbf16> to vector<256x128xbf16>
    %c1_127 = arith.constant 1 : index
    %c0_128 = arith.constant 0 : index
    %c0_129 = arith.constant 0 : index
    %298 = vector.load %arg16[%c1_127, %c0_128, %c0_129] : memref<2x1x128xf32, #tpu.memory_space<vmem>>, vector<1x1x128xf32>
    %299 = vector.shape_cast %298 : vector<1x1x128xf32> to vector<1x128xf32>
    %300 = arith.truncf %295 : vector<16x256xf32> to vector<16x256xbf16>
    %cst_130 = arith.constant dense<0.000000e+00> : vector<16x128xf32>
    %301 = tpu.matmul %300, %297, %cst_130 {dimension_numbers = #tpu.dot_dimension_numbers<[1], [0], [0], [1], [0, 0, 1, 1], [], []>} : vector<16x256xbf16>, vector<256x128xbf16>, vector<16x128xf32> -> vector<16x128xf32>
    %302 = vector.broadcast %299 : vector<1x128xf32> to vector<16x128xf32>
    %303 = arith.addf %301, %302 : vector<16x128xf32>
    %304 = arith.addf %274, %303 : vector<16x128xf32>
    %c1_131 = arith.constant 1 : index
    %c0_132 = arith.constant 0 : index
    %c0_133 = arith.constant 0 : index
    %305 = vector.load %arg17[%c1_131, %c0_132, %c0_133] : memref<2x1x128xf32, #tpu.memory_space<vmem>>, vector<1x1x128xf32>
    %306 = vector.shape_cast %305 : vector<1x1x128xf32> to vector<1x128xf32>
    %c1_134 = arith.constant 1 : index
    %c0_135 = arith.constant 0 : index
    %c0_136 = arith.constant 0 : index
    %307 = vector.load %arg18[%c1_134, %c0_135, %c0_136] : memref<2x1x128xf32, #tpu.memory_space<vmem>>, vector<1x1x128xf32>
    %308 = vector.shape_cast %307 : vector<1x1x128xf32> to vector<1x128xf32>
    %cst_137 = arith.constant dense<0.000000e+00> : vector<16xf32>
    %309 = vector.multi_reduction <add>, %304, %cst_137 [1] : vector<16x128xf32> to vector<16xf32>
    %310 = vector.shape_cast %309 : vector<16xf32> to vector<16x1xf32>
    %cst_138 = arith.constant 1.280000e+02 : f32
    %311 = vector.broadcast %cst_138 : f32 to vector<16x1xf32>
    %312 = arith.divf %310, %311 : vector<16x1xf32>
    %313 = vector.broadcast %312 : vector<16x1xf32> to vector<16x128xf32>
    %314 = arith.subf %304, %313 : vector<16x128xf32>
    %315 = arith.mulf %314, %314 : vector<16x128xf32>
    %cst_139 = arith.constant dense<0.000000e+00> : vector<16xf32>
    %316 = vector.multi_reduction <add>, %315, %cst_139 [1] : vector<16x128xf32> to vector<16xf32>
    %317 = vector.shape_cast %316 : vector<16xf32> to vector<16x1xf32>
    %cst_140 = arith.constant 1.280000e+02 : f32
    %318 = vector.broadcast %cst_140 : f32 to vector<16x1xf32>
    %319 = arith.divf %317, %318 : vector<16x1xf32>
    %320 = vector.broadcast %312 : vector<16x1xf32> to vector<16x128xf32>
    %321 = arith.subf %304, %320 : vector<16x128xf32>
    %cst_141 = arith.constant 9.99999996E-13 : f32
    %322 = vector.broadcast %cst_141 : f32 to vector<16x1xf32>
    %323 = arith.addf %319, %322 : vector<16x1xf32>
    %324 = math.rsqrt %323 : vector<16x1xf32>
    %325 = vector.broadcast %324 : vector<16x1xf32> to vector<16x128xf32>
    %326 = arith.mulf %321, %325 : vector<16x128xf32>
    %327 = vector.broadcast %306 : vector<1x128xf32> to vector<16x128xf32>
    %328 = arith.mulf %326, %327 : vector<16x128xf32>
    %329 = vector.broadcast %308 : vector<1x128xf32> to vector<16x128xf32>
    %330 = arith.addf %328, %329 : vector<16x128xf32>
    %cst_142 = arith.constant dense<0.000000e+00> : vector<2x128xf32>
    %331 = tpu.matmul %65, %330, %cst_142 {dimension_numbers = #tpu.dot_dimension_numbers<[1], [0], [0], [1], [0, 0, 1, 1], [], []>} : vector<2x16xf32>, vector<16x128xf32>, vector<2x128xf32> -> vector<2x128xf32>
    %cst_143 = arith.constant dense<0.000000e+00> : vector<2xf32>
    %332 = vector.multi_reduction <add>, %65, %cst_143 [1] : vector<2x16xf32> to vector<2xf32>
    %333 = vector.shape_cast %332 : vector<2xf32> to vector<2x1xf32>
    %cst_144 = arith.constant 9.99999971E-10 : f32
    %334 = vector.broadcast %cst_144 : f32 to vector<2x1xf32>
    %335 = arith.maximumf %333, %334 : vector<2x1xf32>
    %336 = vector.broadcast %335 : vector<2x1xf32> to vector<2x128xf32>
    %337 = arith.divf %331, %336 : vector<2x128xf32>
    %c0_145 = arith.constant 0 : index
    %c0_146 = arith.constant 0 : index
    %338 = vector.load %arg19[%c0_145, %c0_146] : memref<128x128xbf16, #tpu.memory_space<vmem>>, vector<128x128xbf16>
    %c0_147 = arith.constant 0 : index
    %c0_148 = arith.constant 0 : index
    %339 = vector.load %arg20[%c0_147, %c0_148] : memref<1x128xf32, #tpu.memory_space<vmem>>, vector<1x128xf32>
    %340 = arith.truncf %337 : vector<2x128xf32> to vector<2x128xbf16>
    %cst_149 = arith.constant dense<0.000000e+00> : vector<2x128xf32>
    %341 = tpu.matmul %340, %338, %cst_149 {dimension_numbers = #tpu.dot_dimension_numbers<[1], [0], [0], [1], [0, 0, 1, 1], [], []>} : vector<2x128xbf16>, vector<128x128xbf16>, vector<2x128xf32> -> vector<2x128xf32>
    %342 = vector.broadcast %339 : vector<1x128xf32> to vector<2x128xf32>
    %343 = arith.addf %341, %342 : vector<2x128xf32>
    %c0_150 = arith.constant 0 : index
    %c0_151 = arith.constant 0 : index
    %c0_152 = arith.constant 0 : index
    %344 = vector.load %arg21[%c0_150, %c0_151, %c0_152] : memref<1x2x128xf32, #tpu.memory_space<vmem>>, vector<1x2x128xf32>
    %345 = vector.shape_cast %344 : vector<1x2x128xf32> to vector<2x128xf32>
    %346 = vector.shape_cast %343 : vector<2x128xf32> to vector<1x2x128xf32>
    tpu.vector_store %arg21[%c0_150, %c0_151, %c0_152], %346 {strides = array<i32>} : memref<1x2x128xf32, #tpu.memory_space<vmem>>, vector<1x2x128xf32>,
    return
  }
  func.func @transform_0(%arg0: i32) -> (i32, i32, i32) {
    %c0_i32 = arith.constant 0 : i32
    %c0_i32_0 = arith.constant 0 : i32
    %c0_i32_1 = arith.constant 0 : i32
    return %arg0, %c0_i32, %c0_i32_0 : i32, i32, i32
  }
  func.func @transform_1(%arg0: i32) -> (i32, i32, i32) {
    %c0_i32 = arith.constant 0 : i32
    %c0_i32_0 = arith.constant 0 : i32
    %c0_i32_1 = arith.constant 0 : i32
    return %arg0, %c0_i32, %c0_i32_0 : i32, i32, i32
  }
  func.func @transform_2(%arg0: i32) -> (i32, i32) {
    %c0_i32 = arith.constant 0 : i32
    %c0_i32_0 = arith.constant 0 : i32
    %c0_i32_1 = arith.constant 0 : i32
    return %c0_i32, %c0_i32_0 : i32, i32
  }
  func.func @transform_3(%arg0: i32) -> (i32, i32) {
    %c0_i32 = arith.constant 0 : i32
    %c0_i32_0 = arith.constant 0 : i32
    %c0_i32_1 = arith.constant 0 : i32
    return %c0_i32, %c0_i32_0 : i32, i32
  }
  func.func @transform_4(%arg0: i32) -> (i32, i32) {
    %c0_i32 = arith.constant 0 : i32
    %c0_i32_0 = arith.constant 0 : i32
    %c0_i32_1 = arith.constant 0 : i32
    return %c0_i32, %c0_i32_0 : i32, i32
  }
  func.func @transform_5(%arg0: i32) -> (i32, i32) {
    %c0_i32 = arith.constant 0 : i32
    %c0_i32_0 = arith.constant 0 : i32
    %c0_i32_1 = arith.constant 0 : i32
    return %c0_i32, %c0_i32_0 : i32, i32
  }
  func.func @transform_6(%arg0: i32) -> (i32, i32, i32) {
    %c0_i32 = arith.constant 0 : i32
    %c0_i32_0 = arith.constant 0 : i32
    %c0_i32_1 = arith.constant 0 : i32
    %c0_i32_2 = arith.constant 0 : i32
    return %c0_i32, %c0_i32_0, %c0_i32_1 : i32, i32, i32
  }
  func.func @transform_7(%arg0: i32) -> (i32, i32, i32) {
    %c0_i32 = arith.constant 0 : i32
    %c0_i32_0 = arith.constant 0 : i32
    %c0_i32_1 = arith.constant 0 : i32
    %c0_i32_2 = arith.constant 0 : i32
    return %c0_i32, %c0_i32_0, %c0_i32_1 : i32, i32, i32
  }
  func.func @transform_8(%arg0: i32) -> (i32, i32, i32) {
    %c0_i32 = arith.constant 0 : i32
    %c0_i32_0 = arith.constant 0 : i32
    %c0_i32_1 = arith.constant 0 : i32
    %c0_i32_2 = arith.constant 0 : i32
    return %c0_i32, %c0_i32_0, %c0_i32_1 : i32, i32, i32
  }
  func.func @transform_9(%arg0: i32) -> (i32, i32, i32) {
    %c0_i32 = arith.constant 0 : i32
    %c0_i32_0 = arith.constant 0 : i32
    %c0_i32_1 = arith.constant 0 : i32
    %c0_i32_2 = arith.constant 0 : i32
    return %c0_i32, %c0_i32_0, %c0_i32_1 : i32, i32, i32
  }
  func.func @transform_10(%arg0: i32) -> (i32, i32, i32) {
    %c0_i32 = arith.constant 0 : i32
    %c0_i32_0 = arith.constant 0 : i32
    %c0_i32_1 = arith.constant 0 : i32
    %c0_i32_2 = arith.constant 0 : i32
    return %c0_i32, %c0_i32_0, %c0_i32_1 : i32, i32, i32
  }
  func.func @transform_11(%arg0: i32) -> (i32, i32, i32) {
    %c0_i32 = arith.constant 0 : i32
    %c0_i32_0 = arith.constant 0 : i32
    %c0_i32_1 = arith.constant 0 : i32
    %c0_i32_2 = arith.constant 0 : i32
    return %c0_i32, %c0_i32_0, %c0_i32_1 : i32, i32, i32
  }
  func.func @transform_12(%arg0: i32) -> (i32, i32, i32) {
    %c0_i32 = arith.constant 0 : i32
    %c0_i32_0 = arith.constant 0 : i32
    %c0_i32_1 = arith.constant 0 : i32
    %c0_i32_2 = arith.constant 0 : i32
    return %c0_i32, %c0_i32_0, %c0_i32_1 : i32, i32, i32
  }
  func.func @transform_13(%arg0: i32) -> (i32, i32, i32) {
    %c0_i32 = arith.constant 0 : i32
    %c0_i32_0 = arith.constant 0 : i32
    %c0_i32_1 = arith.constant 0 : i32
    %c0_i32_2 = arith.constant 0 : i32
    return %c0_i32, %c0_i32_0, %c0_i32_1 : i32, i32, i32
  }
  func.func @transform_14(%arg0: i32) -> (i32, i32, i32) {
    %c0_i32 = arith.constant 0 : i32
    %c0_i32_0 = arith.constant 0 : i32
    %c0_i32_1 = arith.constant 0 : i32
    %c0_i32_2 = arith.constant 0 : i32
    return %c0_i32, %c0_i32_0, %c0_i32_1 : i32, i32, i32
  }
  func.func @transform_15(%arg0: i32) -> (i32, i32, i32) {
    %c0_i32 = arith.constant 0 : i32
    %c0_i32_0 = arith.constant 0 : i32
    %c0_i32_1 = arith.constant 0 : i32
    %c0_i32_2 = arith.constant 0 : i32
    return %c0_i32, %c0_i32_0, %c0_i32_1 : i32, i32, i32
  }
  func.func @transform_16(%arg0: i32) -> (i32, i32, i32) {
    %c0_i32 = arith.constant 0 : i32
    %c0_i32_0 = arith.constant 0 : i32
    %c0_i32_1 = arith.constant 0 : i32
    %c0_i32_2 = arith.constant 0 : i32
    return %c0_i32, %c0_i32_0, %c0_i32_1 : i32, i32, i32
  }
  func.func @transform_17(%arg0: i32) -> (i32, i32, i32) {
    %c0_i32 = arith.constant 0 : i32
    %c0_i32_0 = arith.constant 0 : i32
    %c0_i32_1 = arith.constant 0 : i32
    %c0_i32_2 = arith.constant 0 : i32
    return %c0_i32, %c0_i32_0, %c0_i32_1 : i32, i32, i32
  }
  func.func @transform_18(%arg0: i32) -> (i32, i32) {
    %c0_i32 = arith.constant 0 : i32
    %c0_i32_0 = arith.constant 0 : i32
    %c0_i32_1 = arith.constant 0 : i32
    return %c0_i32, %c0_i32_0 : i32, i32
  }
  func.func @transform_19(%arg0: i32) -> (i32, i32) {
    %c0_i32 = arith.constant 0 : i32
    %c0_i32_0 = arith.constant 0 : i32
    %c0_i32_1 = arith.constant 0 : i32
    return %c0_i32, %c0_i32_0 : i32, i32
  }
  func.func @transform_20(%arg0: i32) -> (i32, i32, i32) {
    %c0_i32 = arith.constant 0 : i32
    %c0_i32_0 = arith.constant 0 : i32
    %c0_i32_1 = arith.constant 0 : i32
    return %arg0, %c0_i32, %c0_i32_0 : i32, i32, i32
  }
}

</mosaic_0001>

<llo_original>
// kernel: sentence_transformer_with_head.1
$region0: #{sentence_transformer_with_head.1}
  #allocation0 [shape = 'u32[]', space=smem, size = 0x4, offset = 0x4, fixed_abs, tag = 'smem constant byte address 0x4 - core index']
  #allocation1 [shape = 'u32[144,128]{1,0:T(1,128)}', space=vmem, size = 0x12000, scoped, tag = 'internal scratch']
  %s0 = inlined_call_operand.vmem [shape: s32[1,16,1], index: 0, kind: input, shape index: {}]
  %s1 = inlined_call_operand.vmem [shape: f32[1,1,16], index: 1, kind: input, shape index: {}]
  %s2 = inlined_call_operand.vmem [shape: f32[32,128], index: 2, kind: input, shape index: {}]
  %s3 = inlined_call_operand.vmem [shape: f32[8,128], index: 3, kind: input, shape index: {}]
  %s4 = inlined_call_operand.hbm [shape: f32[1,128], index: 4, kind: input, shape index: {}]
  %s5 = inlined_call_operand.hbm [shape: f32[1,128], index: 5, kind: input, shape index: {}]
  %s6 = inlined_call_operand.hbm [shape: bf16[2,128,384], index: 6, kind: input, shape index: {}]
  %s7 = inlined_call_operand.hbm [shape: f32[2,1,384], index: 7, kind: input, shape index: {}]
  %s8 = inlined_call_operand.hbm [shape: bf16[2,128,128], index: 8, kind: input, shape index: {}]
  %s9 = inlined_call_operand.hbm [shape: f32[2,1,128], index: 9, kind: input, shape index: {}]
  %s10 = inlined_call_operand.vmem [shape: f32[2,1,128], index: 10, kind: input, shape index: {}]
  %s11 = inlined_call_operand.vmem [shape: f32[2,1,128], index: 11, kind: input, shape index: {}]
  %s12 = inlined_call_operand.hbm [shape: bf16[2,128,256], index: 12, kind: input, shape index: {}]
  %s13 = inlined_call_operand.hbm [shape: f32[2,1,256], index: 13, kind: input, shape index: {}]
  %s14 = inlined_call_operand.hbm [shape: bf16[2,256,128], index: 14, kind: input, shape index: {}]
  %s15 = inlined_call_operand.hbm [shape: f32[2,1,128], index: 15, kind: input, shape index: {}]
  %s16 = inlined_call_operand.vmem [shape: f32[2,1,128], index: 16, kind: input, shape index: {}]
  %s17 = inlined_call_operand.vmem [shape: f32[2,1,128], index: 17, kind: input, shape index: {}]
  %s18 = inlined_call_operand.hbm [shape: bf16[128,128], index: 18, kind: input, shape index: {}]
  %s19 = inlined_call_operand.hbm [shape: f32[1,128], index: 19, kind: input, shape index: {}]
  %s20 = inlined_call_operand.hbm [shape: f32[1,2,128], index: 20, kind: output, shape index: {}]
  %s21 = sld [smem:[#allocation0]]
  $region138: #{sentence_transformer_with_head.1} parent=0
    _
  %s23 = ssub.s32 1, %s21
  %s24 = scalar_select 0, %s23, %s21
  $region1: #{sentence_transformer_with_head.1} parent=0
    #allocation2 [shape = 'u8[512]{0}', space=vmem, size = 0x400, scoped, tag = 'input window, operand 4, single buffered']
    #allocation3 [shape = 's32[1]{0}', space=sflag, size = 0x4, scoped, tag = 'scoped memory for sentence_transformer_with_head.1']
    #allocation4 [shape = 's32[1]{0}', space=sflag, size = 0x4, scoped, tag = 'scoped memory for sentence_transformer_with_head.1']
    #allocation5 [shape = 'u8[512]{0}', space=vmem, size = 0x400, scoped, tag = 'input window, operand 5, single buffered']
    #allocation6 [shape = 's32[1]{0}', space=sflag, size = 0x4, scoped, tag = 'scoped memory for sentence_transformer_with_head.1']
    #allocation7 [shape = 'u8[196608]{0}', space=vmem, size = 0x30000, scoped, tag = 'input window, operand 6, single buffered']
    #allocation8 [shape = 'u8[3072]{0}', space=vmem, size = 0xc00, scoped, tag = 'input window, operand 7, single buffered']
    #allocation9 [shape = 's32[1]{0}', space=sflag, size = 0x4, scoped, tag = 'scoped memory for sentence_transformer_with_head.1']
    #allocation10 [shape = 'u8[65536]{0}', space=vmem, size = 0x10000, scoped, tag = 'input window, operand 8, single buffered']
    #allocation11 [shape = 'u8[1024]{0}', space=vmem, size = 0x400, scoped, tag = 'input window, operand 9, single buffered']
    #allocation12 [shape = 's32[1]{0}', space=sflag, size = 0x4, scoped, tag = 'scoped memory for sentence_transformer_with_head.1']
    #allocation13 [shape = 'u8[131072]{0}', space=vmem, size = 0x20000, scoped, tag = 'input window, operand 12, single buffered']
    #allocation14 [shape = 'u8[2048]{0}', space=vmem, size = 0x800, scoped, tag = 'input window, operand 13, single buffered']
    #allocation15 [shape = 's32[1]{0}', space=sflag, size = 0x4, scoped, tag = 'scoped memory for sentence_transformer_with_head.1']
    #allocation16 [shape = 'u8[131072]{0}', space=vmem, size = 0x20000, scoped, tag = 'input window, operand 14, single buffered']
    #allocation17 [shape = 'u8[1024]{0}', space=vmem, size = 0x400, scoped, tag = 'input window, operand 15, single buffered']
    #allocation18 [shape = 's32[1]{0}', space=sflag, size = 0x4, scoped, tag = 'scoped memory for sentence_transformer_with_head.1']
    #allocation19 [shape = 'u8[32768]{0}', space=vmem, size = 0x8000, scoped, tag = 'input window, operand 18, single buffered']
    #allocation20 [shape = 'u8[512]{0}', space=vmem, size = 0x400, scoped, tag = 'input window, operand 19, single buffered']
    #allocation21 [shape = 's32[1]{0}', space=sflag, size = 0x4, scoped, tag = 'scoped memory for sentence_transformer_with_head.1']
    #allocation22 [shape = 'u8[1024]{0}', space=vmem, size = 0x400, scoped, tag = 'output window, operand 0, single buffered']
    %25 = vsyncpa [#allocation3], 0
    %26 = vsyncpa [#allocation6], 0
    %27 = vsyncpa [#allocation9], 0
    %28 = vsyncpa [#allocation12], 0
    %29 = vsyncpa [#allocation15], 0
    %30 = vsyncpa [#allocation18], 0
    %31 = vsyncpa [#allocation21], 0
    %32 = vsyncpa [#allocation4], 0
    // Predicated region
    $region2: #{sentence_transformer_with_head.1} parent=1 // pred_check
      _
    $region3: #{sentence_transformer_with_head.1} parent=1 // pred_check_branch
      %34 = sbr.rel (0) target = $region5
    $region4: #{sentence_transformer_with_head.1} parent=1 // pred_region
      _
    $region5: #{sentence_transformer_with_head.1} parent=1 // pred_fallthru
      _
    // Predicated region
    $region6: #{sentence_transformer_with_head.1} parent=1 // pred_check
      _
    $region7: #{sentence_transformer_with_head.1} parent=1 // pred_check_branch
      %36 = sbr.rel (0) target = $region9
    $region8: #{sentence_transformer_with_head.1} parent=1 // pred_region
      _
    $region9: #{sentence_transformer_with_head.1} parent=1 // pred_fallthru
      _
    // Predicated region
    $region10: #{sentence_transformer_with_head.1} parent=1 // pred_check
      _
    $region11: #{sentence_transformer_with_head.1} parent=1 // pred_check_branch
      %38 = sbr.rel (0) target = $region13
    $region12: #{sentence_transformer_with_head.1} parent=1 // pred_region
      _
    $region13: #{sentence_transformer_with_head.1} parent=1 // pred_fallthru
      _
    // Predicated region
    $region14: #{sentence_transformer_with_head.1} parent=1 // pred_check
      _
    $region15: #{sentence_transformer_with_head.1} parent=1 // pred_check_branch
      %40 = sbr.rel (0) target = $region17
    $region16: #{sentence_transformer_with_head.1} parent=1 // pred_region
      _
    $region17: #{sentence_transformer_with_head.1} parent=1 // pred_fallthru
      _
    // Predicated region
    $region18: #{sentence_transformer_with_head.1} parent=1 // pred_check
      _
    $region19: #{sentence_transformer_with_head.1} parent=1 // pred_check_branch
      %42 = sbr.rel (0) target = $region21
    $region20: #{sentence_transformer_with_head.1} parent=1 // pred_region
      %s44 = ssub.s32 16, 16
      %45 = vsyncadd [#allocation3], %s44
      %s47 = sshll.u32 [#allocation2], 4
      %s48 = int_to_ptr.vmem [resolvable:$true] %s47
      %50 = dma.hbm_to_vmem [thread:$0]  %s4, 16, %s48, [#allocation3]
    $region21: #{sentence_transformer_with_head.1} parent=1 // pred_fallthru
      _
    // Predicated region
    $region22: #{sentence_transformer_with_head.1} parent=1 // pred_check
      _
    $region23: #{sentence_transformer_with_head.1} parent=1 // pred_check_branch
      %52 = sbr.rel (0) target = $region25
    $region24: #{sentence_transformer_with_head.1} parent=1 // pred_region
      %s54 = ssub.s32 16, 16
      %55 = vsyncadd [#allocation6], %s54
      %s57 = sshll.u32 [#allocation5], 4
      %s58 = int_to_ptr.vmem [resolvable:$true] %s57
      %60 = dma.hbm_to_vmem [thread:$0]  %s5, 16, %s58, [#allocation6]
    $region25: #{sentence_transformer_with_head.1} parent=1 // pred_fallthru
      _
    // Predicated region
    $region26: #{sentence_transformer_with_head.1} parent=1 // pred_check
      _
    $region27: #{sentence_transformer_with_head.1} parent=1 // pred_check_branch
      %62 = sbr.rel (0) target = $region29
    $region28: #{sentence_transformer_with_head.1} parent=1 // pred_region
      %s64 = ssub.s32 6144, 6144
      %65 = vsyncadd [#allocation6], %s64
      %s66 = sshll.u32 [#allocation7], 4
      %s67 = int_to_ptr.vmem [resolvable:$true] %s66
      %72 = dma.hbm_to_vmem [thread:$0]  %s6, 6144, %s67, [#allocation6], 192, 192, 12
    $region29: #{sentence_transformer_with_head.1} parent=1 // pred_fallthru
      _
    // Predicated region
    $region30: #{sentence_transformer_with_head.1} parent=1 // pred_check
      _
    $region31: #{sentence_transformer_with_head.1} parent=1 // pred_check_branch
      %74 = sbr.rel (0) target = $region33
    $region32: #{sentence_transformer_with_head.1} parent=1 // pred_region
      %s76 = ssub.s32 96, 96
      %77 = vsyncadd [#allocation9], %s76
      %s78 = sshll.u32 [#allocation8], 4
      %s79 = int_to_ptr.vmem [resolvable:$true] %s78
      %84 = dma.hbm_to_vmem [thread:$0]  %s7, 96, %s79, [#allocation9], 48, 48, 3
    $region33: #{sentence_transformer_with_head.1} parent=1 // pred_fallthru
      _
    // Predicated region
    $region34: #{sentence_transformer_with_head.1} parent=1 // pred_check
      _
    $region35: #{sentence_transformer_with_head.1} parent=1 // pred_check_branch
      %86 = sbr.rel (0) target = $region37
    $region36: #{sentence_transformer_with_head.1} parent=1 // pred_region
      %s88 = ssub.s32 2048, 2048
      %89 = vsyncadd [#allocation9], %s88
      %s90 = sshll.u32 [#allocation10], 4
      %s91 = int_to_ptr.vmem [resolvable:$true] %s90
      %96 = dma.hbm_to_vmem [thread:$0]  %s8, 2048, %s91, [#allocation9], 64, 64, 4
    $region37: #{sentence_transformer_with_head.1} parent=1 // pred_fallthru
      _
    // Predicated region
    $region38: #{sentence_transformer_with_head.1} parent=1 // pred_check
      _
    $region39: #{sentence_transformer_with_head.1} parent=1 // pred_check_branch
      %98 = sbr.rel (0) target = $region41
    $region40: #{sentence_transformer_with_head.1} parent=1 // pred_region
      %s100 = ssub.s32 32, 32
      %101 = vsyncadd [#allocation12], %s100
      %s102 = sshll.u32 [#allocation11], 4
      %s103 = int_to_ptr.vmem [resolvable:$true] %s102
      %108 = dma.hbm_to_vmem [thread:$0]  %s9, 32, %s103, [#allocation12], 16, 16, 1
    $region41: #{sentence_transformer_with_head.1} parent=1 // pred_fallthru
      _
    // Predicated region
    $region42: #{sentence_transformer_with_head.1} parent=1 // pred_check
      _
    $region43: #{sentence_transformer_with_head.1} parent=1 // pred_check_branch
      %110 = sbr.rel (0) target = $region45
    $region44: #{sentence_transformer_with_head.1} parent=1 // pred_region
      _
    $region45: #{sentence_transformer_with_head.1} parent=1 // pred_fallthru
      _
    // Predicated region
    $region46: #{sentence_transformer_with_head.1} parent=1 // pred_check
      _
    $region47: #{sentence_transformer_with_head.1} parent=1 // pred_check_branch
      %112 = sbr.rel (0) target = $region49
    $region48: #{sentence_transformer_with_head.1} parent=1 // pred_region
      _
    $region49: #{sentence_transformer_with_head.1} parent=1 // pred_fallthru
      _
    // Predicated region
    $region50: #{sentence_transformer_with_head.1} parent=1 // pred_check
      _
    $region51: #{sentence_transformer_with_head.1} parent=1 // pred_check_branch
      %114 = sbr.rel (0) target = $region53
    $region52: #{sentence_transformer_with_head.1} parent=1 // pred_region
      %s116 = ssub.s32 4096, 4096
      %117 = vsyncadd [#allocation12], %s116
      %s118 = sshll.u32 [#allocation13], 4
      %s119 = int_to_ptr.vmem [resolvable:$true] %s118
      %124 = dma.hbm_to_vmem [thread:$0]  %s12, 4096, %s119, [#allocation12], 128, 128, 8
    $region53: #{sentence_transformer_with_head.1} parent=1 // pred_fallthru
      _
    // Predicated region
    $region54: #{sentence_transformer_with_head.1} parent=1 // pred_check
      _
    $region55: #{sentence_transformer_with_head.1} parent=1 // pred_check_branch
      %126 = sbr.rel (0) target = $region57
    $region56: #{sentence_transformer_with_head.1} parent=1 // pred_region
      %s128 = ssub.s32 64, 64
      %129 = vsyncadd [#allocation15], %s128
      %s130 = sshll.u32 [#allocation14], 4
      %s131 = int_to_ptr.vmem [resolvable:$true] %s130
      %136 = dma.hbm_to_vmem [thread:$0]  %s13, 64, %s131, [#allocation15], 32, 32, 2
    $region57: #{sentence_transformer_with_head.1} parent=1 // pred_fallthru
      _
    // Predicated region
    $region58: #{sentence_transformer_with_head.1} parent=1 // pred_check
      _
    $region59: #{sentence_transformer_with_head.1} parent=1 // pred_check_branch
      %138 = sbr.rel (0) target = $region61
    $region60: #{sentence_transformer_with_head.1} parent=1 // pred_region
      %s140 = ssub.s32 4096, 4096
      %141 = vsyncadd [#allocation15], %s140
      %s142 = sshll.u32 [#allocation16], 4
      %s143 = int_to_ptr.vmem [resolvable:$true] %s142
      %148 = dma.hbm_to_vmem [thread:$0]  %s14, 4096, %s143, [#allocation15], 64, 64, 4
    $region61: #{sentence_transformer_with_head.1} parent=1 // pred_fallthru
      _
    // Predicated region
    $region62: #{sentence_transformer_with_head.1} parent=1 // pred_check
      _
    $region63: #{sentence_transformer_with_head.1} parent=1 // pred_check_branch
      %150 = sbr.rel (0) target = $region65
    $region64: #{sentence_transformer_with_head.1} parent=1 // pred_region
      %s152 = ssub.s32 32, 32
      %153 = vsyncadd [#allocation18], %s152
      %s154 = sshll.u32 [#allocation17], 4
      %s155 = int_to_ptr.vmem [resolvable:$true] %s154
      %160 = dma.hbm_to_vmem [thread:$0]  %s15, 32, %s155, [#allocation18], 16, 16, 1
    $region65: #{sentence_transformer_with_head.1} parent=1 // pred_fallthru
      _
    // Predicated region
    $region66: #{sentence_transformer_with_head.1} parent=1 // pred_check
      _
    $region67: #{sentence_transformer_with_head.1} parent=1 // pred_check_branch
      %162 = sbr.rel (0) target = $region69
    $region68: #{sentence_transformer_with_head.1} parent=1 // pred_region
      _
    $region69: #{sentence_transformer_with_head.1} parent=1 // pred_fallthru
      _
    // Predicated region
    $region70: #{sentence_transformer_with_head.1} parent=1 // pred_check
      _
    $region71: #{sentence_transformer_with_head.1} parent=1 // pred_check_branch
      %164 = sbr.rel (0) target = $region73
    $region72: #{sentence_transformer_with_head.1} parent=1 // pred_region
      _
    $region73: #{sentence_transformer_with_head.1} parent=1 // pred_fallthru
      _
    // Predicated region
    $region74: #{sentence_transformer_with_head.1} parent=1 // pred_check
      _
    $region75: #{sentence_transformer_with_head.1} parent=1 // pred_check_branch
      %166 = sbr.rel (0) target = $region77
    $region76: #{sentence_transformer_with_head.1} parent=1 // pred_region
      %s168 = ssub.s32 1024, 1024
      %169 = vsyncadd [#allocation18], %s168
      %s170 = sshll.u32 [#allocation19], 4
      %s171 = int_to_ptr.vmem [resolvable:$true] %s170
      %176 = dma.hbm_to_vmem [thread:$0]  %s18, 1024, %s171, [#allocation18], 64, 64, 4
    $region77: #{sentence_transformer_with_head.1} parent=1 // pred_fallthru
      _
    // Predicated region
    $region78: #{sentence_transformer_with_head.1} parent=1 // pred_check
      _
    $region79: #{sentence_transformer_with_head.1} parent=1 // pred_check_branch
      %178 = sbr.rel (0) target = $region81
    $region80: #{sentence_transformer_with_head.1} parent=1 // pred_region
      %s180 = ssub.s32 16, 16
      %181 = vsyncadd [#allocation21], %s180
      %s183 = sshll.u32 [#allocation20], 4
      %s184 = int_to_ptr.vmem [resolvable:$true] %s183
      %186 = dma.hbm_to_vmem [thread:$0]  %s19, 16, %s184, [#allocation21]
    $region81: #{sentence_transformer_with_head.1} parent=1 // pred_fallthru
      _
    // Predicated region
    $region82: #{sentence_transformer_with_head.1} parent=1 // pred_check
      _
    $region83: #{sentence_transformer_with_head.1} parent=1 // pred_check_branch
      %188 = sbr.rel (0) target = $region85
    $region84: #{sentence_transformer_with_head.1} parent=1 // pred_region
      %189 = dma.done [#allocation3], 16
    $region85: #{sentence_transformer_with_head.1} parent=1 // pred_fallthru
      _
    // Predicated region
    $region86: #{sentence_transformer_with_head.1} parent=1 // pred_check
      _
    $region87: #{sentence_transformer_with_head.1} parent=1 // pred_check_branch
      %191 = sbr.rel (0) target = $region89
    $region88: #{sentence_transformer_with_head.1} parent=1 // pred_region
      %192 = dma.done [#allocation6], 16
    $region89: #{sentence_transformer_with_head.1} parent=1 // pred_fallthru
      _
    // Predicated region
    $region90: #{sentence_transformer_with_head.1} parent=1 // pred_check
      _
    $region91: #{sentence_transformer_with_head.1} parent=1 // pred_check_branch
      %194 = sbr.rel (0) target = $region93
    $region92: #{sentence_transformer_with_head.1} parent=1 // pred_region
      %195 = dma.done [#allocation6], 6144
    $region93: #{sentence_transformer_with_head.1} parent=1 // pred_fallthru
      _
    // Predicated region
    $region94: #{sentence_transformer_with_head.1} parent=1 // pred_check
      _
    $region95: #{sentence_transformer_with_head.1} parent=1 // pred_check_branch
      %197 = sbr.rel (0) target = $region97
    $region96: #{sentence_transformer_with_head.1} parent=1 // pred_region
      %198 = dma.done [#allocation9], 96
    $region97: #{sentence_transformer_with_head.1} parent=1 // pred_fallthru
      _
    // Predicated region
    $region98: #{sentence_transformer_with_head.1} parent=1 // pred_check
      _
    $region99: #{sentence_transformer_with_head.1} parent=1 // pred_check_branch
      %200 = sbr.rel (0) target = $region101
    $region100: #{sentence_transformer_with_head.1} parent=1 // pred_region
      %201 = dma.done [#allocation9], 2048
    $region101: #{sentence_transformer_with_head.1} parent=1 // pred_fallthru
      _
    // Predicated region
    $region102: #{sentence_transformer_with_head.1} parent=1 // pred_check
      _
    $region103: #{sentence_transformer_with_head.1} parent=1 // pred_check_branch
      %203 = sbr.rel (0) target = $region105
    $region104: #{sentence_transformer_with_head.1} parent=1 // pred_region
      %204 = dma.done [#allocation12], 32
    $region105: #{sentence_transformer_with_head.1} parent=1 // pred_fallthru
      _
    // Predicated region
    $region106: #{sentence_transformer_with_head.1} parent=1 // pred_check
      _
    $region107: #{sentence_transformer_with_head.1} parent=1 // pred_check_branch
      %206 = sbr.rel (0) target = $region109
    $region108: #{sentence_transformer_with_head.1} parent=1 // pred_region
      %207 = dma.done [#allocation12], 4096
    $region109: #{sentence_transformer_with_head.1} parent=1 // pred_fallthru
      _
    // Predicated region
    $region110: #{sentence_transformer_with_head.1} parent=1 // pred_check
      _
    $region111: #{sentence_transformer_with_head.1} parent=1 // pred_check_branch
      %209 = sbr.rel (0) target = $region113
    $region112: #{sentence_transformer_with_head.1} parent=1 // pred_region
      %210 = dma.done [#allocation15], 64
    $region113: #{sentence_transformer_with_head.1} parent=1 // pred_fallthru
      _
    // Predicated region
    $region114: #{sentence_transformer_with_head.1} parent=1 // pred_check
      _
    $region115: #{sentence_transformer_with_head.1} parent=1 // pred_check_branch
      %212 = sbr.rel (0) target = $region117
    $region116: #{sentence_transformer_with_head.1} parent=1 // pred_region
      %213 = dma.done [#allocation15], 4096
    $region117: #{sentence_transformer_with_head.1} parent=1 // pred_fallthru
      _
    // Predicated region
    $region118: #{sentence_transformer_with_head.1} parent=1 // pred_check
      _
    $region119: #{sentence_transformer_with_head.1} parent=1 // pred_check_branch
      %215 = sbr.rel (0) target = $region121
    $region120: #{sentence_transformer_with_head.1} parent=1 // pred_region
      %216 = dma.done [#allocation18], 32
    $region121: #{sentence_transformer_with_head.1} parent=1 // pred_fallthru
      _
    // Predicated region
    $region122: #{sentence_transformer_with_head.1} parent=1 // pred_check
      _
    $region123: #{sentence_transformer_with_head.1} parent=1 // pred_check_branch
      %218 = sbr.rel (0) target = $region125
    $region124: #{sentence_transformer_with_head.1} parent=1 // pred_region
      %219 = dma.done [#allocation18], 1024
    $region125: #{sentence_transformer_with_head.1} parent=1 // pred_fallthru
      _
    // Predicated region
    $region126: #{sentence_transformer_with_head.1} parent=1 // pred_check
      _
    $region127: #{sentence_transformer_with_head.1} parent=1 // pred_check_branch
      %221 = sbr.rel (0) target = $region129
    $region128: #{sentence_transformer_with_head.1} parent=1 // pred_region
      %222 = dma.done [#allocation21], 16
    $region129: #{sentence_transformer_with_head.1} parent=1 // pred_fallthru
      _
    %v224 = vld [vmem:[%s0] sm:$0xff]
    %v225 = vld [vmem:[%s0 + $0x8] sm:$0xff]
    %v226 = vld [vmem:[%s1] sm:$0x1]
    %v227 = vlaneseq
    %v228 = vand.u32 %v227, 127
    %229 = vset.pattern.permute.xlu0 0
    %230 = vperm.xlu0 %229, %v224
    %v231 = vpop.permute.xlu0 %230
    %232 = vset.pattern.permute.xlu0 0
    %233 = vperm.xlu0 %232, %v225
    %v234 = vpop.permute.xlu0 %233
    %vm235 = vcmp.eq.s32.totalorder %v231, %v228
    %vm236 = vcmp.eq.s32.totalorder %v234, %v228
    %v237 = vsel %vm235, 1, 0
    %v238 = vsel %vm236, 1, 0
    %v239 = vcvt.s32.f32 %v237
    %v240 = vcvt.s32.f32 %v238
    %v241 = vld [vmem:[%s2] sm:$0xff]
    %v242 = vld [vmem:[%s2 + $0x8] sm:$0xff]
    %v243 = vld [vmem:[%s2 + $0x10] sm:$0xff]
    %v244 = vld [vmem:[%s2 + $0x18] sm:$0xff]
    %v245 = vld [vmem:[%s3] sm:$0xff]
    %vm246 = vcmask 261120
    %v248 = vsel %vm246, %v239, 0
    %v251 = vsel %vm246, %v240, 0
    %253 = vmatprep.subr.mxu0 0.0
    %254 = vmatpush1.msra.mxu0 %v241
    %255 = vmatprep.subr.mxu0 0.0
    %256 = vmatpush1.msra.mxu0 %v242
    %257 = vmatprep.subr.mxu0 0.0
    %258 = vmatpush1.msra.mxu0 %v243
    %259 = vmatprep.subr.mxu0 0.0
    %260 = vmatpush1.msra.mxu0 %v244
    %261 = vmatprep.subr.mxu0 0.0
    %262 = vmatpush1.msra.mxu0 0.0
    %263 = vmatprep.subr.mxu0 0.0
    %264 = vmatpush1.msra.mxu0 0.0
    %265 = vmatprep.subr.mxu0 0.0
    %266 = vmatpush1.msra.mxu0 0.0
    %267 = vmatprep.subr.mxu0 0.0
    %268 = vmatpush1.msra.mxu0 0.0
    %269 = vmatprep.subr.mxu0 0.0
    %270 = vmatpush1.msra.mxu0 0.0
    %271 = vmatprep.subr.mxu0 0.0
    %272 = vmatpush1.msra.mxu0 0.0
    %273 = vmatprep.subr.mxu0 0.0
    %274 = vmatpush1.msra.mxu0 0.0
    %275 = vmatprep.subr.mxu0 0.0
    %276 = vmatpush1.msra.mxu0 0.0
    %277 = vmatprep.subr.mxu0 0.0
    %278 = vmatpush1.msra.mxu0 0.0
    %279 = vmatprep.subr.mxu0 0.0
    %280 = vmatpush1.msra.mxu0 0.0
    %281 = vmatprep.subr.mxu0 0.0
    %282 = vmatpush1.msra.mxu0 0.0
    %283 = vmatprep.subr.mxu0 0.0
    %284 = vmatpush1.msra.mxu0 0.0
    %285 = vmatprep.subr.mxu0 0.0
    %286 = vmatpush1.msra.mxu0 0.0
    %287 = vmatprep.subr.mxu0 0.0
    %288 = vmatpush1.msra.mxu0 0.0
    %289 = vmatprep.subr.mxu0 0.0
    %290 = vmatpush1.msra.mxu0 0.0
    %291 = vmatprep.subr.mxu0 0.0
    %292 = vmatpush1.msra.mxu0 0.0
    %293 = vmatprep.subr.mxu0 0.0
    %294 = vmatpush1.msra.mxu0 0.0
    %295 = vmatprep.subr.mxu0 0.0
    %296 = vmatpush1.msra.mxu0 0.0
    %297 = vmatprep.subr.mxu0 0.0
    %298 = vmatpush1.msra.mxu0 0.0
    %299 = vmatprep.subr.mxu0 0.0
    %300 = vmatpush1.msra.mxu0 0.0
    %301 = vmatprep.subr.mxu0 0.0
    %302 = vmatpush1.msra.mxu0 0.0
    %303 = vmatprep.subr.mxu0 0.0
    %304 = vmatpush1.msra.mxu0 0.0
    %305 = vmatprep.subr.mxu0 0.0
    %306 = vmatpush1.msra.mxu0 0.0
    %307 = vmatprep.subr.mxu0 0.0
    %308 = vmatpush1.msra.mxu0 0.0
    %309 = vmatprep.subr.mxu0 0.0
    %310 = vmatpush1.msra.mxu0 0.0
    %311 = vmatprep.subr.mxu0 0.0
    %312 = vmatpush1.msra.mxu0 0.0
    %313 = vmatprep.subr.mxu0 0.0
    %314 = vmatpush1.msra.mxu0 0.0
    %315 = vmatprep.subr.mxu0 0.0
    %316 = vmatpush1.msra.mxu0 0.0
    %317 = vmatprep.mubr.f32.mxu0 0.0
    %318 = vmatmul.mubr.f32.gmra.mrb[0].mxu0 %v248
    %v319 = vpop.f32.mrb[0].mxu0
    %v320 = vadd.f32 %v245, %v319
    %v321 = vpop.f32.mrb[0].mxu0
    %322 = vmatprep.mubr.f32.mxu0 0.0
    %323 = vmatmul.mubr.f32.gmra.mrb[0].mxu0 %v251
    %v324 = vpop.f32.mrb[0].mxu0
    %v325 = vadd.f32 %v245, %v324
    %v326 = vpop.f32.mrb[0].mxu0
    %327 = vdwg.mxu0
    %v328 = vld [vmem:[#allocation2] sm:$0x1]
    %v329 = vld [vmem:[#allocation5] sm:$0x1]
    %330 = vadd.xlane.f32.xlu0 %v320
    %v331 = vpop.xlane.xlu0 %330
    %332 = vadd.xlane.f32.xlu0 %v325
    %v333 = vpop.xlane.xlu0 %332
    %v334 = vrcp.pop 128.0
    %v335 = vmul.f32 %v331, %v334
    %v336 = vmul.f32 %v333, %v334
    %v337 = vsub.f32 %v320, %v335
    %v338 = vsub.f32 %v325, %v336
    %v339 = vmul.f32 %v337, %v337
    %v340 = vmul.f32 %v338, %v338
    %341 = vadd.xlane.f32.xlu0 %v339
    %v342 = vpop.xlane.xlu0 %341
    %343 = vadd.xlane.f32.xlu0 %v340
    %v344 = vpop.xlane.xlu0 %343
    %v345 = vmul.f32 %v342, %v334
    %v346 = vmul.f32 %v344, %v334
    %v347 = vadd.f32 %v345, 1e-12
    %v348 = vadd.f32 %v346, 1e-12
    %v349 = vrsqrt.pop %v347
    %v350 = vrsqrt.pop %v348
    %v351 = vmul.f32 %v337, %v349
    %v352 = vmul.f32 %v338, %v350
    %v354 = vlaneseq
    %v355 = vshrl.u32 %v354, 7
    %v356 = vsub.s32 0, %v355
    %v357 = vrot.slane %v328, %v356
    %v359 = vmul.f32 %v351, %v357
    %v360 = vmul.f32 %v352, %v357
    %v362 = vlaneseq
    %v363 = vshrl.u32 %v362, 7
    %v364 = vsub.s32 0, %v363
    %v365 = vrot.slane %v329, %v364
    %v367 = vadd.f32 %v359, %v365
    %v368 = vadd.f32 %v360, %v365
    %v369 = vlaneseq
    %v370 = vshrl.u32 %v369, 7
    %v371 = vadd.s32 %v370, 8
    %v372 = vmul.u32 %v228, 8
    %vm373 = vcmp.ge.s32.totalorder %v370, %v372
    %vm374 = vcmp.ge.s32.totalorder %v371, %v372
    %v375 = vadd.s32 %v228, 1
    %v376 = vmul.u32 %v375, 8
    %vm377 = vcmp.lt.s32.totalorder %v370, %v376
    %vm378 = vcmp.lt.s32.totalorder %v371, %v376
    %vm379 = vmand %vm373, %vm377
    %vm380 = vmand %vm374, %vm378
    %v381 = vsel %vm379, 1, 0
    %v382 = vsel %vm380, 1, 0
    %v383 = vcvt.s32.f32 %v381
    %v384 = vcvt.s32.f32 %v382
    %v385 = vmul.u32 %v370, 8
    %vm386 = vcmp.ge.s32.totalorder %v228, %v385
    %v387 = vadd.s32 %v370, 1
    %v388 = vmul.u32 %v387, 8
    %vm389 = vcmp.lt.s32.totalorder %v228, %v388
    %vm390 = vmand %vm386, %vm389
    %v391 = vsel %vm390, 1, 0
    %v392 = vcvt.s32.f32 %v391
    %v394 = vlaneseq
    %v395 = vshrl.u32 %v394, 7
    %v396 = vsub.s32 0, %v395
    %v397 = vrot.slane %v226, %v396
    %v399 = vmul.f32 %v392, %v397
    %vm400 = vcmask 15360
    %v402 = vsel %vm400, %v383, 0
    %v405 = vsel %vm400, %v384, 0
    %vm407 = vcmask 1041408
    %v409 = vsel %vm407, %v399, 0
    %411 = vmatprep.subr.mxu0 0.0
    %412 = vmatpush1.msra.mxu0 %v409
    %413 = vmatprep.subr.mxu0 0.0
    %414 = vmatpush1.msra.mxu0 0.0
    %415 = vmatprep.subr.mxu0 0.0
    %416 = vmatpush1.msra.mxu0 0.0
    %417 = vmatprep.subr.mxu0 0.0
    %418 = vmatpush1.msra.mxu0 0.0
    %419 = vmatprep.subr.mxu0 0.0
    %420 = vmatpush1.msra.mxu0 0.0
    %421 = vmatprep.subr.mxu0 0.0
    %422 = vmatpush1.msra.mxu0 0.0
    %423 = vmatprep.subr.mxu0 0.0
    %424 = vmatpush1.msra.mxu0 0.0
    %425 = vmatprep.subr.mxu0 0.0
    %426 = vmatpush1.msra.mxu0 0.0
    %427 = vmatprep.subr.mxu0 0.0
    %428 = vmatpush1.msra.mxu0 0.0
    %429 = vmatprep.subr.mxu0 0.0
    %430 = vmatpush1.msra.mxu0 0.0
    %431 = vmatprep.subr.mxu0 0.0
    %432 = vmatpush1.msra.mxu0 0.0
    %433 = vmatprep.subr.mxu0 0.0
    %434 = vmatpush1.msra.mxu0 0.0
    %435 = vmatprep.subr.mxu0 0.0
    %436 = vmatpush1.msra.mxu0 0.0
    %437 = vmatprep.subr.mxu0 0.0
    %438 = vmatpush1.msra.mxu0 0.0
    %439 = vmatprep.subr.mxu0 0.0
    %440 = vmatpush1.msra.mxu0 0.0
    %441 = vmatprep.subr.mxu0 0.0
    %442 = vmatpush1.msra.mxu0 0.0
    %443 = vmatprep.subr.mxu0 0.0
    %444 = vmatpush1.msra.mxu0 0.0
    %445 = vmatprep.subr.mxu0 0.0
    %446 = vmatpush1.msra.mxu0 0.0
    %447 = vmatprep.subr.mxu0 0.0
    %448 = vmatpush1.msra.mxu0 0.0
    %449 = vmatprep.subr.mxu0 0.0
    %450 = vmatpush1.msra.mxu0 0.0
    %451 = vmatprep.subr.mxu0 0.0
    %452 = vmatpush1.msra.mxu0 0.0
    %453 = vmatprep.subr.mxu0 0.0
    %454 = vmatpush1.msra.mxu0 0.0
    %455 = vmatprep.subr.mxu0 0.0
    %456 = vmatpush1.msra.mxu0 0.0
    %457 = vmatprep.subr.mxu0 0.0
    %458 = vmatpush1.msra.mxu0 0.0
    %459 = vmatprep.subr.mxu0 0.0
    %460 = vmatpush1.msra.mxu0 0.0
    %461 = vmatprep.subr.mxu0 0.0
    %462 = vmatpush1.msra.mxu0 0.0
    %463 = vmatprep.subr.mxu0 0.0
    %464 = vmatpush1.msra.mxu0 0.0
    %465 = vmatprep.subr.mxu0 0.0
    %466 = vmatpush1.msra.mxu0 0.0
    %467 = vmatprep.subr.mxu0 0.0
    %468 = vmatpush1.msra.mxu0 0.0
    %469 = vmatprep.subr.mxu0 0.0
    %470 = vmatpush1.msra.mxu0 0.0
    %471 = vmatprep.subr.mxu0 0.0
    %472 = vmatpush1.msra.mxu0 0.0
    %473 = vmatprep.subr.mxu0 0.0
    %474 = vmatpush1.msra.mxu0 0.0
    %475 = vmatprep.mubr.f32.mxu0 0.0
    %476 = vmatmul.mubr.f32.gmra.mrb[0].mxu0 %v402
    %v477 = vpop.f32.mrb[0].mxu0
    %v478 = vadd.f32 0.0, %v477
    %v479 = vpop.f32.mrb[0].mxu0
    %480 = vmatprep.mubr.f32.mxu0 0.0
    %481 = vmatmul.mubr.f32.gmra.mrb[0].mxu0 %v405
    %v482 = vpop.f32.mrb[0].mxu0
    %v483 = vadd.f32 0.0, %v482
    %v484 = vpop.f32.mrb[0].mxu0
    %485 = vdwg.mxu0
    %v486 = vsub.f32 %v478, 1.0
    %v487 = vsub.f32 %v483, 1.0
    %v488 = vmul.f32 %v486, 1e+09
    %v489 = vmul.f32 %v487, 1e+09
    %v490 = vld [vmem:[#allocation7] sm:$0xff]
    %v491 = vld [vmem:[#allocation7 + $0x8] sm:$0xf]
    %v492 = vld [vmem:[#allocation7 + $0xc] sm:$0xff]
    %v493 = vld [vmem:[#allocation7 + $0x14] sm:$0xf]
    %v494 = vld [vmem:[#allocation7 + $0x18] sm:$0xff]
    %v495 = vld [vmem:[#allocation7 + $0x20] sm:$0xf]
    %v496 = vld [vmem:[#allocation7 + $0x24] sm:$0xff]
    %v497 = vld [vmem:[#allocation7 + $0x2c] sm:$0xf]
    %v498 = vld [vmem:[#allocation7 + $0x30] sm:$0xff]
    %v499 = vld [vmem:[#allocation7 + $0x38] sm:$0xf]
    %v500 = vld [vmem:[#allocation7 + $0x3c] sm:$0xff]
    %v501 = vld [vmem:[#allocation7 + $0x44] sm:$0xf]
    %v502 = vld [vmem:[#allocation7 + $0x48] sm:$0xff]
    %v503 = vld [vmem:[#allocation7 + $0x50] sm:$0xf]
    %v504 = vld [vmem:[#allocation7 + $0x54] sm:$0xff]
    %v505 = vld [vmem:[#allocation7 + $0x5c] sm:$0xf]
    %v506 = vld [vmem:[#allocation7 + $0x60] sm:$0xff]
    %v507 = vld [vmem:[#allocation7 + $0x68] sm:$0xf]
    %v508 = vld [vmem:[#allocation7 + $0x6c] sm:$0xff]
    %v509 = vld [vmem:[#allocation7 + $0x74] sm:$0xf]
    %v510 = vld [vmem:[#allocation7 + $0x78] sm:$0xff]
    %v511 = vld [vmem:[#allocation7 + $0x80] sm:$0xf]
    %v512 = vld [vmem:[#allocation7 + $0x84] sm:$0xff]
    %v513 = vld [vmem:[#allocation7 + $0x8c] sm:$0xf]
    %v514 = vld [vmem:[#allocation7 + $0x90] sm:$0xff]
    %v515 = vld [vmem:[#allocation7 + $0x98] sm:$0xf]
    %v516 = vld [vmem:[#allocation7 + $0x9c] sm:$0xff]
    %v517 = vld [vmem:[#allocation7 + $0xa4] sm:$0xf]
    %v518 = vld [vmem:[#allocation7 + $0xa8] sm:$0xff]
    %v519 = vld [vmem:[#allocation7 + $0xb0] sm:$0xf]
    %v520 = vld [vmem:[#allocation7 + $0xb4] sm:$0xff]
    %v521 = vld [vmem:[#allocation7 + $0xbc] sm:$0xf]
    %v522 = vld [vmem:[#allocation8] sm:$0x7]
    %v523 = vpack.c.bf16 %v368, %v367
    %v525 = vlaneseq
    %v526 = vshrl.u32 %v525, 7
    %v527 = vsub.s32 0, %v526
    %v528 = vrot.slane %v522, %v527
    %v529 = vlaneseq
    %v530 = vshrl.u32 %v529, 7
    %v531 = vsub.s32 1, %v530
    %v532 = vrot.slane %v522, %v531
    %v533 = vlaneseq
    %v534 = vshrl.u32 %v533, 7
    %v535 = vsub.s32 2, %v534
    %v536 = vrot.slane %v522, %v535
    %v572 = vunpack.c.l.b16 %v490
    %v573 = vunpack.c.h.b16 %v490
    %v574 = vunpack.c.l.b16 %v491
    %v575 = vunpack.c.l.b16 %v492
    %v576 = vunpack.c.h.b16 %v492
    %v577 = vunpack.c.l.b16 %v493
    %v578 = vunpack.c.l.b16 %v494
    %v579 = vunpack.c.h.b16 %v494
    %v580 = vunpack.c.l.b16 %v495
    %v581 = vunpack.c.l.b16 %v496
    %v582 = vunpack.c.h.b16 %v496
    %v583 = vunpack.c.l.b16 %v497
    %v584 = vunpack.c.l.b16 %v498
    %v585 = vunpack.c.h.b16 %v498
    %v586 = vunpack.c.l.b16 %v499
    %v587 = vunpack.c.l.b16 %v500
    %v588 = vunpack.c.h.b16 %v500
    %v589 = vunpack.c.l.b16 %v501
    %v590 = vunpack.c.l.b16 %v502
    %v591 = vunpack.c.h.b16 %v502
    %v592 = vunpack.c.l.b16 %v503
    %v593 = vunpack.c.l.b16 %v504
    %v594 = vunpack.c.h.b16 %v504
    %v595 = vunpack.c.l.b16 %v505
    %v596 = vunpack.c.l.b16 %v506
    %v597 = vunpack.c.h.b16 %v506
    %v598 = vunpack.c.l.b16 %v507
    %v599 = vunpack.c.l.b16 %v508
    %v600 = vunpack.c.h.b16 %v508
    %v601 = vunpack.c.l.b16 %v509
    %v602 = vunpack.c.l.b16 %v510
    %v603 = vunpack.c.h.b16 %v510
    %v604 = vunpack.c.l.b16 %v511
    %v605 = vunpack.c.l.b16 %v512
    %v606 = vunpack.c.h.b16 %v512
    %v607 = vunpack.c.l.b16 %v513
    %v608 = vunpack.c.l.b16 %v514
    %v609 = vunpack.c.h.b16 %v514
    %v610 = vunpack.c.l.b16 %v515
    %v611 = vunpack.c.l.b16 %v516
    %v612 = vunpack.c.h.b16 %v516
    %v613 = vunpack.c.l.b16 %v517
    %v614 = vunpack.c.l.b16 %v518
    %v615 = vunpack.c.h.b16 %v518
    %v616 = vunpack.c.l.b16 %v519
    %v617 = vunpack.c.l.b16 %v520
    %v618 = vunpack.c.h.b16 %v520
    %v619 = vunpack.c.l.b16 %v521
    %v620 = vpack.c.b16 %v575, %v572
    %v621 = vpack.c.b16 %v576, %v573
    %v622 = vpack.c.b16 %v577, %v574
    %v623 = vpack.c.b16 %v581, %v578
    %v624 = vpack.c.b16 %v582, %v579
    %v625 = vpack.c.b16 %v583, %v580
    %v626 = vpack.c.b16 %v587, %v584
    %v627 = vpack.c.b16 %v588, %v585
    %v628 = vpack.c.b16 %v589, %v586
    %v629 = vpack.c.b16 %v593, %v590
    %v630 = vpack.c.b16 %v594, %v591
    %v631 = vpack.c.b16 %v595, %v592
    %v632 = vpack.c.b16 %v599, %v596
    %v633 = vpack.c.b16 %v600, %v597
    %v634 = vpack.c.b16 %v601, %v598
    %v635 = vpack.c.b16 %v605, %v602
    %v636 = vpack.c.b16 %v606, %v603
    %v637 = vpack.c.b16 %v607, %v604
    %v638 = vpack.c.b16 %v611, %v608
    %v639 = vpack.c.b16 %v612, %v609
    %v640 = vpack.c.b16 %v613, %v610
    %v641 = vpack.c.b16 %v617, %v614
    %v642 = vpack.c.b16 %v618, %v615
    %v643 = vpack.c.b16 %v619, %v616
    %668 = vmatprep.subr.bf16.mxu0 %v621
    %669 = vmatpush1.bf16.msra.mxu0 %v620
    %670 = vmatprep.subr.bf16.mxu0 %v624
    %671 = vmatpush1.bf16.msra.mxu0 %v623
    %672 = vmatprep.subr.bf16.mxu0 %v627
    %673 = vmatpush1.bf16.msra.mxu0 %v626
    %674 = vmatprep.subr.bf16.mxu0 %v630
    %675 = vmatpush1.bf16.msra.mxu0 %v629
    %676 = vmatprep.subr.bf16.mxu0 %v633
    %677 = vmatpush1.bf16.msra.mxu0 %v632
    %678 = vmatprep.subr.bf16.mxu0 %v636
    %679 = vmatpush1.bf16.msra.mxu0 %v635
    %680 = vmatprep.subr.bf16.mxu0 %v639
    %681 = vmatpush1.bf16.msra.mxu0 %v638
    %682 = vmatprep.subr.bf16.mxu0 %v642
    %683 = vmatpush1.bf16.msra.mxu0 %v641
    %684 = vmatprep.subr.bf16.mxu0 0
    %685 = vmatpush1.bf16.msra.mxu0 0
    %686 = vmatprep.subr.bf16.mxu0 0
    %687 = vmatpush1.bf16.msra.mxu0 0
    %688 = vmatprep.subr.bf16.mxu0 0
    %689 = vmatpush1.bf16.msra.mxu0 0
    %690 = vmatprep.subr.bf16.mxu0 0
    %691 = vmatpush1.bf16.msra.mxu0 0
    %692 = vmatprep.subr.bf16.mxu0 0
    %693 = vmatpush1.bf16.msra.mxu0 0
    %694 = vmatprep.subr.bf16.mxu0 0
    %695 = vmatpush1.bf16.msra.mxu0 0
    %696 = vmatprep.subr.bf16.mxu0 0
    %697 = vmatpush1.bf16.msra.mxu0 0
    %698 = vmatprep.subr.bf16.mxu0 0
    %699 = vmatpush1.bf16.msra.mxu0 0
    %700 = vmatprep.mubr.bf16.mxu0 0
    %701 = vmatmul.mubr.bf16.gmra.mrb[0].mxu0 %v523
    %v702 = vpop.f32.mrb[0].mxu0
    %v703 = vadd.f32 %v528, %v702
    %v704 = vpop.f32.mrb[0].mxu0
    %v705 = vadd.f32 %v532, %v704
    %v706 = vpop.f32.mrb[0].mxu0
    %v707 = vadd.f32 %v528, %v706
    %v708 = vpop.f32.mrb[0].mxu0
    %v709 = vadd.f32 %v532, %v708
    %710 = vdwg.mxu0
    %711 = vmatprep.subr.bf16.mxu0 0
    %712 = vmatpush1.bf16.msra.mxu0 %v622
    %713 = vmatprep.subr.bf16.mxu0 0
    %714 = vmatpush1.bf16.msra.mxu0 %v625
    %715 = vmatprep.subr.bf16.mxu0 0
    %716 = vmatpush1.bf16.msra.mxu0 %v628
    %717 = vmatprep.subr.bf16.mxu0 0
    %718 = vmatpush1.bf16.msra.mxu0 %v631
    %719 = vmatprep.subr.bf16.mxu0 0
    %720 = vmatpush1.bf16.msra.mxu0 %v634
    %721 = vmatprep.subr.bf16.mxu0 0
    %722 = vmatpush1.bf16.msra.mxu0 %v637
    %723 = vmatprep.subr.bf16.mxu0 0
    %724 = vmatpush1.bf16.msra.mxu0 %v640
    %725 = vmatprep.subr.bf16.mxu0 0
    %726 = vmatpush1.bf16.msra.mxu0 %v643
    %727 = vmatprep.subr.bf16.mxu0 0
    %728 = vmatpush1.bf16.msra.mxu0 0
    %729 = vmatprep.subr.bf16.mxu0 0
    %730 = vmatpush1.bf16.msra.mxu0 0
    %731 = vmatprep.subr.bf16.mxu0 0
    %732 = vmatpush1.bf16.msra.mxu0 0
    %733 = vmatprep.subr.bf16.mxu0 0
    %734 = vmatpush1.bf16.msra.mxu0 0
    %735 = vmatprep.subr.bf16.mxu0 0
    %736 = vmatpush1.bf16.msra.mxu0 0
    %737 = vmatprep.subr.bf16.mxu0 0
    %738 = vmatpush1.bf16.msra.mxu0 0
    %739 = vmatprep.subr.bf16.mxu0 0
    %740 = vmatpush1.bf16.msra.mxu0 0
    %741 = vmatprep.subr.bf16.mxu0 0
    %742 = vmatpush1.bf16.msra.mxu0 0
    %743 = vmatprep.mubr.bf16.mxu0 0
    %744 = vmatmul.mubr.bf16.gmra.mrb[0].mxu0 %v523
    %v745 = vpop.f32.mrb[0].mxu0
    %v746 = vadd.f32 %v536, %v745
    %v747 = vpop.f32.mrb[0].mxu0
    %v748 = vpop.f32.mrb[0].mxu0
    %v749 = vadd.f32 %v536, %v748
    %v750 = vpop.f32.mrb[0].mxu0
    %751 = vdwg.mxu0
    %754 = vrot.lane.b32.xlu0 %v703, 96
    %v755 = vpop.permute.xlu0 %754
    %756 = vrot.lane.b32.xlu0 %v707, 96
    %v757 = vpop.permute.xlu0 %756
    %760 = vrot.lane.b32.xlu0 %v703, 64
    %v761 = vpop.permute.xlu0 %760
    %762 = vrot.lane.b32.xlu0 %v707, 64
    %v763 = vpop.permute.xlu0 %762
    %766 = vrot.lane.b32.xlu0 %v703, 32
    %v767 = vpop.permute.xlu0 %766
    %768 = vrot.lane.b32.xlu0 %v707, 32
    %v769 = vpop.permute.xlu0 %768
    %v772 = vcombine.low %v703, %v761
    %v773 = vcombine.high %v703, %v761
    %v775 = vunpack.c.l.s4 1983009808
    %v776 = vunpack.c.0.s8 %v775
    %v777 = vlaneseq
    %v778 = vshrl.u32 %v777, 7
    %v779 = vsub.s32 %v776, %v778
    %v780 = vrot.slane %v772, %v779
    %v782 = vunpack.c.l.s4 1983009808
    %v783 = vunpack.c.0.s8 %v782
    %v784 = vlaneseq
    %v785 = vshrl.u32 %v784, 7
    %v786 = vsub.s32 %v783, %v785
    %v787 = vrot.slane %v773, %v786
    %v788 = vcombine.low %v755, %v767
    %v789 = vcombine.high %v755, %v767
    %v791 = vunpack.c.l.s4 1983009808
    %v792 = vunpack.c.0.s8 %v791
    %v793 = vlaneseq
    %v794 = vshrl.u32 %v793, 7
    %v795 = vsub.s32 %v792, %v794
    %v796 = vrot.slane %v788, %v795
    %v798 = vunpack.c.l.s4 1983009808
    %v799 = vunpack.c.0.s8 %v798
    %v800 = vlaneseq
    %v801 = vshrl.u32 %v800, 7
    %v802 = vsub.s32 %v799, %v801
    %v803 = vrot.slane %v789, %v802
    %v804 = vcombine.low %v780, %v796
    %v805 = vcombine.high %v780, %v796
    %v807 = vunpack.c.l.s4 1934713408
    %v808 = vunpack.c.0.s8 %v807
    %v809 = vlaneseq
    %v810 = vshrl.u32 %v809, 7
    %v811 = vsub.s32 %v808, %v810
    %v812 = vrot.slane %v804, %v811
    %v814 = vunpack.c.l.s4 1934713408
    %v815 = vunpack.c.0.s8 %v814
    %v816 = vlaneseq
    %v817 = vshrl.u32 %v816, 7
    %v818 = vsub.s32 %v815, %v817
    %v819 = vrot.slane %v805, %v818
    %v820 = vcombine.low %v787, %v803
    %v821 = vcombine.high %v787, %v803
    %v823 = vunpack.c.l.s4 1934713408
    %v824 = vunpack.c.0.s8 %v823
    %v825 = vlaneseq
    %v826 = vshrl.u32 %v825, 7
    %v827 = vsub.s32 %v824, %v826
    %v828 = vrot.slane %v820, %v827
    %v830 = vunpack.c.l.s4 1934713408
    %v831 = vunpack.c.0.s8 %v830
    %v832 = vlaneseq
    %v833 = vshrl.u32 %v832, 7
    %v834 = vsub.s32 %v831, %v833
    %v835 = vrot.slane %v821, %v834
    %v836 = vcombine.high %v812, 0.0
    %v837 = vcombine.high %v819, 0.0
    %v838 = vcombine.high %v828, 0.0
    %v839 = vcombine.high %v835, 0.0
    %v840 = vcombine.low %v707, %v763
    %v841 = vcombine.high %v707, %v763
    %v843 = vunpack.c.l.s4 1983009808
    %v844 = vunpack.c.0.s8 %v843
    %v845 = vlaneseq
    %v846 = vshrl.u32 %v845, 7
    %v847 = vsub.s32 %v844, %v846
    %v848 = vrot.slane %v840, %v847
    %v850 = vunpack.c.l.s4 1983009808
    %v851 = vunpack.c.0.s8 %v850
    %v852 = vlaneseq
    %v853 = vshrl.u32 %v852, 7
    %v854 = vsub.s32 %v851, %v853
    %v855 = vrot.slane %v841, %v854
    %v856 = vcombine.low %v757, %v769
    %v857 = vcombine.high %v757, %v769
    %v859 = vunpack.c.l.s4 1983009808
    %v860 = vunpack.c.0.s8 %v859
    %v861 = vlaneseq
    %v862 = vshrl.u32 %v861, 7
    %v863 = vsub.s32 %v860, %v862
    %v864 = vrot.slane %v856, %v863
    %v866 = vunpack.c.l.s4 1983009808
    %v867 = vunpack.c.0.s8 %v866
    %v868 = vlaneseq
    %v869 = vshrl.u32 %v868, 7
    %v870 = vsub.s32 %v867, %v869
    %v871 = vrot.slane %v857, %v870
    %v872 = vcombine.low %v848, %v864
    %v873 = vcombine.high %v848, %v864
    %v875 = vunpack.c.l.s4 1934713408
    %v876 = vunpack.c.0.s8 %v875
    %v877 = vlaneseq
    %v878 = vshrl.u32 %v877, 7
    %v879 = vsub.s32 %v876, %v878
    %v880 = vrot.slane %v872, %v879
    %v882 = vunpack.c.l.s4 1934713408
    %v883 = vunpack.c.0.s8 %v882
    %v884 = vlaneseq
    %v885 = vshrl.u32 %v884, 7
    %v886 = vsub.s32 %v883, %v885
    %v887 = vrot.slane %v873, %v886
    %v888 = vcombine.low %v855, %v871
    %v889 = vcombine.high %v855, %v871
    %v891 = vunpack.c.l.s4 1934713408
    %v892 = vunpack.c.0.s8 %v891
    %v893 = vlaneseq
    %v894 = vshrl.u32 %v893, 7
    %v895 = vsub.s32 %v892, %v894
    %v896 = vrot.slane %v888, %v895
    %v898 = vunpack.c.l.s4 1934713408
    %v899 = vunpack.c.0.s8 %v898
    %v900 = vlaneseq
    %v901 = vshrl.u32 %v900, 7
    %v902 = vsub.s32 %v899, %v901
    %v903 = vrot.slane %v889, %v902
    %v904 = vcombine.high %v880, 0.0
    %v905 = vcombine.high %v887, 0.0
    %v906 = vcombine.high %v896, 0.0
    %v907 = vcombine.high %v903, 0.0
    %910 = vrot.lane.b32.xlu0 %v705, 96
    %v911 = vpop.permute.xlu0 %910
    %912 = vrot.lane.b32.xlu0 %v709, 96
    %v913 = vpop.permute.xlu0 %912
    %916 = vrot.lane.b32.xlu0 %v705, 64
    %v917 = vpop.permute.xlu0 %916
    %918 = vrot.lane.b32.xlu0 %v709, 64
    %v919 = vpop.permute.xlu0 %918
    %922 = vrot.lane.b32.xlu0 %v705, 32
    %v923 = vpop.permute.xlu0 %922
    %924 = vrot.lane.b32.xlu0 %v709, 32
    %v925 = vpop.permute.xlu0 %924
    %v928 = vcombine.low %v705, %v917
    %v929 = vcombine.high %v705, %v917
    %v931 = vunpack.c.l.s4 1983009808
    %v932 = vunpack.c.0.s8 %v931
    %v933 = vlaneseq
    %v934 = vshrl.u32 %v933, 7
    %v935 = vsub.s32 %v932, %v934
    %v936 = vrot.slane %v928, %v935
    %v938 = vunpack.c.l.s4 1983009808
    %v939 = vunpack.c.0.s8 %v938
    %v940 = vlaneseq
    %v941 = vshrl.u32 %v940, 7
    %v942 = vsub.s32 %v939, %v941
    %v943 = vrot.slane %v929, %v942
    %v944 = vcombine.low %v911, %v923
    %v945 = vcombine.high %v911, %v923
    %v947 = vunpack.c.l.s4 1983009808
    %v948 = vunpack.c.0.s8 %v947
    %v949 = vlaneseq
    %v950 = vshrl.u32 %v949, 7
    %v951 = vsub.s32 %v948, %v950
    %v952 = vrot.slane %v944, %v951
    %v954 = vunpack.c.l.s4 1983009808
    %v955 = vunpack.c.0.s8 %v954
    %v956 = vlaneseq
    %v957 = vshrl.u32 %v956, 7
    %v958 = vsub.s32 %v955, %v957
    %v959 = vrot.slane %v945, %v958
    %v960 = vcombine.low %v936, %v952
    %v961 = vcombine.high %v936, %v952
    %v963 = vunpack.c.l.s4 1934713408
    %v964 = vunpack.c.0.s8 %v963
    %v965 = vlaneseq
    %v966 = vshrl.u32 %v965, 7
    %v967 = vsub.s32 %v964, %v966
    %v968 = vrot.slane %v960, %v967
    %v970 = vunpack.c.l.s4 1934713408
    %v971 = vunpack.c.0.s8 %v970
    %v972 = vlaneseq
    %v973 = vshrl.u32 %v972, 7
    %v974 = vsub.s32 %v971, %v973
    %v975 = vrot.slane %v961, %v974
    %v976 = vcombine.low %v943, %v959
    %v977 = vcombine.high %v943, %v959
    %v979 = vunpack.c.l.s4 1934713408
    %v980 = vunpack.c.0.s8 %v979
    %v981 = vlaneseq
    %v982 = vshrl.u32 %v981, 7
    %v983 = vsub.s32 %v980, %v982
    %v984 = vrot.slane %v976, %v983
    %v986 = vunpack.c.l.s4 1934713408
    %v987 = vunpack.c.0.s8 %v986
    %v988 = vlaneseq
    %v989 = vshrl.u32 %v988, 7
    %v990 = vsub.s32 %v987, %v989
    %v991 = vrot.slane %v977, %v990
    %v992 = vcombine.high %v968, 0.0
    %v993 = vcombine.high %v975, 0.0
    %v994 = vcombine.high %v984, 0.0
    %v995 = vcombine.high %v991, 0.0
    %v996 = vcombine.low %v709, %v919
    %v997 = vcombine.high %v709, %v919
    %v999 = vunpack.c.l.s4 1983009808
    %v1000 = vunpack.c.0.s8 %v999
    %v1001 = vlaneseq
    %v1002 = vshrl.u32 %v1001, 7
    %v1003 = vsub.s32 %v1000, %v1002
    %v1004 = vrot.slane %v996, %v1003
    %v1006 = vunpack.c.l.s4 1983009808
    %v1007 = vunpack.c.0.s8 %v1006
    %v1008 = vlaneseq
    %v1009 = vshrl.u32 %v1008, 7
    %v1010 = vsub.s32 %v1007, %v1009
    %v1011 = vrot.slane %v997, %v1010
    %v1012 = vcombine.low %v913, %v925
    %v1013 = vcombine.high %v913, %v925
    %v1015 = vunpack.c.l.s4 1983009808
    %v1016 = vunpack.c.0.s8 %v1015
    %v1017 = vlaneseq
    %v1018 = vshrl.u32 %v1017, 7
    %v1019 = vsub.s32 %v1016, %v1018
    %v1020 = vrot.slane %v1012, %v1019
    %v1022 = vunpack.c.l.s4 1983009808
    %v1023 = vunpack.c.0.s8 %v1022
    %v1024 = vlaneseq
    %v1025 = vshrl.u32 %v1024, 7
    %v1026 = vsub.s32 %v1023, %v1025
    %v1027 = vrot.slane %v1013, %v1026
    %v1028 = vcombine.low %v1004, %v1020
    %v1029 = vcombine.high %v1004, %v1020
    %v1031 = vunpack.c.l.s4 1934713408
    %v1032 = vunpack.c.0.s8 %v1031
    %v1033 = vlaneseq
    %v1034 = vshrl.u32 %v1033, 7
    %v1035 = vsub.s32 %v1032, %v1034
    %v1036 = vrot.slane %v1028, %v1035
    %v1038 = vunpack.c.l.s4 1934713408
    %v1039 = vunpack.c.0.s8 %v1038
    %v1040 = vlaneseq
    %v1041 = vshrl.u32 %v1040, 7
    %v1042 = vsub.s32 %v1039, %v1041
    %v1043 = vrot.slane %v1029, %v1042
    %v1044 = vcombine.low %v1011, %v1027
    %v1045 = vcombine.high %v1011, %v1027
    %v1047 = vunpack.c.l.s4 1934713408
    %v1048 = vunpack.c.0.s8 %v1047
    %v1049 = vlaneseq
    %v1050 = vshrl.u32 %v1049, 7
    %v1051 = vsub.s32 %v1048, %v1050
    %v1052 = vrot.slane %v1044, %v1051
    %v1054 = vunpack.c.l.s4 1934713408
    %v1055 = vunpack.c.0.s8 %v1054
    %v1056 = vlaneseq
    %v1057 = vshrl.u32 %v1056, 7
    %v1058 = vsub.s32 %v1055, %v1057
    %v1059 = vrot.slane %v1045, %v1058
    %v1060 = vcombine.high %v1036, 0.0
    %v1061 = vcombine.high %v1043, 0.0
    %v1062 = vcombine.high %v1052, 0.0
    %v1063 = vcombine.high %v1059, 0.0
    %1066 = vrot.lane.b32.xlu0 %v746, 96
    %v1067 = vpop.permute.xlu0 %1066
    %1068 = vrot.lane.b32.xlu0 %v749, 96
    %v1069 = vpop.permute.xlu0 %1068
    %1072 = vrot.lane.b32.xlu0 %v746, 64
    %v1073 = vpop.permute.xlu0 %1072
    %1074 = vrot.lane.b32.xlu0 %v749, 64
    %v1075 = vpop.permute.xlu0 %1074
    %1078 = vrot.lane.b32.xlu0 %v746, 32
    %v1079 = vpop.permute.xlu0 %1078
    %1080 = vrot.lane.b32.xlu0 %v749, 32
    %v1081 = vpop.permute.xlu0 %1080
    %v1084 = vcombine.low %v746, %v1073
    %v1085 = vcombine.high %v746, %v1073
    %v1087 = vunpack.c.l.s4 1983009808
    %v1088 = vunpack.c.0.s8 %v1087
    %v1089 = vlaneseq
    %v1090 = vshrl.u32 %v1089, 7
    %v1091 = vsub.s32 %v1088, %v1090
    %v1092 = vrot.slane %v1084, %v1091
    %v1094 = vunpack.c.l.s4 1983009808
    %v1095 = vunpack.c.0.s8 %v1094
    %v1096 = vlaneseq
    %v1097 = vshrl.u32 %v1096, 7
    %v1098 = vsub.s32 %v1095, %v1097
    %v1099 = vrot.slane %v1085, %v1098
    %v1100 = vcombine.low %v1067, %v1079
    %v1101 = vcombine.high %v1067, %v1079
    %v1103 = vunpack.c.l.s4 1983009808
    %v1104 = vunpack.c.0.s8 %v1103
    %v1105 = vlaneseq
    %v1106 = vshrl.u32 %v1105, 7
    %v1107 = vsub.s32 %v1104, %v1106
    %v1108 = vrot.slane %v1100, %v1107
    %v1110 = vunpack.c.l.s4 1983009808
    %v1111 = vunpack.c.0.s8 %v1110
    %v1112 = vlaneseq
    %v1113 = vshrl.u32 %v1112, 7
    %v1114 = vsub.s32 %v1111, %v1113
    %v1115 = vrot.slane %v1101, %v1114
    %v1116 = vcombine.low %v1092, %v1108
    %v1117 = vcombine.high %v1092, %v1108
    %v1119 = vunpack.c.l.s4 1934713408
    %v1120 = vunpack.c.0.s8 %v1119
    %v1121 = vlaneseq
    %v1122 = vshrl.u32 %v1121, 7
    %v1123 = vsub.s32 %v1120, %v1122
    %v1124 = vrot.slane %v1116, %v1123
    %v1126 = vunpack.c.l.s4 1934713408
    %v1127 = vunpack.c.0.s8 %v1126
    %v1128 = vlaneseq
    %v1129 = vshrl.u32 %v1128, 7
    %v1130 = vsub.s32 %v1127, %v1129
    %v1131 = vrot.slane %v1117, %v1130
    %v1132 = vcombine.low %v1099, %v1115
    %v1133 = vcombine.high %v1099, %v1115
    %v1135 = vunpack.c.l.s4 1934713408
    %v1136 = vunpack.c.0.s8 %v1135
    %v1137 = vlaneseq
    %v1138 = vshrl.u32 %v1137, 7
    %v1139 = vsub.s32 %v1136, %v1138
    %v1140 = vrot.slane %v1132, %v1139
    %v1142 = vunpack.c.l.s4 1934713408
    %v1143 = vunpack.c.0.s8 %v1142
    %v1144 = vlaneseq
    %v1145 = vshrl.u32 %v1144, 7
    %v1146 = vsub.s32 %v1143, %v1145
    %v1147 = vrot.slane %v1133, %v1146
    %v1148 = vcombine.high %v1124, 0.0
    %v1149 = vcombine.high %v1131, 0.0
    %v1150 = vcombine.high %v1140, 0.0
    %v1151 = vcombine.high %v1147, 0.0
    %v1152 = vcombine.low %v749, %v1075
    %v1153 = vcombine.high %v749, %v1075
    %v1155 = vunpack.c.l.s4 1983009808
    %v1156 = vunpack.c.0.s8 %v1155
    %v1157 = vlaneseq
    %v1158 = vshrl.u32 %v1157, 7
    %v1159 = vsub.s32 %v1156, %v1158
    %v1160 = vrot.slane %v1152, %v1159
    %v1162 = vunpack.c.l.s4 1983009808
    %v1163 = vunpack.c.0.s8 %v1162
    %v1164 = vlaneseq
    %v1165 = vshrl.u32 %v1164, 7
    %v1166 = vsub.s32 %v1163, %v1165
    %v1167 = vrot.slane %v1153, %v1166
    %v1168 = vcombine.low %v1069, %v1081
    %v1169 = vcombine.high %v1069, %v1081
    %v1171 = vunpack.c.l.s4 1983009808
    %v1172 = vunpack.c.0.s8 %v1171
    %v1173 = vlaneseq
    %v1174 = vshrl.u32 %v1173, 7
    %v1175 = vsub.s32 %v1172, %v1174
    %v1176 = vrot.slane %v1168, %v1175
    %v1178 = vunpack.c.l.s4 1983009808
    %v1179 = vunpack.c.0.s8 %v1178
    %v1180 = vlaneseq
    %v1181 = vshrl.u32 %v1180, 7
    %v1182 = vsub.s32 %v1179, %v1181
    %v1183 = vrot.slane %v1169, %v1182
    %v1184 = vcombine.low %v1160, %v1176
    %v1185 = vcombine.high %v1160, %v1176
    %v1187 = vunpack.c.l.s4 1934713408
    %v1188 = vunpack.c.0.s8 %v1187
    %v1189 = vlaneseq
    %v1190 = vshrl.u32 %v1189, 7
    %v1191 = vsub.s32 %v1188, %v1190
    %v1192 = vrot.slane %v1184, %v1191
    %v1194 = vunpack.c.l.s4 1934713408
    %v1195 = vunpack.c.0.s8 %v1194
    %v1196 = vlaneseq
    %v1197 = vshrl.u32 %v1196, 7
    %v1198 = vsub.s32 %v1195, %v1197
    %v1199 = vrot.slane %v1185, %v1198
    %v1200 = vcombine.low %v1167, %v1183
    %v1201 = vcombine.high %v1167, %v1183
    %v1203 = vunpack.c.l.s4 1934713408
    %v1204 = vunpack.c.0.s8 %v1203
    %v1205 = vlaneseq
    %v1206 = vshrl.u32 %v1205, 7
    %v1207 = vsub.s32 %v1204, %v1206
    %v1208 = vrot.slane %v1200, %v1207
    %v1210 = vunpack.c.l.s4 1934713408
    %v1211 = vunpack.c.0.s8 %v1210
    %v1212 = vlaneseq
    %v1213 = vshrl.u32 %v1212, 7
    %v1214 = vsub.s32 %v1211, %v1213
    %v1215 = vrot.slane %v1201, %v1214
    %v1216 = vcombine.high %v1192, 0.0
    %v1217 = vcombine.high %v1199, 0.0
    %v1218 = vcombine.high %v1208, 0.0
    %v1219 = vcombine.high %v1215, 0.0
    %v1220 = vcombine.low %v812, %v819
    %v1222 = vunpack.c.l.s4 1983009808
    %v1223 = vunpack.c.0.s8 %v1222
    %v1224 = vlaneseq
    %v1225 = vshrl.u32 %v1224, 7
    %v1226 = vsub.s32 %v1223, %v1225
    %v1227 = vrot.slane %v1220, %v1226
    %v1228 = vcombine.low %v836, %v837
    %v1230 = vunpack.c.l.s4 1983009808
    %v1231 = vunpack.c.0.s8 %v1230
    %v1232 = vlaneseq
    %v1233 = vshrl.u32 %v1232, 7
    %v1234 = vsub.s32 %v1231, %v1233
    %v1235 = vrot.slane %v1228, %v1234
    %v1236 = vcombine.low %v828, %v835
    %v1238 = vunpack.c.l.s4 1983009808
    %v1239 = vunpack.c.0.s8 %v1238
    %v1240 = vlaneseq
    %v1241 = vshrl.u32 %v1240, 7
    %v1242 = vsub.s32 %v1239, %v1241
    %v1243 = vrot.slane %v1236, %v1242
    %v1244 = vcombine.low %v838, %v839
    %v1246 = vunpack.c.l.s4 1983009808
    %v1247 = vunpack.c.0.s8 %v1246
    %v1248 = vlaneseq
    %v1249 = vshrl.u32 %v1248, 7
    %v1250 = vsub.s32 %v1247, %v1249
    %v1251 = vrot.slane %v1244, %v1250
    %v1252 = vcombine.low %v1227, %v1235
    %v1253 = vcombine.high %v1227, %v1235
    %v1255 = vunpack.c.l.s4 1934713408
    %v1256 = vunpack.c.0.s8 %v1255
    %v1257 = vlaneseq
    %v1258 = vshrl.u32 %v1257, 7
    %v1259 = vsub.s32 %v1256, %v1258
    %v1260 = vrot.slane %v1252, %v1259
    %v1262 = vunpack.c.l.s4 1934713408
    %v1263 = vunpack.c.0.s8 %v1262
    %v1264 = vlaneseq
    %v1265 = vshrl.u32 %v1264, 7
    %v1266 = vsub.s32 %v1263, %v1265
    %v1267 = vrot.slane %v1253, %v1266
    %v1268 = vcombine.low %v1243, %v1251
    %v1269 = vcombine.high %v1243, %v1251
    %v1271 = vunpack.c.l.s4 1934713408
    %v1272 = vunpack.c.0.s8 %v1271
    %v1273 = vlaneseq
    %v1274 = vshrl.u32 %v1273, 7
    %v1275 = vsub.s32 %v1272, %v1274
    %v1276 = vrot.slane %v1268, %v1275
    %v1278 = vunpack.c.l.s4 1934713408
    %v1279 = vunpack.c.0.s8 %v1278
    %v1280 = vlaneseq
    %v1281 = vshrl.u32 %v1280, 7
    %v1282 = vsub.s32 %v1279, %v1281
    %v1283 = vrot.slane %v1269, %v1282
    %v1284 = vcombine.low %v1260, %v1276
    %v1285 = vcombine.high %v1260, %v1276
    %v1286 = vcombine.low %v1267, %v1283
    %v1287 = vcombine.high %v1267, %v1283
    %v1288 = vcombine.low %v880, %v887
    %v1290 = vunpack.c.l.s4 1983009808
    %v1291 = vunpack.c.0.s8 %v1290
    %v1292 = vlaneseq
    %v1293 = vshrl.u32 %v1292, 7
    %v1294 = vsub.s32 %v1291, %v1293
    %v1295 = vrot.slane %v1288, %v1294
    %v1296 = vcombine.low %v904, %v905
    %v1298 = vunpack.c.l.s4 1983009808
    %v1299 = vunpack.c.0.s8 %v1298
    %v1300 = vlaneseq
    %v1301 = vshrl.u32 %v1300, 7
    %v1302 = vsub.s32 %v1299, %v1301
    %v1303 = vrot.slane %v1296, %v1302
    %v1304 = vcombine.low %v896, %v903
    %v1306 = vunpack.c.l.s4 1983009808
    %v1307 = vunpack.c.0.s8 %v1306
    %v1308 = vlaneseq
    %v1309 = vshrl.u32 %v1308, 7
    %v1310 = vsub.s32 %v1307, %v1309
    %v1311 = vrot.slane %v1304, %v1310
    %v1312 = vcombine.low %v906, %v907
    %v1314 = vunpack.c.l.s4 1983009808
    %v1315 = vunpack.c.0.s8 %v1314
    %v1316 = vlaneseq
    %v1317 = vshrl.u32 %v1316, 7
    %v1318 = vsub.s32 %v1315, %v1317
    %v1319 = vrot.slane %v1312, %v1318
    %v1320 = vcombine.low %v1295, %v1303
    %v1321 = vcombine.high %v1295, %v1303
    %v1323 = vunpack.c.l.s4 1934713408
    %v1324 = vunpack.c.0.s8 %v1323
    %v1325 = vlaneseq
    %v1326 = vshrl.u32 %v1325, 7
    %v1327 = vsub.s32 %v1324, %v1326
    %v1328 = vrot.slane %v1320, %v1327
    %v1330 = vunpack.c.l.s4 1934713408
    %v1331 = vunpack.c.0.s8 %v1330
    %v1332 = vlaneseq
    %v1333 = vshrl.u32 %v1332, 7
    %v1334 = vsub.s32 %v1331, %v1333
    %v1335 = vrot.slane %v1321, %v1334
    %v1336 = vcombine.low %v1311, %v1319
    %v1337 = vcombine.high %v1311, %v1319
    %v1339 = vunpack.c.l.s4 1934713408
    %v1340 = vunpack.c.0.s8 %v1339
    %v1341 = vlaneseq
    %v1342 = vshrl.u32 %v1341, 7
    %v1343 = vsub.s32 %v1340, %v1342
    %v1344 = vrot.slane %v1336, %v1343
    %v1346 = vunpack.c.l.s4 1934713408
    %v1347 = vunpack.c.0.s8 %v1346
    %v1348 = vlaneseq
    %v1349 = vshrl.u32 %v1348, 7
    %v1350 = vsub.s32 %v1347, %v1349
    %v1351 = vrot.slane %v1337, %v1350
    %v1352 = vcombine.low %v1328, %v1344
    %v1353 = vcombine.high %v1328, %v1344
    %v1354 = vcombine.low %v1335, %v1351
    %v1355 = vcombine.high %v1335, %v1351
    %v1356 = vpack.c.bf16 %v1352, %v1284
    %v1357 = vpack.c.bf16 %v1353, %v1285
    %v1358 = vpack.c.bf16 %v1354, %v1286
    %v1359 = vpack.c.bf16 %v1355, %v1287
    %v1360 = vcombine.low %v968, %v975
    %v1362 = vunpack.c.l.s4 1983009808
    %v1363 = vunpack.c.0.s8 %v1362
    %v1364 = vlaneseq
    %v1365 = vshrl.u32 %v1364, 7
    %v1366 = vsub.s32 %v1363, %v1365
    %v1367 = vrot.slane %v1360, %v1366
    %v1368 = vcombine.low %v992, %v993
    %v1370 = vunpack.c.l.s4 1983009808
    %v1371 = vunpack.c.0.s8 %v1370
    %v1372 = vlaneseq
    %v1373 = vshrl.u32 %v1372, 7
    %v1374 = vsub.s32 %v1371, %v1373
    %v1375 = vrot.slane %v1368, %v1374
    %v1376 = vcombine.low %v984, %v991
    %v1378 = vunpack.c.l.s4 1983009808
    %v1379 = vunpack.c.0.s8 %v1378
    %v1380 = vlaneseq
    %v1381 = vshrl.u32 %v1380, 7
    %v1382 = vsub.s32 %v1379, %v1381
    %v1383 = vrot.slane %v1376, %v1382
    %v1384 = vcombine.low %v994, %v995
    %v1386 = vunpack.c.l.s4 1983009808
    %v1387 = vunpack.c.0.s8 %v1386
    %v1388 = vlaneseq
    %v1389 = vshrl.u32 %v1388, 7
    %v1390 = vsub.s32 %v1387, %v1389
    %v1391 = vrot.slane %v1384, %v1390
    %v1392 = vcombine.low %v1367, %v1375
    %v1393 = vcombine.high %v1367, %v1375
    %v1395 = vunpack.c.l.s4 1934713408
    %v1396 = vunpack.c.0.s8 %v1395
    %v1397 = vlaneseq
    %v1398 = vshrl.u32 %v1397, 7
    %v1399 = vsub.s32 %v1396, %v1398
    %v1400 = vrot.slane %v1392, %v1399
    %v1402 = vunpack.c.l.s4 1934713408
    %v1403 = vunpack.c.0.s8 %v1402
    %v1404 = vlaneseq
    %v1405 = vshrl.u32 %v1404, 7
    %v1406 = vsub.s32 %v1403, %v1405
    %v1407 = vrot.slane %v1393, %v1406
    %v1408 = vcombine.low %v1383, %v1391
    %v1409 = vcombine.high %v1383, %v1391
    %v1411 = vunpack.c.l.s4 1934713408
    %v1412 = vunpack.c.0.s8 %v1411
    %v1413 = vlaneseq
    %v1414 = vshrl.u32 %v1413, 7
    %v1415 = vsub.s32 %v1412, %v1414
    %v1416 = vrot.slane %v1408, %v1415
    %v1418 = vunpack.c.l.s4 1934713408
    %v1419 = vunpack.c.0.s8 %v1418
    %v1420 = vlaneseq
    %v1421 = vshrl.u32 %v1420, 7
    %v1422 = vsub.s32 %v1419, %v1421
    %v1423 = vrot.slane %v1409, %v1422
    %v1424 = vcombine.low %v1400, %v1416
    %v1425 = vcombine.high %v1400, %v1416
    %v1426 = vcombine.low %v1407, %v1423
    %v1427 = vcombine.high %v1407, %v1423
    %v1428 = vcombine.low %v1036, %v1043
    %v1430 = vunpack.c.l.s4 1983009808
    %v1431 = vunpack.c.0.s8 %v1430
    %v1432 = vlaneseq
    %v1433 = vshrl.u32 %v1432, 7
    %v1434 = vsub.s32 %v1431, %v1433
    %v1435 = vrot.slane %v1428, %v1434
    %v1436 = vcombine.low %v1060, %v1061
    %v1438 = vunpack.c.l.s4 1983009808
    %v1439 = vunpack.c.0.s8 %v1438
    %v1440 = vlaneseq
    %v1441 = vshrl.u32 %v1440, 7
    %v1442 = vsub.s32 %v1439, %v1441
    %v1443 = vrot.slane %v1436, %v1442
    %v1444 = vcombine.low %v1052, %v1059
    %v1446 = vunpack.c.l.s4 1983009808
    %v1447 = vunpack.c.0.s8 %v1446
    %v1448 = vlaneseq
    %v1449 = vshrl.u32 %v1448, 7
    %v1450 = vsub.s32 %v1447, %v1449
    %v1451 = vrot.slane %v1444, %v1450
    %v1452 = vcombine.low %v1062, %v1063
    %v1454 = vunpack.c.l.s4 1983009808
    %v1455 = vunpack.c.0.s8 %v1454
    %v1456 = vlaneseq
    %v1457 = vshrl.u32 %v1456, 7
    %v1458 = vsub.s32 %v1455, %v1457
    %v1459 = vrot.slane %v1452, %v1458
    %v1460 = vcombine.low %v1435, %v1443
    %v1461 = vcombine.high %v1435, %v1443
    %v1463 = vunpack.c.l.s4 1934713408
    %v1464 = vunpack.c.0.s8 %v1463
    %v1465 = vlaneseq
    %v1466 = vshrl.u32 %v1465, 7
    %v1467 = vsub.s32 %v1464, %v1466
    %v1468 = vrot.slane %v1460, %v1467
    %v1470 = vunpack.c.l.s4 1934713408
    %v1471 = vunpack.c.0.s8 %v1470
    %v1472 = vlaneseq
    %v1473 = vshrl.u32 %v1472, 7
    %v1474 = vsub.s32 %v1471, %v1473
    %v1475 = vrot.slane %v1461, %v1474
    %v1476 = vcombine.low %v1451, %v1459
    %v1477 = vcombine.high %v1451, %v1459
    %v1479 = vunpack.c.l.s4 1934713408
    %v1480 = vunpack.c.0.s8 %v1479
    %v1481 = vlaneseq
    %v1482 = vshrl.u32 %v1481, 7
    %v1483 = vsub.s32 %v1480, %v1482
    %v1484 = vrot.slane %v1476, %v1483
    %v1486 = vunpack.c.l.s4 1934713408
    %v1487 = vunpack.c.0.s8 %v1486
    %v1488 = vlaneseq
    %v1489 = vshrl.u32 %v1488, 7
    %v1490 = vsub.s32 %v1487, %v1489
    %v1491 = vrot.slane %v1477, %v1490
    %v1492 = vcombine.low %v1468, %v1484
    %v1493 = vcombine.high %v1468, %v1484
    %v1494 = vcombine.low %v1475, %v1491
    %v1495 = vcombine.high %v1475, %v1491
    %v1496 = vpack.c.bf16 %v1492, %v1424
    %v1497 = vpack.c.bf16 %v1493, %v1425
    %v1498 = vpack.c.bf16 %v1494, %v1426
    %v1499 = vpack.c.bf16 %v1495, %v1427
    %v1500 = vcombine.low %v1124, %v1131
    %v1502 = vunpack.c.l.s4 1983009808
    %v1503 = vunpack.c.0.s8 %v1502
    %v1504 = vlaneseq
    %v1505 = vshrl.u32 %v1504, 7
    %v1506 = vsub.s32 %v1503, %v1505
    %v1507 = vrot.slane %v1500, %v1506
    %v1508 = vcombine.low %v1148, %v1149
    %v1510 = vunpack.c.l.s4 1983009808
    %v1511 = vunpack.c.0.s8 %v1510
    %v1512 = vlaneseq
    %v1513 = vshrl.u32 %v1512, 7
    %v1514 = vsub.s32 %v1511, %v1513
    %v1515 = vrot.slane %v1508, %v1514
    %v1516 = vcombine.low %v1140, %v1147
    %v1518 = vunpack.c.l.s4 1983009808
    %v1519 = vunpack.c.0.s8 %v1518
    %v1520 = vlaneseq
    %v1521 = vshrl.u32 %v1520, 7
    %v1522 = vsub.s32 %v1519, %v1521
    %v1523 = vrot.slane %v1516, %v1522
    %v1524 = vcombine.low %v1150, %v1151
    %v1526 = vunpack.c.l.s4 1983009808
    %v1527 = vunpack.c.0.s8 %v1526
    %v1528 = vlaneseq
    %v1529 = vshrl.u32 %v1528, 7
    %v1530 = vsub.s32 %v1527, %v1529
    %v1531 = vrot.slane %v1524, %v1530
    %v1532 = vcombine.low %v1507, %v1515
    %v1533 = vcombine.high %v1507, %v1515
    %v1535 = vunpack.c.l.s4 1934713408
    %v1536 = vunpack.c.0.s8 %v1535
    %v1537 = vlaneseq
    %v1538 = vshrl.u32 %v1537, 7
    %v1539 = vsub.s32 %v1536, %v1538
    %v1540 = vrot.slane %v1532, %v1539
    %v1542 = vunpack.c.l.s4 1934713408
    %v1543 = vunpack.c.0.s8 %v1542
    %v1544 = vlaneseq
    %v1545 = vshrl.u32 %v1544, 7
    %v1546 = vsub.s32 %v1543, %v1545
    %v1547 = vrot.slane %v1533, %v1546
    %v1548 = vcombine.low %v1523, %v1531
    %v1549 = vcombine.high %v1523, %v1531
    %v1551 = vunpack.c.l.s4 1934713408
    %v1552 = vunpack.c.0.s8 %v1551
    %v1553 = vlaneseq
    %v1554 = vshrl.u32 %v1553, 7
    %v1555 = vsub.s32 %v1552, %v1554
    %v1556 = vrot.slane %v1548, %v1555
    %v1558 = vunpack.c.l.s4 1934713408
    %v1559 = vunpack.c.0.s8 %v1558
    %v1560 = vlaneseq
    %v1561 = vshrl.u32 %v1560, 7
    %v1562 = vsub.s32 %v1559, %v1561
    %v1563 = vrot.slane %v1549, %v1562
    %v1564 = vcombine.low %v1540, %v1556
    %v1565 = vcombine.high %v1540, %v1556
    %v1566 = vcombine.low %v1547, %v1563
    %v1567 = vcombine.high %v1547, %v1563
    %v1568 = vcombine.low %v1192, %v1199
    %v1570 = vunpack.c.l.s4 1983009808
    %v1571 = vunpack.c.0.s8 %v1570
    %v1572 = vlaneseq
    %v1573 = vshrl.u32 %v1572, 7
    %v1574 = vsub.s32 %v1571, %v1573
    %v1575 = vrot.slane %v1568, %v1574
    %v1576 = vcombine.low %v1216, %v1217
    %v1578 = vunpack.c.l.s4 1983009808
    %v1579 = vunpack.c.0.s8 %v1578
    %v1580 = vlaneseq
    %v1581 = vshrl.u32 %v1580, 7
    %v1582 = vsub.s32 %v1579, %v1581
    %v1583 = vrot.slane %v1576, %v1582
    %v1584 = vcombine.low %v1208, %v1215
    %v1586 = vunpack.c.l.s4 1983009808
    %v1587 = vunpack.c.0.s8 %v1586
    %v1588 = vlaneseq
    %v1589 = vshrl.u32 %v1588, 7
    %v1590 = vsub.s32 %v1587, %v1589
    %v1591 = vrot.slane %v1584, %v1590
    %v1592 = vcombine.low %v1218, %v1219
    %v1594 = vunpack.c.l.s4 1983009808
    %v1595 = vunpack.c.0.s8 %v1594
    %v1596 = vlaneseq
    %v1597 = vshrl.u32 %v1596, 7
    %v1598 = vsub.s32 %v1595, %v1597
    %v1599 = vrot.slane %v1592, %v1598
    %v1600 = vcombine.low %v1575, %v1583
    %v1601 = vcombine.high %v1575, %v1583
    %v1603 = vunpack.c.l.s4 1934713408
    %v1604 = vunpack.c.0.s8 %v1603
    %v1605 = vlaneseq
    %v1606 = vshrl.u32 %v1605, 7
    %v1607 = vsub.s32 %v1604, %v1606
    %v1608 = vrot.slane %v1600, %v1607
    %v1610 = vunpack.c.l.s4 1934713408
    %v1611 = vunpack.c.0.s8 %v1610
    %v1612 = vlaneseq
    %v1613 = vshrl.u32 %v1612, 7
    %v1614 = vsub.s32 %v1611, %v1613
    %v1615 = vrot.slane %v1601, %v1614
    %v1616 = vcombine.low %v1591, %v1599
    %v1617 = vcombine.high %v1591, %v1599
    %v1619 = vunpack.c.l.s4 1934713408
    %v1620 = vunpack.c.0.s8 %v1619
    %v1621 = vlaneseq
    %v1622 = vshrl.u32 %v1621, 7
    %v1623 = vsub.s32 %v1620, %v1622
    %v1624 = vrot.slane %v1616, %v1623
    %v1626 = vunpack.c.l.s4 1934713408
    %v1627 = vunpack.c.0.s8 %v1626
    %v1628 = vlaneseq
    %v1629 = vshrl.u32 %v1628, 7
    %v1630 = vsub.s32 %v1627, %v1629
    %v1631 = vrot.slane %v1617, %v1630
    %v1632 = vcombine.low %v1608, %v1624
    %v1633 = vcombine.high %v1608, %v1624
    %v1634 = vcombine.low %v1615, %v1631
    %v1635 = vcombine.high %v1615, %v1631
    %v1636 = vpack.c.bf16 %v1632, %v1564
    %v1637 = vpack.c.bf16 %v1633, %v1565
    %v1638 = vpack.c.bf16 %v1634, %v1566
    %v1639 = vpack.c.bf16 %v1635, %v1567
    %v1641 = vsel %vm246, %v1356, 0
    %v1644 = vsel %vm246, %v1496, 0
    %1646 = vmatprep.subr.bf16.mxu0 0
    %1647 = vmatpush1.bf16.xpose.msra.mxu0 %v1644
    %1648 = vmatprep.subr.bf16.mxu0 0
    %1649 = vmatpush1.bf16.xpose.msra.mxu0 0
    %1650 = vmatprep.subr.bf16.mxu0 0
    %1651 = vmatpush1.bf16.xpose.msra.mxu0 0
    %1652 = vmatprep.subr.bf16.mxu0 0
    %1653 = vmatpush1.bf16.xpose.msra.mxu0 0
    %1654 = vmatprep.subr.bf16.mxu0 0
    %1655 = vmatpush1.bf16.xpose.msra.mxu0 0
    %1656 = vmatprep.subr.bf16.mxu0 0
    %1657 = vmatpush1.bf16.xpose.msra.mxu0 0
    %1658 = vmatprep.subr.bf16.mxu0 0
    %1659 = vmatpush1.bf16.xpose.msra.mxu0 0
    %1660 = vmatprep.subr.bf16.mxu0 0
    %1661 = vmatpush1.bf16.xpose.msra.mxu0 0
    %1662 = vmatprep.subr.bf16.mxu0 0
    %1663 = vmatpush1.bf16.xpose.msra.mxu0 0
    %1664 = vmatprep.subr.bf16.mxu0 0
    %1665 = vmatpush1.bf16.xpose.msra.mxu0 0
    %1666 = vmatprep.subr.bf16.mxu0 0
    %1667 = vmatpush1.bf16.xpose.msra.mxu0 0
    %1668 = vmatprep.subr.bf16.mxu0 0
    %1669 = vmatpush1.bf16.xpose.msra.mxu0 0
    %1670 = vmatprep.subr.bf16.mxu0 0
    %1671 = vmatpush1.bf16.xpose.msra.mxu0 0
    %1672 = vmatprep.subr.bf16.mxu0 0
    %1673 = vmatpush1.bf16.xpose.msra.mxu0 0
    %1674 = vmatprep.subr.bf16.mxu0 0
    %1675 = vmatpush1.bf16.xpose.msra.mxu0 0
    %1676 = vmatprep.subr.bf16.mxu0 0
    %1677 = vmatpush1.bf16.xpose.msra.mxu0 0
    %1678 = vmatprep.mubr.bf16.mxu0 0
    %1679 = vmatmul.mubr.bf16.gmra.mrb[0].mxu0 %v1641
    %v1680 = vpop.f32.mrb[0].mxu0
    %v1681 = vadd.f32 0.0, %v1680
    %v1682 = vpop.f32.mrb[0].mxu0
    %v1683 = vpop.f32.mrb[0].mxu0
    %v1684 = vadd.f32 0.0, %v1683
    %v1685 = vpop.f32.mrb[0].mxu0
    %1686 = vdwg.mxu0
    %v1688 = vsel %vm246, %v1357, 0
    %v1691 = vsel %vm246, %v1497, 0
    %1693 = vmatprep.subr.bf16.mxu0 0
    %1694 = vmatpush1.bf16.xpose.msra.mxu0 %v1691
    %1695 = vmatprep.subr.bf16.mxu0 0
    %1696 = vmatpush1.bf16.xpose.msra.mxu0 0
    %1697 = vmatprep.subr.bf16.mxu0 0
    %1698 = vmatpush1.bf16.xpose.msra.mxu0 0
    %1699 = vmatprep.subr.bf16.mxu0 0
    %1700 = vmatpush1.bf16.xpose.msra.mxu0 0
    %1701 = vmatprep.subr.bf16.mxu0 0
    %1702 = vmatpush1.bf16.xpose.msra.mxu0 0
    %1703 = vmatprep.subr.bf16.mxu0 0
    %1704 = vmatpush1.bf16.xpose.msra.mxu0 0
    %1705 = vmatprep.subr.bf16.mxu0 0
    %1706 = vmatpush1.bf16.xpose.msra.mxu0 0
    %1707 = vmatprep.subr.bf16.mxu0 0
    %1708 = vmatpush1.bf16.xpose.msra.mxu0 0
    %1709 = vmatprep.subr.bf16.mxu0 0
    %1710 = vmatpush1.bf16.xpose.msra.mxu0 0
    %1711 = vmatprep.subr.bf16.mxu0 0
    %1712 = vmatpush1.bf16.xpose.msra.mxu0 0
    %1713 = vmatprep.subr.bf16.mxu0 0
    %1714 = vmatpush1.bf16.xpose.msra.mxu0 0
    %1715 = vmatprep.subr.bf16.mxu0 0
    %1716 = vmatpush1.bf16.xpose.msra.mxu0 0
    %1717 = vmatprep.subr.bf16.mxu0 0
    %1718 = vmatpush1.bf16.xpose.msra.mxu0 0
    %1719 = vmatprep.subr.bf16.mxu0 0
    %1720 = vmatpush1.bf16.xpose.msra.mxu0 0
    %1721 = vmatprep.subr.bf16.mxu0 0
    %1722 = vmatpush1.bf16.xpose.msra.mxu0 0
    %1723 = vmatprep.subr.bf16.mxu0 0
    %1724 = vmatpush1.bf16.xpose.msra.mxu0 0
    %1725 = vmatprep.mubr.bf16.mxu0 0
    %1726 = vmatmul.mubr.bf16.gmra.mrb[0].mxu0 %v1688
    %v1727 = vpop.f32.mrb[0].mxu0
    %v1728 = vadd.f32 0.0, %v1727
    %v1729 = vpop.f32.mrb[0].mxu0
    %v1730 = vpop.f32.mrb[0].mxu0
    %v1731 = vadd.f32 0.0, %v1730
    %v1732 = vpop.f32.mrb[0].mxu0
    %1733 = vdwg.mxu0
    %v1735 = vsel %vm246, %v1358, 0
    %v1738 = vsel %vm246, %v1498, 0
    %1740 = vmatprep.subr.bf16.mxu0 0
    %1741 = vmatpush1.bf16.xpose.msra.mxu0 %v1738
    %1742 = vmatprep.subr.bf16.mxu0 0
    %1743 = vmatpush1.bf16.xpose.msra.mxu0 0
    %1744 = vmatprep.subr.bf16.mxu0 0
    %1745 = vmatpush1.bf16.xpose.msra.mxu0 0
    %1746 = vmatprep.subr.bf16.mxu0 0
    %1747 = vmatpush1.bf16.xpose.msra.mxu0 0
    %1748 = vmatprep.subr.bf16.mxu0 0
    %1749 = vmatpush1.bf16.xpose.msra.mxu0 0
    %1750 = vmatprep.subr.bf16.mxu0 0
    %1751 = vmatpush1.bf16.xpose.msra.mxu0 0
    %1752 = vmatprep.subr.bf16.mxu0 0
    %1753 = vmatpush1.bf16.xpose.msra.mxu0 0
    %1754 = vmatprep.subr.bf16.mxu0 0
    %1755 = vmatpush1.bf16.xpose.msra.mxu0 0
    %1756 = vmatprep.subr.bf16.mxu0 0
    %1757 = vmatpush1.bf16.xpose.msra.mxu0 0
    %1758 = vmatprep.subr.bf16.mxu0 0
    %1759 = vmatpush1.bf16.xpose.msra.mxu0 0
    %1760 = vmatprep.subr.bf16.mxu0 0
    %1761 = vmatpush1.bf16.xpose.msra.mxu0 0
    %1762 = vmatprep.subr.bf16.mxu0 0
    %1763 = vmatpush1.bf16.xpose.msra.mxu0 0
    %1764 = vmatprep.subr.bf16.mxu0 0
    %1765 = vmatpush1.bf16.xpose.msra.mxu0 0
    %1766 = vmatprep.subr.bf16.mxu0 0
    %1767 = vmatpush1.bf16.xpose.msra.mxu0 0
    %1768 = vmatprep.subr.bf16.mxu0 0
    %1769 = vmatpush1.bf16.xpose.msra.mxu0 0
    %1770 = vmatprep.subr.bf16.mxu0 0
    %1771 = vmatpush1.bf16.xpose.msra.mxu0 0
    %1772 = vmatprep.mubr.bf16.mxu0 0
    %1773 = vmatmul.mubr.bf16.gmra.mrb[0].mxu0 %v1735
    %v1774 = vpop.f32.mrb[0].mxu0
    %v1775 = vadd.f32 0.0, %v1774
    %v1776 = vpop.f32.mrb[0].mxu0
    %v1777 = vpop.f32.mrb[0].mxu0
    %v1778 = vadd.f32 0.0, %v1777
    %v1779 = vpop.f32.mrb[0].mxu0
    %1780 = vdwg.mxu0
    %v1782 = vsel %vm246, %v1359, 0
    %v1785 = vsel %vm246, %v1499, 0
    %1787 = vmatprep.subr.bf16.mxu0 0
    %1788 = vmatpush1.bf16.xpose.msra.mxu0 %v1785
    %1789 = vmatprep.subr.bf16.mxu0 0
    %1790 = vmatpush1.bf16.xpose.msra.mxu0 0
    %1791 = vmatprep.subr.bf16.mxu0 0
    %1792 = vmatpush1.bf16.xpose.msra.mxu0 0
    %1793 = vmatprep.subr.bf16.mxu0 0
    %1794 = vmatpush1.bf16.xpose.msra.mxu0 0
    %1795 = vmatprep.subr.bf16.mxu0 0
    %1796 = vmatpush1.bf16.xpose.msra.mxu0 0
    %1797 = vmatprep.subr.bf16.mxu0 0
    %1798 = vmatpush1.bf16.xpose.msra.mxu0 0
    %1799 = vmatprep.subr.bf16.mxu0 0
    %1800 = vmatpush1.bf16.xpose.msra.mxu0 0
    %1801 = vmatprep.subr.bf16.mxu0 0
    %1802 = vmatpush1.bf16.xpose.msra.mxu0 0
    %1803 = vmatprep.subr.bf16.mxu0 0
    %1804 = vmatpush1.bf16.xpose.msra.mxu0 0
    %1805 = vmatprep.subr.bf16.mxu0 0
    %1806 = vmatpush1.bf16.xpose.msra.mxu0 0
    %1807 = vmatprep.subr.bf16.mxu0 0
    %1808 = vmatpush1.bf16.xpose.msra.mxu0 0
    %1809 = vmatprep.subr.bf16.mxu0 0
    %1810 = vmatpush1.bf16.xpose.msra.mxu0 0
    %1811 = vmatprep.subr.bf16.mxu0 0
    %1812 = vmatpush1.bf16.xpose.msra.mxu0 0
    %1813 = vmatprep.subr.bf16.mxu0 0
    %1814 = vmatpush1.bf16.xpose.msra.mxu0 0
    %1815 = vmatprep.subr.bf16.mxu0 0
    %1816 = vmatpush1.bf16.xpose.msra.mxu0 0
    %1817 = vmatprep.subr.bf16.mxu0 0
    %1818 = vmatpush1.bf16.xpose.msra.mxu0 0
    %1819 = vmatprep.mubr.bf16.mxu0 0
    %1820 = vmatmul.mubr.bf16.gmra.mrb[0].mxu0 %v1782
    %v1821 = vpop.f32.mrb[0].mxu0
    %v1822 = vadd.f32 0.0, %v1821
    %v1823 = vpop.f32.mrb[0].mxu0
    %v1824 = vpop.f32.mrb[0].mxu0
    %v1825 = vadd.f32 0.0, %v1824
    %v1826 = vpop.f32.mrb[0].mxu0
    %1827 = vdwg.mxu0
    %v1828 = vmul.f32 %v1681, 0.17677669
    %v1829 = vmul.f32 %v1684, 0.17677669
    %v1830 = vmul.f32 %v1728, 0.17677669
    %v1831 = vmul.f32 %v1731, 0.17677669
    %v1832 = vmul.f32 %v1775, 0.17677669
    %v1833 = vmul.f32 %v1778, 0.17677669
    %v1834 = vmul.f32 %v1822, 0.17677669
    %v1835 = vmul.f32 %v1825, 0.17677669
    %v1836 = vadd.f32 %v1828, %v488
    %v1837 = vadd.f32 %v1829, %v489
    %v1838 = vadd.f32 %v1830, %v488
    %v1839 = vadd.f32 %v1831, %v489
    %v1840 = vadd.f32 %v1832, %v488
    %v1841 = vadd.f32 %v1833, %v489
    %v1842 = vadd.f32 %v1834, %v488
    %v1843 = vadd.f32 %v1835, %v489
    %vm1844 = vcmask 130048
    %v1845 = vsel %vm1844, %v1836, -inf
    %1846 = vmax.xlane.f32.xlu0 %v1845
    %v1847 = vpop.xlane.xlu0 %1846
    %v1848 = vsel %vm1844, %v1837, -inf
    %1849 = vmax.xlane.f32.xlu0 %v1848
    %v1850 = vpop.xlane.xlu0 %1849
    %v1851 = vsel %vm1844, %v1838, -inf
    %1852 = vmax.xlane.f32.xlu0 %v1851
    %v1853 = vpop.xlane.xlu0 %1852
    %v1854 = vsel %vm1844, %v1839, -inf
    %1855 = vmax.xlane.f32.xlu0 %v1854
    %v1856 = vpop.xlane.xlu0 %1855
    %v1857 = vsel %vm1844, %v1840, -inf
    %1858 = vmax.xlane.f32.xlu0 %v1857
    %v1859 = vpop.xlane.xlu0 %1858
    %v1860 = vsel %vm1844, %v1841, -inf
    %1861 = vmax.xlane.f32.xlu0 %v1860
    %v1862 = vpop.xlane.xlu0 %1861
    %v1863 = vsel %vm1844, %v1842, -inf
    %1864 = vmax.xlane.f32.xlu0 %v1863
    %v1865 = vpop.xlane.xlu0 %1864
    %v1866 = vsel %vm1844, %v1843, -inf
    %1867 = vmax.xlane.f32.xlu0 %v1866
    %v1868 = vpop.xlane.xlu0 %1867
    %v1869 = vsub.f32 %v1836, %v1847
    %v1870 = vsub.f32 %v1837, %v1850
    %v1871 = vsub.f32 %v1838, %v1853
    %v1872 = vsub.f32 %v1839, %v1856
    %v1873 = vsub.f32 %v1840, %v1859
    %v1874 = vsub.f32 %v1841, %v1862
    %v1875 = vsub.f32 %v1842, %v1865
    %v1876 = vsub.f32 %v1843, %v1868
    %v1877 = vmul.f32 %v1869, 1.442695
    %v1878 = vpow.pop %v1877
    %v1879 = vmul.f32 %v1870, 1.442695
    %v1880 = vpow.pop %v1879
    %v1881 = vmul.f32 %v1871, 1.442695
    %v1882 = vpow.pop %v1881
    %v1883 = vmul.f32 %v1872, 1.442695
    %v1884 = vpow.pop %v1883
    %v1885 = vmul.f32 %v1873, 1.442695
    %v1886 = vpow.pop %v1885
    %v1887 = vmul.f32 %v1874, 1.442695
    %v1888 = vpow.pop %v1887
    %v1889 = vmul.f32 %v1875, 1.442695
    %v1890 = vpow.pop %v1889
    %v1891 = vmul.f32 %v1876, 1.442695
    %v1892 = vpow.pop %v1891
    %v1893 = vsel %vm1844, %v1878, 0.0
    %1894 = vadd.xlane.f32.xlu0 %v1893
    %v1895 = vpop.xlane.xlu0 %1894
    %v1896 = vsel %vm1844, %v1880, 0.0
    %1897 = vadd.xlane.f32.xlu0 %v1896
    %v1898 = vpop.xlane.xlu0 %1897
    %v1899 = vsel %vm1844, %v1882, 0.0
    %1900 = vadd.xlane.f32.xlu0 %v1899
    %v1901 = vpop.xlane.xlu0 %1900
    %v1902 = vsel %vm1844, %v1884, 0.0
    %1903 = vadd.xlane.f32.xlu0 %v1902
    %v1904 = vpop.xlane.xlu0 %1903
    %v1905 = vsel %vm1844, %v1886, 0.0
    %1906 = vadd.xlane.f32.xlu0 %v1905
    %v1907 = vpop.xlane.xlu0 %1906
    %v1908 = vsel %vm1844, %v1888, 0.0
    %1909 = vadd.xlane.f32.xlu0 %v1908
    %v1910 = vpop.xlane.xlu0 %1909
    %v1911 = vsel %vm1844, %v1890, 0.0
    %1912 = vadd.xlane.f32.xlu0 %v1911
    %v1913 = vpop.xlane.xlu0 %1912
    %v1914 = vsel %vm1844, %v1892, 0.0
    %1915 = vadd.xlane.f32.xlu0 %v1914
    %v1916 = vpop.xlane.xlu0 %1915
    %v1917 = vrcp.pop %v1895
    %v1918 = vmul.f32 %v1878, %v1917
    %v1919 = vrcp.pop %v1898
    %v1920 = vmul.f32 %v1880, %v1919
    %v1921 = vrcp.pop %v1901
    %v1922 = vmul.f32 %v1882, %v1921
    %v1923 = vrcp.pop %v1904
    %v1924 = vmul.f32 %v1884, %v1923
    %v1925 = vrcp.pop %v1907
    %v1926 = vmul.f32 %v1886, %v1925
    %v1927 = vrcp.pop %v1910
    %v1928 = vmul.f32 %v1888, %v1927
    %v1929 = vrcp.pop %v1913
    %v1930 = vmul.f32 %v1890, %v1929
    %v1931 = vrcp.pop %v1916
    %v1932 = vmul.f32 %v1892, %v1931
    %v1933 = vpack.c.bf16 %v1920, %v1918
    %v1934 = vpack.c.bf16 %v1924, %v1922
    %v1935 = vpack.c.bf16 %v1928, %v1926
    %v1936 = vpack.c.bf16 %v1932, %v1930
    %v1938 = vsel %vm1844, %v1933, 0
    %1940 = vmatprep.subr.bf16.mxu0 0
    %1941 = vmatpush1.bf16.msra.mxu0 %v1636
    %1942 = vmatprep.subr.bf16.mxu0 0
    %1943 = vmatpush1.bf16.msra.mxu0 0
    %1944 = vmatprep.subr.bf16.mxu0 0
    %1945 = vmatpush1.bf16.msra.mxu0 0
    %1946 = vmatprep.subr.bf16.mxu0 0
    %1947 = vmatpush1.bf16.msra.mxu0 0
    %1948 = vmatprep.subr.bf16.mxu0 0
    %1949 = vmatpush1.bf16.msra.mxu0 0
    %1950 = vmatprep.subr.bf16.mxu0 0
    %1951 = vmatpush1.bf16.msra.mxu0 0
    %1952 = vmatprep.subr.bf16.mxu0 0
    %1953 = vmatpush1.bf16.msra.mxu0 0
    %1954 = vmatprep.subr.bf16.mxu0 0
    %1955 = vmatpush1.bf16.msra.mxu0 0
    %1956 = vmatprep.subr.bf16.mxu0 0
    %1957 = vmatpush1.bf16.msra.mxu0 0
    %1958 = vmatprep.subr.bf16.mxu0 0
    %1959 = vmatpush1.bf16.msra.mxu0 0
    %1960 = vmatprep.subr.bf16.mxu0 0
    %1961 = vmatpush1.bf16.msra.mxu0 0
    %1962 = vmatprep.subr.bf16.mxu0 0
    %1963 = vmatpush1.bf16.msra.mxu0 0
    %1964 = vmatprep.subr.bf16.mxu0 0
    %1965 = vmatpush1.bf16.msra.mxu0 0
    %1966 = vmatprep.subr.bf16.mxu0 0
    %1967 = vmatpush1.bf16.msra.mxu0 0
    %1968 = vmatprep.subr.bf16.mxu0 0
    %1969 = vmatpush1.bf16.msra.mxu0 0
    %1970 = vmatprep.subr.bf16.mxu0 0
    %1971 = vmatpush1.bf16.msra.mxu0 0
    %1972 = vmatprep.mubr.bf16.mxu0 0
    %1973 = vmatmul.mubr.bf16.gmra.mrb[0].mxu0 %v1938
    %v1974 = vpop.f32.mrb[0].mxu0
    %v1975 = vadd.f32 0.0, %v1974
    %v1976 = vpop.f32.mrb[0].mxu0
    %v1977 = vpop.f32.mrb[0].mxu0
    %v1978 = vadd.f32 0.0, %v1977
    %v1979 = vpop.f32.mrb[0].mxu0
    %1980 = vdwg.mxu0
    %v1982 = vsel %vm1844, %v1934, 0
    %1984 = vmatprep.subr.bf16.mxu0 0
    %1985 = vmatpush1.bf16.msra.mxu0 %v1637
    %1986 = vmatprep.subr.bf16.mxu0 0
    %1987 = vmatpush1.bf16.msra.mxu0 0
    %1988 = vmatprep.subr.bf16.mxu0 0
    %1989 = vmatpush1.bf16.msra.mxu0 0
    %1990 = vmatprep.subr.bf16.mxu0 0
    %1991 = vmatpush1.bf16.msra.mxu0 0
    %1992 = vmatprep.subr.bf16.mxu0 0
    %1993 = vmatpush1.bf16.msra.mxu0 0
    %1994 = vmatprep.subr.bf16.mxu0 0
    %1995 = vmatpush1.bf16.msra.mxu0 0
    %1996 = vmatprep.subr.bf16.mxu0 0
    %1997 = vmatpush1.bf16.msra.mxu0 0
    %1998 = vmatprep.subr.bf16.mxu0 0
    %1999 = vmatpush1.bf16.msra.mxu0 0
    %2000 = vmatprep.subr.bf16.mxu0 0
    %2001 = vmatpush1.bf16.msra.mxu0 0
    %2002 = vmatprep.subr.bf16.mxu0 0
    %2003 = vmatpush1.bf16.msra.mxu0 0
    %2004 = vmatprep.subr.bf16.mxu0 0
    %2005 = vmatpush1.bf16.msra.mxu0 0
    %2006 = vmatprep.subr.bf16.mxu0 0
    %2007 = vmatpush1.bf16.msra.mxu0 0
    %2008 = vmatprep.subr.bf16.mxu0 0
    %2009 = vmatpush1.bf16.msra.mxu0 0
    %2010 = vmatprep.subr.bf16.mxu0 0
    %2011 = vmatpush1.bf16.msra.mxu0 0
    %2012 = vmatprep.subr.bf16.mxu0 0
    %2013 = vmatpush1.bf16.msra.mxu0 0
    %2014 = vmatprep.subr.bf16.mxu0 0
    %2015 = vmatpush1.bf16.msra.mxu0 0
    %2016 = vmatprep.mubr.bf16.mxu0 0
    %2017 = vmatmul.mubr.bf16.gmra.mrb[0].mxu0 %v1982
    %v2018 = vpop.f32.mrb[0].mxu0
    %v2019 = vadd.f32 0.0, %v2018
    %v2020 = vpop.f32.mrb[0].mxu0
    %v2021 = vpop.f32.mrb[0].mxu0
    %v2022 = vadd.f32 0.0, %v2021
    %v2023 = vpop.f32.mrb[0].mxu0
    %2024 = vdwg.mxu0
    %v2026 = vsel %vm1844, %v1935, 0
    %2028 = vmatprep.subr.bf16.mxu0 0
    %2029 = vmatpush1.bf16.msra.mxu0 %v1638
    %2030 = vmatprep.subr.bf16.mxu0 0
    %2031 = vmatpush1.bf16.msra.mxu0 0
    %2032 = vmatprep.subr.bf16.mxu0 0
    %2033 = vmatpush1.bf16.msra.mxu0 0
    %2034 = vmatprep.subr.bf16.mxu0 0
    %2035 = vmatpush1.bf16.msra.mxu0 0
    %2036 = vmatprep.subr.bf16.mxu0 0
    %2037 = vmatpush1.bf16.msra.mxu0 0
    %2038 = vmatprep.subr.bf16.mxu0 0
    %2039 = vmatpush1.bf16.msra.mxu0 0
    %2040 = vmatprep.subr.bf16.mxu0 0
    %2041 = vmatpush1.bf16.msra.mxu0 0
    %2042 = vmatprep.subr.bf16.mxu0 0
    %2043 = vmatpush1.bf16.msra.mxu0 0
    %2044 = vmatprep.subr.bf16.mxu0 0
    %2045 = vmatpush1.bf16.msra.mxu0 0
    %2046 = vmatprep.subr.bf16.mxu0 0
    %2047 = vmatpush1.bf16.msra.mxu0 0
    %2048 = vmatprep.subr.bf16.mxu0 0
    %2049 = vmatpush1.bf16.msra.mxu0 0
    %2050 = vmatprep.subr.bf16.mxu0 0
    %2051 = vmatpush1.bf16.msra.mxu0 0
    %2052 = vmatprep.subr.bf16.mxu0 0
    %2053 = vmatpush1.bf16.msra.mxu0 0
    %2054 = vmatprep.subr.bf16.mxu0 0
    %2055 = vmatpush1.bf16.msra.mxu0 0
    %2056 = vmatprep.subr.bf16.mxu0 0
    %2057 = vmatpush1.bf16.msra.mxu0 0
    %2058 = vmatprep.subr.bf16.mxu0 0
    %2059 = vmatpush1.bf16.msra.mxu0 0
    %2060 = vmatprep.mubr.bf16.mxu0 0
    %2061 = vmatmul.mubr.bf16.gmra.mrb[0].mxu0 %v2026
    %v2062 = vpop.f32.mrb[0].mxu0
    %v2063 = vadd.f32 0.0, %v2062
    %v2064 = vpop.f32.mrb[0].mxu0
    %v2065 = vpop.f32.mrb[0].mxu0
    %v2066 = vadd.f32 0.0, %v2065
    %v2067 = vpop.f32.mrb[0].mxu0
    %2068 = vdwg.mxu0
    %v2070 = vsel %vm1844, %v1936, 0
    %2072 = vmatprep.subr.bf16.mxu0 0
    %2073 = vmatpush1.bf16.msra.mxu0 %v1639
    %2074 = vmatprep.subr.bf16.mxu0 0
    %2075 = vmatpush1.bf16.msra.mxu0 0
    %2076 = vmatprep.subr.bf16.mxu0 0
    %2077 = vmatpush1.bf16.msra.mxu0 0
    %2078 = vmatprep.subr.bf16.mxu0 0
    %2079 = vmatpush1.bf16.msra.mxu0 0
    %2080 = vmatprep.subr.bf16.mxu0 0
    %2081 = vmatpush1.bf16.msra.mxu0 0
    %2082 = vmatprep.subr.bf16.mxu0 0
    %2083 = vmatpush1.bf16.msra.mxu0 0
    %2084 = vmatprep.subr.bf16.mxu0 0
    %2085 = vmatpush1.bf16.msra.mxu0 0
    %2086 = vmatprep.subr.bf16.mxu0 0
    %2087 = vmatpush1.bf16.msra.mxu0 0
    %2088 = vmatprep.subr.bf16.mxu0 0
    %2089 = vmatpush1.bf16.msra.mxu0 0
    %2090 = vmatprep.subr.bf16.mxu0 0
    %2091 = vmatpush1.bf16.msra.mxu0 0
    %2092 = vmatprep.subr.bf16.mxu0 0
    %2093 = vmatpush1.bf16.msra.mxu0 0
    %2094 = vmatprep.subr.bf16.mxu0 0
    %2095 = vmatpush1.bf16.msra.mxu0 0
    %2096 = vmatprep.subr.bf16.mxu0 0
    %2097 = vmatpush1.bf16.msra.mxu0 0
    %2098 = vmatprep.subr.bf16.mxu0 0
    %2099 = vmatpush1.bf16.msra.mxu0 0
    %2100 = vmatprep.subr.bf16.mxu0 0
    %2101 = vmatpush1.bf16.msra.mxu0 0
    %2102 = vmatprep.subr.bf16.mxu0 0
    %2103 = vmatpush1.bf16.msra.mxu0 0
    %2104 = vmatprep.mubr.bf16.mxu0 0
    %2105 = vmatmul.mubr.bf16.gmra.mrb[0].mxu0 %v2070
    %v2106 = vpop.f32.mrb[0].mxu0
    %v2107 = vadd.f32 0.0, %v2106
    %v2108 = vpop.f32.mrb[0].mxu0
    %v2109 = vpop.f32.mrb[0].mxu0
    %v2110 = vadd.f32 0.0, %v2109
    %v2111 = vpop.f32.mrb[0].mxu0
    %2112 = vdwg.mxu0
    %v2113 = vcombine.low %v1975, %v2063
    %v2114 = vcombine.high %v1975, %v2063
    %v2116 = vunpack.c.l.s4 1983009808
    %v2117 = vunpack.c.0.s8 %v2116
    %v2118 = vlaneseq
    %v2119 = vshrl.u32 %v2118, 7
    %v2120 = vsub.s32 %v2117, %v2119
    %v2121 = vrot.slane %v2113, %v2120
    %v2123 = vunpack.c.l.s4 1983009808
    %v2124 = vunpack.c.0.s8 %v2123
    %v2125 = vlaneseq
    %v2126 = vshrl.u32 %v2125, 7
    %v2127 = vsub.s32 %v2124, %v2126
    %v2128 = vrot.slane %v2114, %v2127
    %v2129 = vcombine.low %v2019, %v2107
    %v2130 = vcombine.high %v2019, %v2107
    %v2132 = vunpack.c.l.s4 1983009808
    %v2133 = vunpack.c.0.s8 %v2132
    %v2134 = vlaneseq
    %v2135 = vshrl.u32 %v2134, 7
    %v2136 = vsub.s32 %v2133, %v2135
    %v2137 = vrot.slane %v2129, %v2136
    %v2139 = vunpack.c.l.s4 1983009808
    %v2140 = vunpack.c.0.s8 %v2139
    %v2141 = vlaneseq
    %v2142 = vshrl.u32 %v2141, 7
    %v2143 = vsub.s32 %v2140, %v2142
    %v2144 = vrot.slane %v2130, %v2143
    %v2145 = vcombine.low %v2121, %v2137
    %v2146 = vcombine.high %v2121, %v2137
    %v2148 = vunpack.c.l.s4 1934713408
    %v2149 = vunpack.c.0.s8 %v2148
    %v2150 = vlaneseq
    %v2151 = vshrl.u32 %v2150, 7
    %v2152 = vsub.s32 %v2149, %v2151
    %v2153 = vrot.slane %v2145, %v2152
    %v2155 = vunpack.c.l.s4 1934713408
    %v2156 = vunpack.c.0.s8 %v2155
    %v2157 = vlaneseq
    %v2158 = vshrl.u32 %v2157, 7
    %v2159 = vsub.s32 %v2156, %v2158
    %v2160 = vrot.slane %v2146, %v2159
    %v2161 = vcombine.low %v2128, %v2144
    %v2162 = vcombine.high %v2128, %v2144
    %v2164 = vunpack.c.l.s4 1934713408
    %v2165 = vunpack.c.0.s8 %v2164
    %v2166 = vlaneseq
    %v2167 = vshrl.u32 %v2166, 7
    %v2168 = vsub.s32 %v2165, %v2167
    %v2169 = vrot.slane %v2161, %v2168
    %v2171 = vunpack.c.l.s4 1934713408
    %v2172 = vunpack.c.0.s8 %v2171
    %v2173 = vlaneseq
    %v2174 = vshrl.u32 %v2173, 7
    %v2175 = vsub.s32 %v2172, %v2174
    %v2176 = vrot.slane %v2162, %v2175
    %v2177 = vcombine.high %v2153, 0.0
    %v2178 = vcombine.high %v2160, 0.0
    %v2179 = vcombine.high %v2169, 0.0
    %v2180 = vcombine.high %v2176, 0.0
    %v2181 = vcombine.low %v1978, %v2066
    %v2182 = vcombine.high %v1978, %v2066
    %v2184 = vunpack.c.l.s4 1983009808
    %v2185 = vunpack.c.0.s8 %v2184
    %v2186 = vlaneseq
    %v2187 = vshrl.u32 %v2186, 7
    %v2188 = vsub.s32 %v2185, %v2187
    %v2189 = vrot.slane %v2181, %v2188
    %v2191 = vunpack.c.l.s4 1983009808
    %v2192 = vunpack.c.0.s8 %v2191
    %v2193 = vlaneseq
    %v2194 = vshrl.u32 %v2193, 7
    %v2195 = vsub.s32 %v2192, %v2194
    %v2196 = vrot.slane %v2182, %v2195
    %v2197 = vcombine.low %v2022, %v2110
    %v2198 = vcombine.high %v2022, %v2110
    %v2200 = vunpack.c.l.s4 1983009808
    %v2201 = vunpack.c.0.s8 %v2200
    %v2202 = vlaneseq
    %v2203 = vshrl.u32 %v2202, 7
    %v2204 = vsub.s32 %v2201, %v2203
    %v2205 = vrot.slane %v2197, %v2204
    %v2207 = vunpack.c.l.s4 1983009808
    %v2208 = vunpack.c.0.s8 %v2207
    %v2209 = vlaneseq
    %v2210 = vshrl.u32 %v2209, 7
    %v2211 = vsub.s32 %v2208, %v2210
    %v2212 = vrot.slane %v2198, %v2211
    %v2213 = vcombine.low %v2189, %v2205
    %v2214 = vcombine.high %v2189, %v2205
    %v2216 = vunpack.c.l.s4 1934713408
    %v2217 = vunpack.c.0.s8 %v2216
    %v2218 = vlaneseq
    %v2219 = vshrl.u32 %v2218, 7
    %v2220 = vsub.s32 %v2217, %v2219
    %v2221 = vrot.slane %v2213, %v2220
    %v2223 = vunpack.c.l.s4 1934713408
    %v2224 = vunpack.c.0.s8 %v2223
    %v2225 = vlaneseq
    %v2226 = vshrl.u32 %v2225, 7
    %v2227 = vsub.s32 %v2224, %v2226
    %v2228 = vrot.slane %v2214, %v2227
    %v2229 = vcombine.low %v2196, %v2212
    %v2230 = vcombine.high %v2196, %v2212
    %v2232 = vunpack.c.l.s4 1934713408
    %v2233 = vunpack.c.0.s8 %v2232
    %v2234 = vlaneseq
    %v2235 = vshrl.u32 %v2234, 7
    %v2236 = vsub.s32 %v2233, %v2235
    %v2237 = vrot.slane %v2229, %v2236
    %v2239 = vunpack.c.l.s4 1934713408
    %v2240 = vunpack.c.0.s8 %v2239
    %v2241 = vlaneseq
    %v2242 = vshrl.u32 %v2241, 7
    %v2243 = vsub.s32 %v2240, %v2242
    %v2244 = vrot.slane %v2230, %v2243
    %v2245 = vcombine.high %v2221, 0.0
    %v2246 = vcombine.high %v2228, 0.0
    %v2247 = vcombine.high %v2237, 0.0
    %v2248 = vcombine.high %v2244, 0.0
    %v2249 = vcombine.low %v2153, %v2160
    %v2251 = vunpack.c.l.s4 1983009808
    %v2252 = vunpack.c.0.s8 %v2251
    %v2253 = vlaneseq
    %v2254 = vshrl.u32 %v2253, 7
    %v2255 = vsub.s32 %v2252, %v2254
    %v2256 = vrot.slane %v2249, %v2255
    %v2257 = vcombine.low %v2177, %v2178
    %v2259 = vunpack.c.l.s4 1983009808
    %v2260 = vunpack.c.0.s8 %v2259
    %v2261 = vlaneseq
    %v2262 = vshrl.u32 %v2261, 7
    %v2263 = vsub.s32 %v2260, %v2262
    %v2264 = vrot.slane %v2257, %v2263
    %v2265 = vcombine.low %v2169, %v2176
    %v2267 = vunpack.c.l.s4 1983009808
    %v2268 = vunpack.c.0.s8 %v2267
    %v2269 = vlaneseq
    %v2270 = vshrl.u32 %v2269, 7
    %v2271 = vsub.s32 %v2268, %v2270
    %v2272 = vrot.slane %v2265, %v2271
    %v2273 = vcombine.low %v2179, %v2180
    %v2275 = vunpack.c.l.s4 1983009808
    %v2276 = vunpack.c.0.s8 %v2275
    %v2277 = vlaneseq
    %v2278 = vshrl.u32 %v2277, 7
    %v2279 = vsub.s32 %v2276, %v2278
    %v2280 = vrot.slane %v2273, %v2279
    %v2281 = vcombine.low %v2256, %v2264
    %v2282 = vcombine.high %v2256, %v2264
    %v2284 = vunpack.c.l.s4 1934713408
    %v2285 = vunpack.c.0.s8 %v2284
    %v2286 = vlaneseq
    %v2287 = vshrl.u32 %v2286, 7
    %v2288 = vsub.s32 %v2285, %v2287
    %v2289 = vrot.slane %v2281, %v2288
    %v2291 = vunpack.c.l.s4 1934713408
    %v2292 = vunpack.c.0.s8 %v2291
    %v2293 = vlaneseq
    %v2294 = vshrl.u32 %v2293, 7
    %v2295 = vsub.s32 %v2292, %v2294
    %v2296 = vrot.slane %v2282, %v2295
    %v2297 = vcombine.low %v2272, %v2280
    %v2298 = vcombine.high %v2272, %v2280
    %v2300 = vunpack.c.l.s4 1934713408
    %v2301 = vunpack.c.0.s8 %v2300
    %v2302 = vlaneseq
    %v2303 = vshrl.u32 %v2302, 7
    %v2304 = vsub.s32 %v2301, %v2303
    %v2305 = vrot.slane %v2297, %v2304
    %v2307 = vunpack.c.l.s4 1934713408
    %v2308 = vunpack.c.0.s8 %v2307
    %v2309 = vlaneseq
    %v2310 = vshrl.u32 %v2309, 7
    %v2311 = vsub.s32 %v2308, %v2310
    %v2312 = vrot.slane %v2298, %v2311
    %v2313 = vcombine.low %v2289, %v2305
    %v2314 = vcombine.high %v2289, %v2305
    %v2315 = vcombine.low %v2296, %v2312
    %v2316 = vcombine.high %v2296, %v2312
    %v2317 = vcombine.low %v2221, %v2228
    %v2319 = vunpack.c.l.s4 1983009808
    %v2320 = vunpack.c.0.s8 %v2319
    %v2321 = vlaneseq
    %v2322 = vshrl.u32 %v2321, 7
    %v2323 = vsub.s32 %v2320, %v2322
    %v2324 = vrot.slane %v2317, %v2323
    %v2325 = vcombine.low %v2245, %v2246
    %v2327 = vunpack.c.l.s4 1983009808
    %v2328 = vunpack.c.0.s8 %v2327
    %v2329 = vlaneseq
    %v2330 = vshrl.u32 %v2329, 7
    %v2331 = vsub.s32 %v2328, %v2330
    %v2332 = vrot.slane %v2325, %v2331
    %v2333 = vcombine.low %v2237, %v2244
    %v2335 = vunpack.c.l.s4 1983009808
    %v2336 = vunpack.c.0.s8 %v2335
    %v2337 = vlaneseq
    %v2338 = vshrl.u32 %v2337, 7
    %v2339 = vsub.s32 %v2336, %v2338
    %v2340 = vrot.slane %v2333, %v2339
    %v2341 = vcombine.low %v2247, %v2248
    %v2343 = vunpack.c.l.s4 1983009808
    %v2344 = vunpack.c.0.s8 %v2343
    %v2345 = vlaneseq
    %v2346 = vshrl.u32 %v2345, 7
    %v2347 = vsub.s32 %v2344, %v2346
    %v2348 = vrot.slane %v2341, %v2347
    %v2349 = vcombine.low %v2324, %v2332
    %v2350 = vcombine.high %v2324, %v2332
    %v2352 = vunpack.c.l.s4 1934713408
    %v2353 = vunpack.c.0.s8 %v2352
    %v2354 = vlaneseq
    %v2355 = vshrl.u32 %v2354, 7
    %v2356 = vsub.s32 %v2353, %v2355
    %v2357 = vrot.slane %v2349, %v2356
    %v2359 = vunpack.c.l.s4 1934713408
    %v2360 = vunpack.c.0.s8 %v2359
    %v2361 = vlaneseq
    %v2362 = vshrl.u32 %v2361, 7
    %v2363 = vsub.s32 %v2360, %v2362
    %v2364 = vrot.slane %v2350, %v2363
    %v2365 = vcombine.low %v2340, %v2348
    %v2366 = vcombine.high %v2340, %v2348
    %v2368 = vunpack.c.l.s4 1934713408
    %v2369 = vunpack.c.0.s8 %v2368
    %v2370 = vlaneseq
    %v2371 = vshrl.u32 %v2370, 7
    %v2372 = vsub.s32 %v2369, %v2371
    %v2373 = vrot.slane %v2365, %v2372
    %v2375 = vunpack.c.l.s4 1934713408
    %v2376 = vunpack.c.0.s8 %v2375
    %v2377 = vlaneseq
    %v2378 = vshrl.u32 %v2377, 7
    %v2379 = vsub.s32 %v2376, %v2378
    %v2380 = vrot.slane %v2366, %v2379
    %v2381 = vcombine.low %v2357, %v2373
    %v2382 = vcombine.high %v2357, %v2373
    %v2383 = vcombine.low %v2364, %v2380
    %v2384 = vcombine.high %v2364, %v2380
    %2387 = vrot.lane.b32.xlu0 %v2314, 32
    %v2388 = vpop.permute.xlu0 %2387
    %2389 = vrot.lane.b32.xlu0 %v2382, 32
    %v2390 = vpop.permute.xlu0 %2389
    %2395 = vrot.lane.b32.xlu0 %v2315, 64
    %v2396 = vpop.permute.xlu0 %2395
    %2397 = vrot.lane.b32.xlu0 %v2383, 64
    %v2398 = vpop.permute.xlu0 %2397
    %2403 = vrot.lane.b32.xlu0 %v2316, 96
    %v2404 = vpop.permute.xlu0 %2403
    %2405 = vrot.lane.b32.xlu0 %v2384, 96
    %v2406 = vpop.permute.xlu0 %2405
    %v2409 = vsel %vm246, %v2313, %v2388
    %v2410 = vsel %vm246, %v2381, %v2390
    %vm2411 = vcmask 523264
    %v2412 = vsel %vm2411, %v2409, %v2396
    %v2413 = vsel %vm2411, %v2410, %v2398
    %vm2414 = vcmask 785408
    %v2415 = vsel %vm2414, %v2412, %v2404
    %v2416 = vsel %vm2414, %v2413, %v2406
    %v2417 = vld [vmem:[#allocation10] sm:$0xf]
    %v2418 = vld [vmem:[#allocation10 + $0x4] sm:$0xf]
    %v2419 = vld [vmem:[#allocation10 + $0x8] sm:$0xf]
    %v2420 = vld [vmem:[#allocation10 + $0xc] sm:$0xf]
    %v2421 = vld [vmem:[#allocation10 + $0x10] sm:$0xf]
    %v2422 = vld [vmem:[#allocation10 + $0x14] sm:$0xf]
    %v2423 = vld [vmem:[#allocation10 + $0x18] sm:$0xf]
    %v2424 = vld [vmem:[#allocation10 + $0x1c] sm:$0xf]
    %v2425 = vld [vmem:[#allocation10 + $0x20] sm:$0xf]
    %v2426 = vld [vmem:[#allocation10 + $0x24] sm:$0xf]
    %v2427 = vld [vmem:[#allocation10 + $0x28] sm:$0xf]
    %v2428 = vld [vmem:[#allocation10 + $0x2c] sm:$0xf]
    %v2429 = vld [vmem:[#allocation10 + $0x30] sm:$0xf]
    %v2430 = vld [vmem:[#allocation10 + $0x34] sm:$0xf]
    %v2431 = vld [vmem:[#allocation10 + $0x38] sm:$0xf]
    %v2432 = vld [vmem:[#allocation10 + $0x3c] sm:$0xf]
    %v2433 = vld [vmem:[#allocation11] sm:$0x1]
    %v2434 = vpack.c.bf16 %v2416, %v2415
    %v2436 = vlaneseq
    %v2437 = vshrl.u32 %v2436, 7
    %v2438 = vsub.s32 0, %v2437
    %v2439 = vrot.slane %v2433, %v2438
    %v2457 = vunpack.c.l.b16 %v2417
    %v2458 = vunpack.c.l.b16 %v2418
    %v2459 = vunpack.c.l.b16 %v2419
    %v2460 = vunpack.c.l.b16 %v2420
    %v2461 = vunpack.c.l.b16 %v2421
    %v2462 = vunpack.c.l.b16 %v2422
    %v2463 = vunpack.c.l.b16 %v2423
    %v2464 = vunpack.c.l.b16 %v2424
    %v2465 = vunpack.c.l.b16 %v2425
    %v2466 = vunpack.c.l.b16 %v2426
    %v2467 = vunpack.c.l.b16 %v2427
    %v2468 = vunpack.c.l.b16 %v2428
    %v2469 = vunpack.c.l.b16 %v2429
    %v2470 = vunpack.c.l.b16 %v2430
    %v2471 = vunpack.c.l.b16 %v2431
    %v2472 = vunpack.c.l.b16 %v2432
    %v2473 = vpack.c.b16 %v2458, %v2457
    %v2474 = vpack.c.b16 %v2460, %v2459
    %v2475 = vpack.c.b16 %v2462, %v2461
    %v2476 = vpack.c.b16 %v2464, %v2463
    %v2477 = vpack.c.b16 %v2466, %v2465
    %v2478 = vpack.c.b16 %v2468, %v2467
    %v2479 = vpack.c.b16 %v2470, %v2469
    %v2480 = vpack.c.b16 %v2472, %v2471
    %2489 = vmatprep.subr.bf16.mxu0 0
    %2490 = vmatpush1.bf16.msra.mxu0 %v2473
    %2491 = vmatprep.subr.bf16.mxu0 0
    %2492 = vmatpush1.bf16.msra.mxu0 %v2474
    %2493 = vmatprep.subr.bf16.mxu0 0
    %2494 = vmatpush1.bf16.msra.mxu0 %v2475
    %2495 = vmatprep.subr.bf16.mxu0 0
    %2496 = vmatpush1.bf16.msra.mxu0 %v2476
    %2497 = vmatprep.subr.bf16.mxu0 0
    %2498 = vmatpush1.bf16.msra.mxu0 %v2477
    %2499 = vmatprep.subr.bf16.mxu0 0
    %2500 = vmatpush1.bf16.msra.mxu0 %v2478
    %2501 = vmatprep.subr.bf16.mxu0 0
    %2502 = vmatpush1.bf16.msra.mxu0 %v2479
    %2503 = vmatprep.subr.bf16.mxu0 0
    %2504 = vmatpush1.bf16.msra.mxu0 %v2480
    %2505 = vmatprep.subr.bf16.mxu0 0
    %2506 = vmatpush1.bf16.msra.mxu0 0
    %2507 = vmatprep.subr.bf16.mxu0 0
    %2508 = vmatpush1.bf16.msra.mxu0 0
    %2509 = vmatprep.subr.bf16.mxu0 0
    %2510 = vmatpush1.bf16.msra.mxu0 0
    %2511 = vmatprep.subr.bf16.mxu0 0
    %2512 = vmatpush1.bf16.msra.mxu0 0
    %2513 = vmatprep.subr.bf16.mxu0 0
    %2514 = vmatpush1.bf16.msra.mxu0 0
    %2515 = vmatprep.subr.bf16.mxu0 0
    %2516 = vmatpush1.bf16.msra.mxu0 0
    %2517 = vmatprep.subr.bf16.mxu0 0
    %2518 = vmatpush1.bf16.msra.mxu0 0
    %2519 = vmatprep.subr.bf16.mxu0 0
    %2520 = vmatpush1.bf16.msra.mxu0 0
    %2521 = vmatprep.mubr.bf16.mxu0 0
    %2522 = vmatmul.mubr.bf16.gmra.mrb[0].mxu0 %v2434
    %v2523 = vpop.f32.mrb[0].mxu0
    %v2524 = vadd.f32 %v2439, %v2523
    %v2525 = vpop.f32.mrb[0].mxu0
    %v2526 = vpop.f32.mrb[0].mxu0
    %v2527 = vadd.f32 %v2439, %v2526
    %v2528 = vpop.f32.mrb[0].mxu0
    %2529 = vdwg.mxu0
    %v2530 = vadd.f32 %v367, %v2524
    %v2531 = vadd.f32 %v368, %v2527
    %v2532 = vld [vmem:[%s10] sm:$0x1]
    %v2533 = vld [vmem:[%s11] sm:$0x1]
    %2534 = vadd.xlane.f32.xlu0 %v2530
    %v2535 = vpop.xlane.xlu0 %2534
    %2536 = vadd.xlane.f32.xlu0 %v2531
    %v2537 = vpop.xlane.xlu0 %2536
    %v2538 = vmul.f32 %v2535, %v334
    %v2539 = vmul.f32 %v2537, %v334
    %v2540 = vsub.f32 %v2530, %v2538
    %v2541 = vsub.f32 %v2531, %v2539
    %v2542 = vmul.f32 %v2540, %v2540
    %v2543 = vmul.f32 %v2541, %v2541
    %2544 = vadd.xlane.f32.xlu0 %v2542
    %v2545 = vpop.xlane.xlu0 %2544
    %2546 = vadd.xlane.f32.xlu0 %v2543
    %v2547 = vpop.xlane.xlu0 %2546
    %v2548 = vmul.f32 %v2545, %v334
    %v2549 = vmul.f32 %v2547, %v334
    %v2550 = vadd.f32 %v2548, 1e-12
    %v2551 = vadd.f32 %v2549, 1e-12
    %v2552 = vrsqrt.pop %v2550
    %v2553 = vrsqrt.pop %v2551
    %v2554 = vmul.f32 %v2540, %v2552
    %v2555 = vmul.f32 %v2541, %v2553
    %v2557 = vlaneseq
    %v2558 = vshrl.u32 %v2557, 7
    %v2559 = vsub.s32 0, %v2558
    %v2560 = vrot.slane %v2532, %v2559
    %v2562 = vmul.f32 %v2554, %v2560
    %v2563 = vmul.f32 %v2555, %v2560
    %v2565 = vlaneseq
    %v2566 = vshrl.u32 %v2565, 7
    %v2567 = vsub.s32 0, %v2566
    %v2568 = vrot.slane %v2533, %v2567
    %v2570 = vadd.f32 %v2562, %v2568
    %v2571 = vadd.f32 %v2563, %v2568
    %v2572 = vld [vmem:[#allocation13] sm:$0xff]
    %v2573 = vld [vmem:[#allocation13 + $0x8] sm:$0xff]
    %v2574 = vld [vmem:[#allocation13 + $0x10] sm:$0xff]
    %v2575 = vld [vmem:[#allocation13 + $0x18] sm:$0xff]
    %v2576 = vld [vmem:[#allocation13 + $0x20] sm:$0xff]
    %v2577 = vld [vmem:[#allocation13 + $0x28] sm:$0xff]
    %v2578 = vld [vmem:[#allocation13 + $0x30] sm:$0xff]
    %v2579 = vld [vmem:[#allocation13 + $0x38] sm:$0xff]
    %v2580 = vld [vmem:[#allocation13 + $0x40] sm:$0xff]
    %v2581 = vld [vmem:[#allocation13 + $0x48] sm:$0xff]
    %v2582 = vld [vmem:[#allocation13 + $0x50] sm:$0xff]
    %v2583 = vld [vmem:[#allocation13 + $0x58] sm:$0xff]
    %v2584 = vld [vmem:[#allocation13 + $0x60] sm:$0xff]
    %v2585 = vld [vmem:[#allocation13 + $0x68] sm:$0xff]
    %v2586 = vld [vmem:[#allocation13 + $0x70] sm:$0xff]
    %v2587 = vld [vmem:[#allocation13 + $0x78] sm:$0xff]
    %v2588 = vld [vmem:[#allocation14] sm:$0x3]
    %v2589 = vpack.c.bf16 %v2571, %v2570
    %v2591 = vlaneseq
    %v2592 = vshrl.u32 %v2591, 7
    %v2593 = vsub.s32 0, %v2592
    %v2594 = vrot.slane %v2588, %v2593
    %v2595 = vlaneseq
    %v2596 = vshrl.u32 %v2595, 7
    %v2597 = vsub.s32 1, %v2596
    %v2598 = vrot.slane %v2588, %v2597
    %v2617 = vunpack.c.l.b16 %v2572
    %v2618 = vunpack.c.h.b16 %v2572
    %v2619 = vunpack.c.l.b16 %v2573
    %v2620 = vunpack.c.h.b16 %v2573
    %v2621 = vunpack.c.l.b16 %v2574
    %v2622 = vunpack.c.h.b16 %v2574
    %v2623 = vunpack.c.l.b16 %v2575
    %v2624 = vunpack.c.h.b16 %v2575
    %v2625 = vunpack.c.l.b16 %v2576
    %v2626 = vunpack.c.h.b16 %v2576
    %v2627 = vunpack.c.l.b16 %v2577
    %v2628 = vunpack.c.h.b16 %v2577
    %v2629 = vunpack.c.l.b16 %v2578
    %v2630 = vunpack.c.h.b16 %v2578
    %v2631 = vunpack.c.l.b16 %v2579
    %v2632 = vunpack.c.h.b16 %v2579
    %v2633 = vunpack.c.l.b16 %v2580
    %v2634 = vunpack.c.h.b16 %v2580
    %v2635 = vunpack.c.l.b16 %v2581
    %v2636 = vunpack.c.h.b16 %v2581
    %v2637 = vunpack.c.l.b16 %v2582
    %v2638 = vunpack.c.h.b16 %v2582
    %v2639 = vunpack.c.l.b16 %v2583
    %v2640 = vunpack.c.h.b16 %v2583
    %v2641 = vunpack.c.l.b16 %v2584
    %v2642 = vunpack.c.h.b16 %v2584
    %v2643 = vunpack.c.l.b16 %v2585
    %v2644 = vunpack.c.h.b16 %v2585
    %v2645 = vunpack.c.l.b16 %v2586
    %v2646 = vunpack.c.h.b16 %v2586
    %v2647 = vunpack.c.l.b16 %v2587
    %v2648 = vunpack.c.h.b16 %v2587
    %v2649 = vpack.c.b16 %v2619, %v2617
    %v2650 = vpack.c.b16 %v2620, %v2618
    %v2651 = vpack.c.b16 %v2623, %v2621
    %v2652 = vpack.c.b16 %v2624, %v2622
    %v2653 = vpack.c.b16 %v2627, %v2625
    %v2654 = vpack.c.b16 %v2628, %v2626
    %v2655 = vpack.c.b16 %v2631, %v2629
    %v2656 = vpack.c.b16 %v2632, %v2630
    %v2657 = vpack.c.b16 %v2635, %v2633
    %v2658 = vpack.c.b16 %v2636, %v2634
    %v2659 = vpack.c.b16 %v2639, %v2637
    %v2660 = vpack.c.b16 %v2640, %v2638
    %v2661 = vpack.c.b16 %v2643, %v2641
    %v2662 = vpack.c.b16 %v2644, %v2642
    %v2663 = vpack.c.b16 %v2647, %v2645
    %v2664 = vpack.c.b16 %v2648, %v2646
    %2681 = vmatprep.subr.bf16.mxu0 %v2650
    %2682 = vmatpush1.bf16.msra.mxu0 %v2649
    %2683 = vmatprep.subr.bf16.mxu0 %v2652
    %2684 = vmatpush1.bf16.msra.mxu0 %v2651
    %2685 = vmatprep.subr.bf16.mxu0 %v2654
    %2686 = vmatpush1.bf16.msra.mxu0 %v2653
    %2687 = vmatprep.subr.bf16.mxu0 %v2656
    %2688 = vmatpush1.bf16.msra.mxu0 %v2655
    %2689 = vmatprep.subr.bf16.mxu0 %v2658
    %2690 = vmatpush1.bf16.msra.mxu0 %v2657
    %2691 = vmatprep.subr.bf16.mxu0 %v2660
    %2692 = vmatpush1.bf16.msra.mxu0 %v2659
    %2693 = vmatprep.subr.bf16.mxu0 %v2662
    %2694 = vmatpush1.bf16.msra.mxu0 %v2661
    %2695 = vmatprep.subr.bf16.mxu0 %v2664
    %2696 = vmatpush1.bf16.msra.mxu0 %v2663
    %2697 = vmatprep.subr.bf16.mxu0 0
    %2698 = vmatpush1.bf16.msra.mxu0 0
    %2699 = vmatprep.subr.bf16.mxu0 0
    %2700 = vmatpush1.bf16.msra.mxu0 0
    %2701 = vmatprep.subr.bf16.mxu0 0
    %2702 = vmatpush1.bf16.msra.mxu0 0
    %2703 = vmatprep.subr.bf16.mxu0 0
    %2704 = vmatpush1.bf16.msra.mxu0 0
    %2705 = vmatprep.subr.bf16.mxu0 0
    %2706 = vmatpush1.bf16.msra.mxu0 0
    %2707 = vmatprep.subr.bf16.mxu0 0
    %2708 = vmatpush1.bf16.msra.mxu0 0
    %2709 = vmatprep.subr.bf16.mxu0 0
    %2710 = vmatpush1.bf16.msra.mxu0 0
    %2711 = vmatprep.subr.bf16.mxu0 0
    %2712 = vmatpush1.bf16.msra.mxu0 0
    %2713 = vmatprep.mubr.bf16.mxu0 0
    %2714 = vmatmul.mubr.bf16.gmra.mrb[0].mxu0 %v2589
    %v2715 = vpop.f32.mrb[0].mxu0
    %v2716 = vadd.f32 %v2594, %v2715
    %v2717 = vpop.f32.mrb[0].mxu0
    %v2718 = vadd.f32 %v2598, %v2717
    %v2719 = vpop.f32.mrb[0].mxu0
    %v2720 = vadd.f32 %v2594, %v2719
    %v2721 = vpop.f32.mrb[0].mxu0
    %v2722 = vadd.f32 %v2598, %v2721
    %2723 = vdwg.mxu0
    %v2724 = vmul.f32 %v2716, %v2716
    %v2725 = vmul.f32 %v2718, %v2718
    %v2726 = vmul.f32 %v2720, %v2720
    %v2727 = vmul.f32 %v2722, %v2722
    %v2728 = vmul.f32 %v2716, %v2724
    %v2729 = vmul.f32 %v2718, %v2725
    %v2730 = vmul.f32 %v2720, %v2726
    %v2731 = vmul.f32 %v2722, %v2727
    %v2732 = vmul.f32 %v2728, 0.044715
    %v2733 = vmul.f32 %v2729, 0.044715
    %v2734 = vmul.f32 %v2730, 0.044715
    %v2735 = vmul.f32 %v2731, 0.044715
    %v2736 = vadd.f32 %v2716, %v2732
    %v2737 = vadd.f32 %v2718, %v2733
    %v2738 = vadd.f32 %v2720, %v2734
    %v2739 = vadd.f32 %v2722, %v2735
    %v2740 = vmul.f32 %v2736, 0.7978846
    %v2741 = vmul.f32 %v2737, 0.7978846
    %v2742 = vmul.f32 %v2738, 0.7978846
    %v2743 = vmul.f32 %v2739, 0.7978846
    %v2744 = vtanh.pop %v2740
    %v2745 = vtanh.pop %v2741
    %v2746 = vtanh.pop %v2742
    %v2747 = vtanh.pop %v2743
    %v2748 = vadd.f32 %v2744, 1.0
    %v2749 = vadd.f32 %v2745, 1.0
    %v2750 = vadd.f32 %v2746, 1.0
    %v2751 = vadd.f32 %v2747, 1.0
    %v2752 = vmul.f32 %v2748, 0.5
    %v2753 = vmul.f32 %v2749, 0.5
    %v2754 = vmul.f32 %v2750, 0.5
    %v2755 = vmul.f32 %v2751, 0.5
    %v2756 = vmul.f32 %v2716, %v2752
    %v2757 = vmul.f32 %v2718, %v2753
    %v2758 = vmul.f32 %v2720, %v2754
    %v2759 = vmul.f32 %v2722, %v2755
    %v2760 = vld [vmem:[#allocation16] sm:$0xf]
    %v2761 = vld [vmem:[#allocation16 + $0x4] sm:$0xf]
    %v2762 = vld [vmem:[#allocation16 + $0x8] sm:$0xf]
    %v2763 = vld [vmem:[#allocation16 + $0xc] sm:$0xf]
    %v2764 = vld [vmem:[#allocation16 + $0x10] sm:$0xf]
    %v2765 = vld [vmem:[#allocation16 + $0x14] sm:$0xf]
    %v2766 = vld [vmem:[#allocation16 + $0x18] sm:$0xf]
    %v2767 = vld [vmem:[#allocation16 + $0x1c] sm:$0xf]
    %v2768 = vld [vmem:[#allocation16 + $0x20] sm:$0xf]
    %v2769 = vld [vmem:[#allocation16 + $0x24] sm:$0xf]
    %v2770 = vld [vmem:[#allocation16 + $0x28] sm:$0xf]
    %v2771 = vld [vmem:[#allocation16 + $0x2c] sm:$0xf]
    %v2772 = vld [vmem:[#allocation16 + $0x30] sm:$0xf]
    %v2773 = vld [vmem:[#allocation16 + $0x34] sm:$0xf]
    %v2774 = vld [vmem:[#allocation16 + $0x38] sm:$0xf]
    %v2775 = vld [vmem:[#allocation16 + $0x3c] sm:$0xf]
    %v2776 = vld [vmem:[#allocation16 + $0x40] sm:$0xf]
    %v2777 = vld [vmem:[#allocation16 + $0x44] sm:$0xf]
    %v2778 = vld [vmem:[#allocation16 + $0x48] sm:$0xf]
    %v2779 = vld [vmem:[#allocation16 + $0x4c] sm:$0xf]
    %v2780 = vld [vmem:[#allocation16 + $0x50] sm:$0xf]
    %v2781 = vld [vmem:[#allocation16 + $0x54] sm:$0xf]
    %v2782 = vld [vmem:[#allocation16 + $0x58] sm:$0xf]
    %v2783 = vld [vmem:[#allocation16 + $0x5c] sm:$0xf]
    %v2784 = vld [vmem:[#allocation16 + $0x60] sm:$0xf]
    %v2785 = vld [vmem:[#allocation16 + $0x64] sm:$0xf]
    %v2786 = vld [vmem:[#allocation16 + $0x68] sm:$0xf]
    %v2787 = vld [vmem:[#allocation16 + $0x6c] sm:$0xf]
    %v2788 = vld [vmem:[#allocation16 + $0x70] sm:$0xf]
    %v2789 = vld [vmem:[#allocation16 + $0x74] sm:$0xf]
    %v2790 = vld [vmem:[#allocation16 + $0x78] sm:$0xf]
    %v2791 = vld [vmem:[#allocation16 + $0x7c] sm:$0xf]
    %v2792 = vld [vmem:[#allocation17] sm:$0x1]
    %v2793 = vpack.c.bf16 %v2758, %v2756
    %v2794 = vpack.c.bf16 %v2759, %v2757
    %v2796 = vlaneseq
    %v2797 = vshrl.u32 %v2796, 7
    %v2798 = vsub.s32 0, %v2797
    %v2799 = vrot.slane %v2792, %v2798
    %v2833 = vunpack.c.l.b16 %v2760
    %v2834 = vunpack.c.l.b16 %v2761
    %v2835 = vunpack.c.l.b16 %v2762
    %v2836 = vunpack.c.l.b16 %v2763
    %v2837 = vunpack.c.l.b16 %v2764
    %v2838 = vunpack.c.l.b16 %v2765
    %v2839 = vunpack.c.l.b16 %v2766
    %v2840 = vunpack.c.l.b16 %v2767
    %v2841 = vunpack.c.l.b16 %v2768
    %v2842 = vunpack.c.l.b16 %v2769
    %v2843 = vunpack.c.l.b16 %v2770
    %v2844 = vunpack.c.l.b16 %v2771
    %v2845 = vunpack.c.l.b16 %v2772
    %v2846 = vunpack.c.l.b16 %v2773
    %v2847 = vunpack.c.l.b16 %v2774
    %v2848 = vunpack.c.l.b16 %v2775
    %v2849 = vunpack.c.l.b16 %v2776
    %v2850 = vunpack.c.l.b16 %v2777
    %v2851 = vunpack.c.l.b16 %v2778
    %v2852 = vunpack.c.l.b16 %v2779
    %v2853 = vunpack.c.l.b16 %v2780
    %v2854 = vunpack.c.l.b16 %v2781
    %v2855 = vunpack.c.l.b16 %v2782
    %v2856 = vunpack.c.l.b16 %v2783
    %v2857 = vunpack.c.l.b16 %v2784
    %v2858 = vunpack.c.l.b16 %v2785
    %v2859 = vunpack.c.l.b16 %v2786
    %v2860 = vunpack.c.l.b16 %v2787
    %v2861 = vunpack.c.l.b16 %v2788
    %v2862 = vunpack.c.l.b16 %v2789
    %v2863 = vunpack.c.l.b16 %v2790
    %v2864 = vunpack.c.l.b16 %v2791
    %v2865 = vpack.c.b16 %v2834, %v2833
    %v2866 = vpack.c.b16 %v2836, %v2835
    %v2867 = vpack.c.b16 %v2838, %v2837
    %v2868 = vpack.c.b16 %v2840, %v2839
    %v2869 = vpack.c.b16 %v2842, %v2841
    %v2870 = vpack.c.b16 %v2844, %v2843
    %v2871 = vpack.c.b16 %v2846, %v2845
    %v2872 = vpack.c.b16 %v2848, %v2847
    %v2873 = vpack.c.b16 %v2850, %v2849
    %v2874 = vpack.c.b16 %v2852, %v2851
    %v2875 = vpack.c.b16 %v2854, %v2853
    %v2876 = vpack.c.b16 %v2856, %v2855
    %v2877 = vpack.c.b16 %v2858, %v2857
    %v2878 = vpack.c.b16 %v2860, %v2859
    %v2879 = vpack.c.b16 %v2862, %v2861
    %v2880 = vpack.c.b16 %v2864, %v2863
    %2897 = vmatprep.subr.bf16.mxu0 0
    %2898 = vmatpush1.bf16.msra.mxu0 %v2865
    %2899 = vmatprep.subr.bf16.mxu0 0
    %2900 = vmatpush1.bf16.msra.mxu0 %v2866
    %2901 = vmatprep.subr.bf16.mxu0 0
    %2902 = vmatpush1.bf16.msra.mxu0 %v2867
    %2903 = vmatprep.subr.bf16.mxu0 0
    %2904 = vmatpush1.bf16.msra.mxu0 %v2868
    %2905 = vmatprep.subr.bf16.mxu0 0
    %2906 = vmatpush1.bf16.msra.mxu0 %v2869
    %2907 = vmatprep.subr.bf16.mxu0 0
    %2908 = vmatpush1.bf16.msra.mxu0 %v2870
    %2909 = vmatprep.subr.bf16.mxu0 0
    %2910 = vmatpush1.bf16.msra.mxu0 %v2871
    %2911 = vmatprep.subr.bf16.mxu0 0
    %2912 = vmatpush1.bf16.msra.mxu0 %v2872
    %2913 = vmatprep.subr.bf16.mxu0 0
    %2914 = vmatpush1.bf16.msra.mxu0 %v2873
    %2915 = vmatprep.subr.bf16.mxu0 0
    %2916 = vmatpush1.bf16.msra.mxu0 %v2874
    %2917 = vmatprep.subr.bf16.mxu0 0
    %2918 = vmatpush1.bf16.msra.mxu0 %v2875
    %2919 = vmatprep.subr.bf16.mxu0 0
    %2920 = vmatpush1.bf16.msra.mxu0 %v2876
    %2921 = vmatprep.subr.bf16.mxu0 0
    %2922 = vmatpush1.bf16.msra.mxu0 %v2877
    %2923 = vmatprep.subr.bf16.mxu0 0
    %2924 = vmatpush1.bf16.msra.mxu0 %v2878
    %2925 = vmatprep.subr.bf16.mxu0 0
    %2926 = vmatpush1.bf16.msra.mxu0 %v2879
    %2927 = vmatprep.subr.bf16.mxu0 0
    %2928 = vmatpush1.bf16.msra.mxu0 %v2880
    %2929 = vmatprep.mubr.bf16.mxu0 %v2794
    %2930 = vmatmul.mubr.bf16.gmra.mrb[0].mxu0 %v2793
    %v2931 = vpop.f32.mrb[0].mxu0
    %v2932 = vadd.f32 %v2799, %v2931
    %v2933 = vpop.f32.mrb[0].mxu0
    %v2934 = vpop.f32.mrb[0].mxu0
    %v2935 = vadd.f32 %v2799, %v2934
    %v2936 = vpop.f32.mrb[0].mxu0
    %2937 = vdwg.mxu0
    %v2938 = vadd.f32 %v2570, %v2932
    %v2939 = vadd.f32 %v2571, %v2935
    %v2940 = vld [vmem:[%s16] sm:$0x1]
    %v2941 = vld [vmem:[%s17] sm:$0x1]
    %2942 = vadd.xlane.f32.xlu0 %v2938
    %v2943 = vpop.xlane.xlu0 %2942
    %2944 = vadd.xlane.f32.xlu0 %v2939
    %v2945 = vpop.xlane.xlu0 %2944
    %v2946 = vmul.f32 %v2943, %v334
    %v2947 = vmul.f32 %v2945, %v334
    %v2948 = vsub.f32 %v2938, %v2946
    %v2949 = vsub.f32 %v2939, %v2947
    %v2950 = vmul.f32 %v2948, %v2948
    %v2951 = vmul.f32 %v2949, %v2949
    %2952 = vadd.xlane.f32.xlu0 %v2950
    %v2953 = vpop.xlane.xlu0 %2952
    %2954 = vadd.xlane.f32.xlu0 %v2951
    %v2955 = vpop.xlane.xlu0 %2954
    %v2956 = vmul.f32 %v2953, %v334
    %v2957 = vmul.f32 %v2955, %v334
    %v2958 = vadd.f32 %v2956, 1e-12
    %v2959 = vadd.f32 %v2957, 1e-12
    %v2960 = vrsqrt.pop %v2958
    %v2961 = vrsqrt.pop %v2959
    %v2962 = vmul.f32 %v2948, %v2960
    %v2963 = vmul.f32 %v2949, %v2961
    %v2965 = vlaneseq
    %v2966 = vshrl.u32 %v2965, 7
    %v2967 = vsub.s32 0, %v2966
    %v2968 = vrot.slane %v2940, %v2967
    %v2970 = vmul.f32 %v2962, %v2968
    %v2971 = vmul.f32 %v2963, %v2968
    %v2973 = vlaneseq
    %v2974 = vshrl.u32 %v2973, 7
    %v2975 = vsub.s32 0, %v2974
    %v2976 = vrot.slane %v2941, %v2975
    %v2978 = vadd.f32 %v2970, %v2976
    %v2979 = vadd.f32 %v2971, %v2976
    %s2980 = scalar_lea.vmem [#allocation7], 192
    %v2981 = vld [vmem:[%s2980] sm:$0xff]
    %v2982 = vld [vmem:[%s2980 + $0x8] sm:$0xf]
    %v2983 = vld [vmem:[%s2980 + $0xc] sm:$0xff]
    %v2984 = vld [vmem:[%s2980 + $0x14] sm:$0xf]
    %v2985 = vld [vmem:[%s2980 + $0x18] sm:$0xff]
    %v2986 = vld [vmem:[%s2980 + $0x20] sm:$0xf]
    %v2987 = vld [vmem:[%s2980 + $0x24] sm:$0xff]
    %v2988 = vld [vmem:[%s2980 + $0x2c] sm:$0xf]
    %v2989 = vld [vmem:[%s2980 + $0x30] sm:$0xff]
    %v2990 = vld [vmem:[%s2980 + $0x38] sm:$0xf]
    %v2991 = vld [vmem:[%s2980 + $0x3c] sm:$0xff]
    %v2992 = vld [vmem:[%s2980 + $0x44] sm:$0xf]
    %v2993 = vld [vmem:[%s2980 + $0x48] sm:$0xff]
    %v2994 = vld [vmem:[%s2980 + $0x50] sm:$0xf]
    %v2995 = vld [vmem:[%s2980 + $0x54] sm:$0xff]
    %v2996 = vld [vmem:[%s2980 + $0x5c] sm:$0xf]
    %v2997 = vld [vmem:[%s2980 + $0x60] sm:$0xff]
    %v2998 = vld [vmem:[%s2980 + $0x68] sm:$0xf]
    %v2999 = vld [vmem:[%s2980 + $0x6c] sm:$0xff]
    %v3000 = vld [vmem:[%s2980 + $0x74] sm:$0xf]
    %v3001 = vld [vmem:[%s2980 + $0x78] sm:$0xff]
    %v3002 = vld [vmem:[%s2980 + $0x80] sm:$0xf]
    %v3003 = vld [vmem:[%s2980 + $0x84] sm:$0xff]
    %v3004 = vld [vmem:[%s2980 + $0x8c] sm:$0xf]
    %v3005 = vld [vmem:[%s2980 + $0x90] sm:$0xff]
    %v3006 = vld [vmem:[%s2980 + $0x98] sm:$0xf]
    %v3007 = vld [vmem:[%s2980 + $0x9c] sm:$0xff]
    %v3008 = vld [vmem:[%s2980 + $0xa4] sm:$0xf]
    %v3009 = vld [vmem:[%s2980 + $0xa8] sm:$0xff]
    %v3010 = vld [vmem:[%s2980 + $0xb0] sm:$0xf]
    %v3011 = vld [vmem:[%s2980 + $0xb4] sm:$0xff]
    %v3012 = vld [vmem:[%s2980 + $0xbc] sm:$0xf]
    %s3013 = scalar_lea.vmem [#allocation8], 3
    %v3014 = vld [vmem:[%s3013] sm:$0x7]
    %v3015 = vpack.c.bf16 %v2979, %v2978
    %v3017 = vlaneseq
    %v3018 = vshrl.u32 %v3017, 7
    %v3019 = vsub.s32 0, %v3018
    %v3020 = vrot.slane %v3014, %v3019
    %v3021 = vlaneseq
    %v3022 = vshrl.u32 %v3021, 7
    %v3023 = vsub.s32 1, %v3022
    %v3024 = vrot.slane %v3014, %v3023
    %v3025 = vlaneseq
    %v3026 = vshrl.u32 %v3025, 7
    %v3027 = vsub.s32 2, %v3026
    %v3028 = vrot.slane %v3014, %v3027
    %v3064 = vunpack.c.l.b16 %v2981
    %v3065 = vunpack.c.h.b16 %v2981
    %v3066 = vunpack.c.l.b16 %v2982
    %v3067 = vunpack.c.l.b16 %v2983
    %v3068 = vunpack.c.h.b16 %v2983
    %v3069 = vunpack.c.l.b16 %v2984
    %v3070 = vunpack.c.l.b16 %v2985
    %v3071 = vunpack.c.h.b16 %v2985
    %v3072 = vunpack.c.l.b16 %v2986
    %v3073 = vunpack.c.l.b16 %v2987
    %v3074 = vunpack.c.h.b16 %v2987
    %v3075 = vunpack.c.l.b16 %v2988
    %v3076 = vunpack.c.l.b16 %v2989
    %v3077 = vunpack.c.h.b16 %v2989
    %v3078 = vunpack.c.l.b16 %v2990
    %v3079 = vunpack.c.l.b16 %v2991
    %v3080 = vunpack.c.h.b16 %v2991
    %v3081 = vunpack.c.l.b16 %v2992
    %v3082 = vunpack.c.l.b16 %v2993
    %v3083 = vunpack.c.h.b16 %v2993
    %v3084 = vunpack.c.l.b16 %v2994
    %v3085 = vunpack.c.l.b16 %v2995
    %v3086 = vunpack.c.h.b16 %v2995
    %v3087 = vunpack.c.l.b16 %v2996
    %v3088 = vunpack.c.l.b16 %v2997
    %v3089 = vunpack.c.h.b16 %v2997
    %v3090 = vunpack.c.l.b16 %v2998
    %v3091 = vunpack.c.l.b16 %v2999
    %v3092 = vunpack.c.h.b16 %v2999
    %v3093 = vunpack.c.l.b16 %v3000
    %v3094 = vunpack.c.l.b16 %v3001
    %v3095 = vunpack.c.h.b16 %v3001
    %v3096 = vunpack.c.l.b16 %v3002
    %v3097 = vunpack.c.l.b16 %v3003
    %v3098 = vunpack.c.h.b16 %v3003
    %v3099 = vunpack.c.l.b16 %v3004
    %v3100 = vunpack.c.l.b16 %v3005
    %v3101 = vunpack.c.h.b16 %v3005
    %v3102 = vunpack.c.l.b16 %v3006
    %v3103 = vunpack.c.l.b16 %v3007
    %v3104 = vunpack.c.h.b16 %v3007
    %v3105 = vunpack.c.l.b16 %v3008
    %v3106 = vunpack.c.l.b16 %v3009
    %v3107 = vunpack.c.h.b16 %v3009
    %v3108 = vunpack.c.l.b16 %v3010
    %v3109 = vunpack.c.l.b16 %v3011
    %v3110 = vunpack.c.h.b16 %v3011
    %v3111 = vunpack.c.l.b16 %v3012
    %v3112 = vpack.c.b16 %v3067, %v3064
    %v3113 = vpack.c.b16 %v3068, %v3065
    %v3114 = vpack.c.b16 %v3069, %v3066
    %v3115 = vpack.c.b16 %v3073, %v3070
    %v3116 = vpack.c.b16 %v3074, %v3071
    %v3117 = vpack.c.b16 %v3075, %v3072
    %v3118 = vpack.c.b16 %v3079, %v3076
    %v3119 = vpack.c.b16 %v3080, %v3077
    %v3120 = vpack.c.b16 %v3081, %v3078
    %v3121 = vpack.c.b16 %v3085, %v3082
    %v3122 = vpack.c.b16 %v3086, %v3083
    %v3123 = vpack.c.b16 %v3087, %v3084
    %v3124 = vpack.c.b16 %v3091, %v3088
    %v3125 = vpack.c.b16 %v3092, %v3089
    %v3126 = vpack.c.b16 %v3093, %v3090
    %v3127 = vpack.c.b16 %v3097, %v3094
    %v3128 = vpack.c.b16 %v3098, %v3095
    %v3129 = vpack.c.b16 %v3099, %v3096
    %v3130 = vpack.c.b16 %v3103, %v3100
    %v3131 = vpack.c.b16 %v3104, %v3101
    %v3132 = vpack.c.b16 %v3105, %v3102
    %v3133 = vpack.c.b16 %v3109, %v3106
    %v3134 = vpack.c.b16 %v3110, %v3107
    %v3135 = vpack.c.b16 %v3111, %v3108
    %3160 = vmatprep.subr.bf16.mxu0 %v3113
    %3161 = vmatpush1.bf16.msra.mxu0 %v3112
    %3162 = vmatprep.subr.bf16.mxu0 %v3116
    %3163 = vmatpush1.bf16.msra.mxu0 %v3115
    %3164 = vmatprep.subr.bf16.mxu0 %v3119
    %3165 = vmatpush1.bf16.msra.mxu0 %v3118
    %3166 = vmatprep.subr.bf16.mxu0 %v3122
    %3167 = vmatpush1.bf16.msra.mxu0 %v3121
    %3168 = vmatprep.subr.bf16.mxu0 %v3125
    %3169 = vmatpush1.bf16.msra.mxu0 %v3124
    %3170 = vmatprep.subr.bf16.mxu0 %v3128
    %3171 = vmatpush1.bf16.msra.mxu0 %v3127
    %3172 = vmatprep.subr.bf16.mxu0 %v3131
    %3173 = vmatpush1.bf16.msra.mxu0 %v3130
    %3174 = vmatprep.subr.bf16.mxu0 %v3134
    %3175 = vmatpush1.bf16.msra.mxu0 %v3133
    %3176 = vmatprep.subr.bf16.mxu0 0
    %3177 = vmatpush1.bf16.msra.mxu0 0
    %3178 = vmatprep.subr.bf16.mxu0 0
    %3179 = vmatpush1.bf16.msra.mxu0 0
    %3180 = vmatprep.subr.bf16.mxu0 0
    %3181 = vmatpush1.bf16.msra.mxu0 0
    %3182 = vmatprep.subr.bf16.mxu0 0
    %3183 = vmatpush1.bf16.msra.mxu0 0
    %3184 = vmatprep.subr.bf16.mxu0 0
    %3185 = vmatpush1.bf16.msra.mxu0 0
    %3186 = vmatprep.subr.bf16.mxu0 0
    %3187 = vmatpush1.bf16.msra.mxu0 0
    %3188 = vmatprep.subr.bf16.mxu0 0
    %3189 = vmatpush1.bf16.msra.mxu0 0
    %3190 = vmatprep.subr.bf16.mxu0 0
    %3191 = vmatpush1.bf16.msra.mxu0 0
    %3192 = vmatprep.mubr.bf16.mxu0 0
    %3193 = vmatmul.mubr.bf16.gmra.mrb[0].mxu0 %v3015
    %v3194 = vpop.f32.mrb[0].mxu0
    %v3195 = vadd.f32 %v3020, %v3194
    %v3196 = vpop.f32.mrb[0].mxu0
    %v3197 = vadd.f32 %v3024, %v3196
    %v3198 = vpop.f32.mrb[0].mxu0
    %v3199 = vadd.f32 %v3020, %v3198
    %v3200 = vpop.f32.mrb[0].mxu0
    %v3201 = vadd.f32 %v3024, %v3200
    %3202 = vdwg.mxu0
    %3203 = vmatprep.subr.bf16.mxu0 0
    %3204 = vmatpush1.bf16.msra.mxu0 %v3114
    %3205 = vmatprep.subr.bf16.mxu0 0
    %3206 = vmatpush1.bf16.msra.mxu0 %v3117
    %3207 = vmatprep.subr.bf16.mxu0 0
    %3208 = vmatpush1.bf16.msra.mxu0 %v3120
    %3209 = vmatprep.subr.bf16.mxu0 0
    %3210 = vmatpush1.bf16.msra.mxu0 %v3123
    %3211 = vmatprep.subr.bf16.mxu0 0
    %3212 = vmatpush1.bf16.msra.mxu0 %v3126
    %3213 = vmatprep.subr.bf16.mxu0 0
    %3214 = vmatpush1.bf16.msra.mxu0 %v3129
    %3215 = vmatprep.subr.bf16.mxu0 0
    %3216 = vmatpush1.bf16.msra.mxu0 %v3132
    %3217 = vmatprep.subr.bf16.mxu0 0
    %3218 = vmatpush1.bf16.msra.mxu0 %v3135
    %3219 = vmatprep.subr.bf16.mxu0 0
    %3220 = vmatpush1.bf16.msra.mxu0 0
    %3221 = vmatprep.subr.bf16.mxu0 0
    %3222 = vmatpush1.bf16.msra.mxu0 0
    %3223 = vmatprep.subr.bf16.mxu0 0
    %3224 = vmatpush1.bf16.msra.mxu0 0
    %3225 = vmatprep.subr.bf16.mxu0 0
    %3226 = vmatpush1.bf16.msra.mxu0 0
    %3227 = vmatprep.subr.bf16.mxu0 0
    %3228 = vmatpush1.bf16.msra.mxu0 0
    %3229 = vmatprep.subr.bf16.mxu0 0
    %3230 = vmatpush1.bf16.msra.mxu0 0
    %3231 = vmatprep.subr.bf16.mxu0 0
    %3232 = vmatpush1.bf16.msra.mxu0 0
    %3233 = vmatprep.subr.bf16.mxu0 0
    %3234 = vmatpush1.bf16.msra.mxu0 0
    %3235 = vmatprep.mubr.bf16.mxu0 0
    %3236 = vmatmul.mubr.bf16.gmra.mrb[0].mxu0 %v3015
    %v3237 = vpop.f32.mrb[0].mxu0
    %v3238 = vadd.f32 %v3028, %v3237
    %v3239 = vpop.f32.mrb[0].mxu0
    %v3240 = vpop.f32.mrb[0].mxu0
    %v3241 = vadd.f32 %v3028, %v3240
    %v3242 = vpop.f32.mrb[0].mxu0
    %3243 = vdwg.mxu0
    %3246 = vrot.lane.b32.xlu0 %v3195, 96
    %v3247 = vpop.permute.xlu0 %3246
    %3248 = vrot.lane.b32.xlu0 %v3199, 96
    %v3249 = vpop.permute.xlu0 %3248
    %3252 = vrot.lane.b32.xlu0 %v3195, 64
    %v3253 = vpop.permute.xlu0 %3252
    %3254 = vrot.lane.b32.xlu0 %v3199, 64
    %v3255 = vpop.permute.xlu0 %3254
    %3258 = vrot.lane.b32.xlu0 %v3195, 32
    %v3259 = vpop.permute.xlu0 %3258
    %3260 = vrot.lane.b32.xlu0 %v3199, 32
    %v3261 = vpop.permute.xlu0 %3260
    %v3264 = vcombine.low %v3195, %v3253
    %v3265 = vcombine.high %v3195, %v3253
    %v3267 = vunpack.c.l.s4 1983009808
    %v3268 = vunpack.c.0.s8 %v3267
    %v3269 = vlaneseq
    %v3270 = vshrl.u32 %v3269, 7
    %v3271 = vsub.s32 %v3268, %v3270
    %v3272 = vrot.slane %v3264, %v3271
    %v3274 = vunpack.c.l.s4 1983009808
    %v3275 = vunpack.c.0.s8 %v3274
    %v3276 = vlaneseq
    %v3277 = vshrl.u32 %v3276, 7
    %v3278 = vsub.s32 %v3275, %v3277
    %v3279 = vrot.slane %v3265, %v3278
    %v3280 = vcombine.low %v3247, %v3259
    %v3281 = vcombine.high %v3247, %v3259
    %v3283 = vunpack.c.l.s4 1983009808
    %v3284 = vunpack.c.0.s8 %v3283
    %v3285 = vlaneseq
    %v3286 = vshrl.u32 %v3285, 7
    %v3287 = vsub.s32 %v3284, %v3286
    %v3288 = vrot.slane %v3280, %v3287
    %v3290 = vunpack.c.l.s4 1983009808
    %v3291 = vunpack.c.0.s8 %v3290
    %v3292 = vlaneseq
    %v3293 = vshrl.u32 %v3292, 7
    %v3294 = vsub.s32 %v3291, %v3293
    %v3295 = vrot.slane %v3281, %v3294
    %v3296 = vcombine.low %v3272, %v3288
    %v3297 = vcombine.high %v3272, %v3288
    %v3299 = vunpack.c.l.s4 1934713408
    %v3300 = vunpack.c.0.s8 %v3299
    %v3301 = vlaneseq
    %v3302 = vshrl.u32 %v3301, 7
    %v3303 = vsub.s32 %v3300, %v3302
    %v3304 = vrot.slane %v3296, %v3303
    %v3306 = vunpack.c.l.s4 1934713408
    %v3307 = vunpack.c.0.s8 %v3306
    %v3308 = vlaneseq
    %v3309 = vshrl.u32 %v3308, 7
    %v3310 = vsub.s32 %v3307, %v3309
    %v3311 = vrot.slane %v3297, %v3310
    %v3312 = vcombine.low %v3279, %v3295
    %v3313 = vcombine.high %v3279, %v3295
    %v3315 = vunpack.c.l.s4 1934713408
    %v3316 = vunpack.c.0.s8 %v3315
    %v3317 = vlaneseq
    %v3318 = vshrl.u32 %v3317, 7
    %v3319 = vsub.s32 %v3316, %v3318
    %v3320 = vrot.slane %v3312, %v3319
    %v3322 = vunpack.c.l.s4 1934713408
    %v3323 = vunpack.c.0.s8 %v3322
    %v3324 = vlaneseq
    %v3325 = vshrl.u32 %v3324, 7
    %v3326 = vsub.s32 %v3323, %v3325
    %v3327 = vrot.slane %v3313, %v3326
    %v3328 = vcombine.high %v3304, 0.0
    %v3329 = vcombine.high %v3311, 0.0
    %v3330 = vcombine.high %v3320, 0.0
    %v3331 = vcombine.high %v3327, 0.0
    %v3332 = vcombine.low %v3199, %v3255
    %v3333 = vcombine.high %v3199, %v3255
    %v3335 = vunpack.c.l.s4 1983009808
    %v3336 = vunpack.c.0.s8 %v3335
    %v3337 = vlaneseq
    %v3338 = vshrl.u32 %v3337, 7
    %v3339 = vsub.s32 %v3336, %v3338
    %v3340 = vrot.slane %v3332, %v3339
    %v3342 = vunpack.c.l.s4 1983009808
    %v3343 = vunpack.c.0.s8 %v3342
    %v3344 = vlaneseq
    %v3345 = vshrl.u32 %v3344, 7
    %v3346 = vsub.s32 %v3343, %v3345
    %v3347 = vrot.slane %v3333, %v3346
    %v3348 = vcombine.low %v3249, %v3261
    %v3349 = vcombine.high %v3249, %v3261
    %v3351 = vunpack.c.l.s4 1983009808
    %v3352 = vunpack.c.0.s8 %v3351
    %v3353 = vlaneseq
    %v3354 = vshrl.u32 %v3353, 7
    %v3355 = vsub.s32 %v3352, %v3354
    %v3356 = vrot.slane %v3348, %v3355
    %v3358 = vunpack.c.l.s4 1983009808
    %v3359 = vunpack.c.0.s8 %v3358
    %v3360 = vlaneseq
    %v3361 = vshrl.u32 %v3360, 7
    %v3362 = vsub.s32 %v3359, %v3361
    %v3363 = vrot.slane %v3349, %v3362
    %v3364 = vcombine.low %v3340, %v3356
    %v3365 = vcombine.high %v3340, %v3356
    %v3367 = vunpack.c.l.s4 1934713408
    %v3368 = vunpack.c.0.s8 %v3367
    %v3369 = vlaneseq
    %v3370 = vshrl.u32 %v3369, 7
    %v3371 = vsub.s32 %v3368, %v3370
    %v3372 = vrot.slane %v3364, %v3371
    %v3374 = vunpack.c.l.s4 1934713408
    %v3375 = vunpack.c.0.s8 %v3374
    %v3376 = vlaneseq
    %v3377 = vshrl.u32 %v3376, 7
    %v3378 = vsub.s32 %v3375, %v3377
    %v3379 = vrot.slane %v3365, %v3378
    %v3380 = vcombine.low %v3347, %v3363
    %v3381 = vcombine.high %v3347, %v3363
    %v3383 = vunpack.c.l.s4 1934713408
    %v3384 = vunpack.c.0.s8 %v3383
    %v3385 = vlaneseq
    %v3386 = vshrl.u32 %v3385, 7
    %v3387 = vsub.s32 %v3384, %v3386
    %v3388 = vrot.slane %v3380, %v3387
    %v3390 = vunpack.c.l.s4 1934713408
    %v3391 = vunpack.c.0.s8 %v3390
    %v3392 = vlaneseq
    %v3393 = vshrl.u32 %v3392, 7
    %v3394 = vsub.s32 %v3391, %v3393
    %v3395 = vrot.slane %v3381, %v3394
    %v3396 = vcombine.high %v3372, 0.0
    %v3397 = vcombine.high %v3379, 0.0
    %v3398 = vcombine.high %v3388, 0.0
    %v3399 = vcombine.high %v3395, 0.0
    %3402 = vrot.lane.b32.xlu0 %v3197, 96
    %v3403 = vpop.permute.xlu0 %3402
    %3404 = vrot.lane.b32.xlu0 %v3201, 96
    %v3405 = vpop.permute.xlu0 %3404
    %3408 = vrot.lane.b32.xlu0 %v3197, 64
    %v3409 = vpop.permute.xlu0 %3408
    %3410 = vrot.lane.b32.xlu0 %v3201, 64
    %v3411 = vpop.permute.xlu0 %3410
    %3414 = vrot.lane.b32.xlu0 %v3197, 32
    %v3415 = vpop.permute.xlu0 %3414
    %3416 = vrot.lane.b32.xlu0 %v3201, 32
    %v3417 = vpop.permute.xlu0 %3416
    %v3420 = vcombine.low %v3197, %v3409
    %v3421 = vcombine.high %v3197, %v3409
    %v3423 = vunpack.c.l.s4 1983009808
    %v3424 = vunpack.c.0.s8 %v3423
    %v3425 = vlaneseq
    %v3426 = vshrl.u32 %v3425, 7
    %v3427 = vsub.s32 %v3424, %v3426
    %v3428 = vrot.slane %v3420, %v3427
    %v3430 = vunpack.c.l.s4 1983009808
    %v3431 = vunpack.c.0.s8 %v3430
    %v3432 = vlaneseq
    %v3433 = vshrl.u32 %v3432, 7
    %v3434 = vsub.s32 %v3431, %v3433
    %v3435 = vrot.slane %v3421, %v3434
    %v3436 = vcombine.low %v3403, %v3415
    %v3437 = vcombine.high %v3403, %v3415
    %v3439 = vunpack.c.l.s4 1983009808
    %v3440 = vunpack.c.0.s8 %v3439
    %v3441 = vlaneseq
    %v3442 = vshrl.u32 %v3441, 7
    %v3443 = vsub.s32 %v3440, %v3442
    %v3444 = vrot.slane %v3436, %v3443
    %v3446 = vunpack.c.l.s4 1983009808
    %v3447 = vunpack.c.0.s8 %v3446
    %v3448 = vlaneseq
    %v3449 = vshrl.u32 %v3448, 7
    %v3450 = vsub.s32 %v3447, %v3449
    %v3451 = vrot.slane %v3437, %v3450
    %v3452 = vcombine.low %v3428, %v3444
    %v3453 = vcombine.high %v3428, %v3444
    %v3455 = vunpack.c.l.s4 1934713408
    %v3456 = vunpack.c.0.s8 %v3455
    %v3457 = vlaneseq
    %v3458 = vshrl.u32 %v3457, 7
    %v3459 = vsub.s32 %v3456, %v3458
    %v3460 = vrot.slane %v3452, %v3459
    %v3462 = vunpack.c.l.s4 1934713408
    %v3463 = vunpack.c.0.s8 %v3462
    %v3464 = vlaneseq
    %v3465 = vshrl.u32 %v3464, 7
    %v3466 = vsub.s32 %v3463, %v3465
    %v3467 = vrot.slane %v3453, %v3466
    %v3468 = vcombine.low %v3435, %v3451
    %v3469 = vcombine.high %v3435, %v3451
    %v3471 = vunpack.c.l.s4 1934713408
    %v3472 = vunpack.c.0.s8 %v3471
    %v3473 = vlaneseq
    %v3474 = vshrl.u32 %v3473, 7
    %v3475 = vsub.s32 %v3472, %v3474
    %v3476 = vrot.slane %v3468, %v3475
    %v3478 = vunpack.c.l.s4 1934713408
    %v3479 = vunpack.c.0.s8 %v3478
    %v3480 = vlaneseq
    %v3481 = vshrl.u32 %v3480, 7
    %v3482 = vsub.s32 %v3479, %v3481
    %v3483 = vrot.slane %v3469, %v3482
    %v3484 = vcombine.high %v3460, 0.0
    %v3485 = vcombine.high %v3467, 0.0
    %v3486 = vcombine.high %v3476, 0.0
    %v3487 = vcombine.high %v3483, 0.0
    %v3488 = vcombine.low %v3201, %v3411
    %v3489 = vcombine.high %v3201, %v3411
    %v3491 = vunpack.c.l.s4 1983009808
    %v3492 = vunpack.c.0.s8 %v3491
    %v3493 = vlaneseq
    %v3494 = vshrl.u32 %v3493, 7
    %v3495 = vsub.s32 %v3492, %v3494
    %v3496 = vrot.slane %v3488, %v3495
    %v3498 = vunpack.c.l.s4 1983009808
    %v3499 = vunpack.c.0.s8 %v3498
    %v3500 = vlaneseq
    %v3501 = vshrl.u32 %v3500, 7
    %v3502 = vsub.s32 %v3499, %v3501
    %v3503 = vrot.slane %v3489, %v3502
    %v3504 = vcombine.low %v3405, %v3417
    %v3505 = vcombine.high %v3405, %v3417
    %v3507 = vunpack.c.l.s4 1983009808
    %v3508 = vunpack.c.0.s8 %v3507
    %v3509 = vlaneseq
    %v3510 = vshrl.u32 %v3509, 7
    %v3511 = vsub.s32 %v3508, %v3510
    %v3512 = vrot.slane %v3504, %v3511
    %v3514 = vunpack.c.l.s4 1983009808
    %v3515 = vunpack.c.0.s8 %v3514
    %v3516 = vlaneseq
    %v3517 = vshrl.u32 %v3516, 7
    %v3518 = vsub.s32 %v3515, %v3517
    %v3519 = vrot.slane %v3505, %v3518
    %v3520 = vcombine.low %v3496, %v3512
    %v3521 = vcombine.high %v3496, %v3512
    %v3523 = vunpack.c.l.s4 1934713408
    %v3524 = vunpack.c.0.s8 %v3523
    %v3525 = vlaneseq
    %v3526 = vshrl.u32 %v3525, 7
    %v3527 = vsub.s32 %v3524, %v3526
    %v3528 = vrot.slane %v3520, %v3527
    %v3530 = vunpack.c.l.s4 1934713408
    %v3531 = vunpack.c.0.s8 %v3530
    %v3532 = vlaneseq
    %v3533 = vshrl.u32 %v3532, 7
    %v3534 = vsub.s32 %v3531, %v3533
    %v3535 = vrot.slane %v3521, %v3534
    %v3536 = vcombine.low %v3503, %v3519
    %v3537 = vcombine.high %v3503, %v3519
    %v3539 = vunpack.c.l.s4 1934713408
    %v3540 = vunpack.c.0.s8 %v3539
    %v3541 = vlaneseq
    %v3542 = vshrl.u32 %v3541, 7
    %v3543 = vsub.s32 %v3540, %v3542
    %v3544 = vrot.slane %v3536, %v3543
    %v3546 = vunpack.c.l.s4 1934713408
    %v3547 = vunpack.c.0.s8 %v3546
    %v3548 = vlaneseq
    %v3549 = vshrl.u32 %v3548, 7
    %v3550 = vsub.s32 %v3547, %v3549
    %v3551 = vrot.slane %v3537, %v3550
    %v3552 = vcombine.high %v3528, 0.0
    %v3553 = vcombine.high %v3535, 0.0
    %v3554 = vcombine.high %v3544, 0.0
    %v3555 = vcombine.high %v3551, 0.0
    %3558 = vrot.lane.b32.xlu0 %v3238, 96
    %v3559 = vpop.permute.xlu0 %3558
    %3560 = vrot.lane.b32.xlu0 %v3241, 96
    %v3561 = vpop.permute.xlu0 %3560
    %3564 = vrot.lane.b32.xlu0 %v3238, 64
    %v3565 = vpop.permute.xlu0 %3564
    %3566 = vrot.lane.b32.xlu0 %v3241, 64
    %v3567 = vpop.permute.xlu0 %3566
    %3570 = vrot.lane.b32.xlu0 %v3238, 32
    %v3571 = vpop.permute.xlu0 %3570
    %3572 = vrot.lane.b32.xlu0 %v3241, 32
    %v3573 = vpop.permute.xlu0 %3572
    %v3576 = vcombine.low %v3238, %v3565
    %v3577 = vcombine.high %v3238, %v3565
    %v3579 = vunpack.c.l.s4 1983009808
    %v3580 = vunpack.c.0.s8 %v3579
    %v3581 = vlaneseq
    %v3582 = vshrl.u32 %v3581, 7
    %v3583 = vsub.s32 %v3580, %v3582
    %v3584 = vrot.slane %v3576, %v3583
    %v3586 = vunpack.c.l.s4 1983009808
    %v3587 = vunpack.c.0.s8 %v3586
    %v3588 = vlaneseq
    %v3589 = vshrl.u32 %v3588, 7
    %v3590 = vsub.s32 %v3587, %v3589
    %v3591 = vrot.slane %v3577, %v3590
    %v3592 = vcombine.low %v3559, %v3571
    %v3593 = vcombine.high %v3559, %v3571
    %v3595 = vunpack.c.l.s4 1983009808
    %v3596 = vunpack.c.0.s8 %v3595
    %v3597 = vlaneseq
    %v3598 = vshrl.u32 %v3597, 7
    %v3599 = vsub.s32 %v3596, %v3598
    %v3600 = vrot.slane %v3592, %v3599
    %v3602 = vunpack.c.l.s4 1983009808
    %v3603 = vunpack.c.0.s8 %v3602
    %v3604 = vlaneseq
    %v3605 = vshrl.u32 %v3604, 7
    %v3606 = vsub.s32 %v3603, %v3605
    %v3607 = vrot.slane %v3593, %v3606
    %v3608 = vcombine.low %v3584, %v3600
    %v3609 = vcombine.high %v3584, %v3600
    %v3611 = vunpack.c.l.s4 1934713408
    %v3612 = vunpack.c.0.s8 %v3611
    %v3613 = vlaneseq
    %v3614 = vshrl.u32 %v3613, 7
    %v3615 = vsub.s32 %v3612, %v3614
    %v3616 = vrot.slane %v3608, %v3615
    %v3618 = vunpack.c.l.s4 1934713408
    %v3619 = vunpack.c.0.s8 %v3618
    %v3620 = vlaneseq
    %v3621 = vshrl.u32 %v3620, 7
    %v3622 = vsub.s32 %v3619, %v3621
    %v3623 = vrot.slane %v3609, %v3622
    %v3624 = vcombine.low %v3591, %v3607
    %v3625 = vcombine.high %v3591, %v3607
    %v3627 = vunpack.c.l.s4 1934713408
    %v3628 = vunpack.c.0.s8 %v3627
    %v3629 = vlaneseq
    %v3630 = vshrl.u32 %v3629, 7
    %v3631 = vsub.s32 %v3628, %v3630
    %v3632 = vrot.slane %v3624, %v3631
    %v3634 = vunpack.c.l.s4 1934713408
    %v3635 = vunpack.c.0.s8 %v3634
    %v3636 = vlaneseq
    %v3637 = vshrl.u32 %v3636, 7
    %v3638 = vsub.s32 %v3635, %v3637
    %v3639 = vrot.slane %v3625, %v3638
    %v3640 = vcombine.high %v3616, 0.0
    %v3641 = vcombine.high %v3623, 0.0
    %v3642 = vcombine.high %v3632, 0.0
    %v3643 = vcombine.high %v3639, 0.0
    %v3644 = vcombine.low %v3241, %v3567
    %v3645 = vcombine.high %v3241, %v3567
    %v3647 = vunpack.c.l.s4 1983009808
    %v3648 = vunpack.c.0.s8 %v3647
    %v3649 = vlaneseq
    %v3650 = vshrl.u32 %v3649, 7
    %v3651 = vsub.s32 %v3648, %v3650
    %v3652 = vrot.slane %v3644, %v3651
    %v3654 = vunpack.c.l.s4 1983009808
    %v3655 = vunpack.c.0.s8 %v3654
    %v3656 = vlaneseq
    %v3657 = vshrl.u32 %v3656, 7
    %v3658 = vsub.s32 %v3655, %v3657
    %v3659 = vrot.slane %v3645, %v3658
    %v3660 = vcombine.low %v3561, %v3573
    %v3661 = vcombine.high %v3561, %v3573
    %v3663 = vunpack.c.l.s4 1983009808
    %v3664 = vunpack.c.0.s8 %v3663
    %v3665 = vlaneseq
    %v3666 = vshrl.u32 %v3665, 7
    %v3667 = vsub.s32 %v3664, %v3666
    %v3668 = vrot.slane %v3660, %v3667
    %v3670 = vunpack.c.l.s4 1983009808
    %v3671 = vunpack.c.0.s8 %v3670
    %v3672 = vlaneseq
    %v3673 = vshrl.u32 %v3672, 7
    %v3674 = vsub.s32 %v3671, %v3673
    %v3675 = vrot.slane %v3661, %v3674
    %v3676 = vcombine.low %v3652, %v3668
    %v3677 = vcombine.high %v3652, %v3668
    %v3679 = vunpack.c.l.s4 1934713408
    %v3680 = vunpack.c.0.s8 %v3679
    %v3681 = vlaneseq
    %v3682 = vshrl.u32 %v3681, 7
    %v3683 = vsub.s32 %v3680, %v3682
    %v3684 = vrot.slane %v3676, %v3683
    %v3686 = vunpack.c.l.s4 1934713408
    %v3687 = vunpack.c.0.s8 %v3686
    %v3688 = vlaneseq
    %v3689 = vshrl.u32 %v3688, 7
    %v3690 = vsub.s32 %v3687, %v3689
    %v3691 = vrot.slane %v3677, %v3690
    %v3692 = vcombine.low %v3659, %v3675
    %v3693 = vcombine.high %v3659, %v3675
    %v3695 = vunpack.c.l.s4 1934713408
    %v3696 = vunpack.c.0.s8 %v3695
    %v3697 = vlaneseq
    %v3698 = vshrl.u32 %v3697, 7
    %v3699 = vsub.s32 %v3696, %v3698
    %v3700 = vrot.slane %v3692, %v3699
    %v3702 = vunpack.c.l.s4 1934713408
    %v3703 = vunpack.c.0.s8 %v3702
    %v3704 = vlaneseq
    %v3705 = vshrl.u32 %v3704, 7
    %v3706 = vsub.s32 %v3703, %v3705
    %v3707 = vrot.slane %v3693, %v3706
    %v3708 = vcombine.high %v3684, 0.0
    %v3709 = vcombine.high %v3691, 0.0
    %v3710 = vcombine.high %v3700, 0.0
    %v3711 = vcombine.high %v3707, 0.0
    %v3712 = vcombine.low %v3304, %v3311
    %v3714 = vunpack.c.l.s4 1983009808
    %v3715 = vunpack.c.0.s8 %v3714
    %v3716 = vlaneseq
    %v3717 = vshrl.u32 %v3716, 7
    %v3718 = vsub.s32 %v3715, %v3717
    %v3719 = vrot.slane %v3712, %v3718
    %v3720 = vcombine.low %v3328, %v3329
    %v3722 = vunpack.c.l.s4 1983009808
    %v3723 = vunpack.c.0.s8 %v3722
    %v3724 = vlaneseq
    %v3725 = vshrl.u32 %v3724, 7
    %v3726 = vsub.s32 %v3723, %v3725
    %v3727 = vrot.slane %v3720, %v3726
    %v3728 = vcombine.low %v3320, %v3327
    %v3730 = vunpack.c.l.s4 1983009808
    %v3731 = vunpack.c.0.s8 %v3730
    %v3732 = vlaneseq
    %v3733 = vshrl.u32 %v3732, 7
    %v3734 = vsub.s32 %v3731, %v3733
    %v3735 = vrot.slane %v3728, %v3734
    %v3736 = vcombine.low %v3330, %v3331
    %v3738 = vunpack.c.l.s4 1983009808
    %v3739 = vunpack.c.0.s8 %v3738
    %v3740 = vlaneseq
    %v3741 = vshrl.u32 %v3740, 7
    %v3742 = vsub.s32 %v3739, %v3741
    %v3743 = vrot.slane %v3736, %v3742
    %v3744 = vcombine.low %v3719, %v3727
    %v3745 = vcombine.high %v3719, %v3727
    %v3747 = vunpack.c.l.s4 1934713408
    %v3748 = vunpack.c.0.s8 %v3747
    %v3749 = vlaneseq
    %v3750 = vshrl.u32 %v3749, 7
    %v3751 = vsub.s32 %v3748, %v3750
    %v3752 = vrot.slane %v3744, %v3751
    %v3754 = vunpack.c.l.s4 1934713408
    %v3755 = vunpack.c.0.s8 %v3754
    %v3756 = vlaneseq
    %v3757 = vshrl.u32 %v3756, 7
    %v3758 = vsub.s32 %v3755, %v3757
    %v3759 = vrot.slane %v3745, %v3758
    %v3760 = vcombine.low %v3735, %v3743
    %v3761 = vcombine.high %v3735, %v3743
    %v3763 = vunpack.c.l.s4 1934713408
    %v3764 = vunpack.c.0.s8 %v3763
    %v3765 = vlaneseq
    %v3766 = vshrl.u32 %v3765, 7
    %v3767 = vsub.s32 %v3764, %v3766
    %v3768 = vrot.slane %v3760, %v3767
    %v3770 = vunpack.c.l.s4 1934713408
    %v3771 = vunpack.c.0.s8 %v3770
    %v3772 = vlaneseq
    %v3773 = vshrl.u32 %v3772, 7
    %v3774 = vsub.s32 %v3771, %v3773
    %v3775 = vrot.slane %v3761, %v3774
    %v3776 = vcombine.low %v3752, %v3768
    %v3777 = vcombine.high %v3752, %v3768
    %v3778 = vcombine.low %v3759, %v3775
    %v3779 = vcombine.high %v3759, %v3775
    %v3780 = vcombine.low %v3372, %v3379
    %v3782 = vunpack.c.l.s4 1983009808
    %v3783 = vunpack.c.0.s8 %v3782
    %v3784 = vlaneseq
    %v3785 = vshrl.u32 %v3784, 7
    %v3786 = vsub.s32 %v3783, %v3785
    %v3787 = vrot.slane %v3780, %v3786
    %v3788 = vcombine.low %v3396, %v3397
    %v3790 = vunpack.c.l.s4 1983009808
    %v3791 = vunpack.c.0.s8 %v3790
    %v3792 = vlaneseq
    %v3793 = vshrl.u32 %v3792, 7
    %v3794 = vsub.s32 %v3791, %v3793
    %v3795 = vrot.slane %v3788, %v3794
    %v3796 = vcombine.low %v3388, %v3395
    %v3798 = vunpack.c.l.s4 1983009808
    %v3799 = vunpack.c.0.s8 %v3798
    %v3800 = vlaneseq
    %v3801 = vshrl.u32 %v3800, 7
    %v3802 = vsub.s32 %v3799, %v3801
    %v3803 = vrot.slane %v3796, %v3802
    %v3804 = vcombine.low %v3398, %v3399
    %v3806 = vunpack.c.l.s4 1983009808
    %v3807 = vunpack.c.0.s8 %v3806
    %v3808 = vlaneseq
    %v3809 = vshrl.u32 %v3808, 7
    %v3810 = vsub.s32 %v3807, %v3809
    %v3811 = vrot.slane %v3804, %v3810
    %v3812 = vcombine.low %v3787, %v3795
    %v3813 = vcombine.high %v3787, %v3795
    %v3815 = vunpack.c.l.s4 1934713408
    %v3816 = vunpack.c.0.s8 %v3815
    %v3817 = vlaneseq
    %v3818 = vshrl.u32 %v3817, 7
    %v3819 = vsub.s32 %v3816, %v3818
    %v3820 = vrot.slane %v3812, %v3819
    %v3822 = vunpack.c.l.s4 1934713408
    %v3823 = vunpack.c.0.s8 %v3822
    %v3824 = vlaneseq
    %v3825 = vshrl.u32 %v3824, 7
    %v3826 = vsub.s32 %v3823, %v3825
    %v3827 = vrot.slane %v3813, %v3826
    %v3828 = vcombine.low %v3803, %v3811
    %v3829 = vcombine.high %v3803, %v3811
    %v3831 = vunpack.c.l.s4 1934713408
    %v3832 = vunpack.c.0.s8 %v3831
    %v3833 = vlaneseq
    %v3834 = vshrl.u32 %v3833, 7
    %v3835 = vsub.s32 %v3832, %v3834
    %v3836 = vrot.slane %v3828, %v3835
    %v3838 = vunpack.c.l.s4 1934713408
    %v3839 = vunpack.c.0.s8 %v3838
    %v3840 = vlaneseq
    %v3841 = vshrl.u32 %v3840, 7
    %v3842 = vsub.s32 %v3839, %v3841
    %v3843 = vrot.slane %v3829, %v3842
    %v3844 = vcombine.low %v3820, %v3836
    %v3845 = vcombine.high %v3820, %v3836
    %v3846 = vcombine.low %v3827, %v3843
    %v3847 = vcombine.high %v3827, %v3843
    %v3848 = vpack.c.bf16 %v3844, %v3776
    %v3849 = vpack.c.bf16 %v3845, %v3777
    %v3850 = vpack.c.bf16 %v3846, %v3778
    %v3851 = vpack.c.bf16 %v3847, %v3779
    %v3852 = vcombine.low %v3460, %v3467
    %v3854 = vunpack.c.l.s4 1983009808
    %v3855 = vunpack.c.0.s8 %v3854
    %v3856 = vlaneseq
    %v3857 = vshrl.u32 %v3856, 7
    %v3858 = vsub.s32 %v3855, %v3857
    %v3859 = vrot.slane %v3852, %v3858
    %v3860 = vcombine.low %v3484, %v3485
    %v3862 = vunpack.c.l.s4 1983009808
    %v3863 = vunpack.c.0.s8 %v3862
    %v3864 = vlaneseq
    %v3865 = vshrl.u32 %v3864, 7
    %v3866 = vsub.s32 %v3863, %v3865
    %v3867 = vrot.slane %v3860, %v3866
    %v3868 = vcombine.low %v3476, %v3483
    %v3870 = vunpack.c.l.s4 1983009808
    %v3871 = vunpack.c.0.s8 %v3870
    %v3872 = vlaneseq
    %v3873 = vshrl.u32 %v3872, 7
    %v3874 = vsub.s32 %v3871, %v3873
    %v3875 = vrot.slane %v3868, %v3874
    %v3876 = vcombine.low %v3486, %v3487
    %v3878 = vunpack.c.l.s4 1983009808
    %v3879 = vunpack.c.0.s8 %v3878
    %v3880 = vlaneseq
    %v3881 = vshrl.u32 %v3880, 7
    %v3882 = vsub.s32 %v3879, %v3881
    %v3883 = vrot.slane %v3876, %v3882
    %v3884 = vcombine.low %v3859, %v3867
    %v3885 = vcombine.high %v3859, %v3867
    %v3887 = vunpack.c.l.s4 1934713408
    %v3888 = vunpack.c.0.s8 %v3887
    %v3889 = vlaneseq
    %v3890 = vshrl.u32 %v3889, 7
    %v3891 = vsub.s32 %v3888, %v3890
    %v3892 = vrot.slane %v3884, %v3891
    %v3894 = vunpack.c.l.s4 1934713408
    %v3895 = vunpack.c.0.s8 %v3894
    %v3896 = vlaneseq
    %v3897 = vshrl.u32 %v3896, 7
    %v3898 = vsub.s32 %v3895, %v3897
    %v3899 = vrot.slane %v3885, %v3898
    %v3900 = vcombine.low %v3875, %v3883
    %v3901 = vcombine.high %v3875, %v3883
    %v3903 = vunpack.c.l.s4 1934713408
    %v3904 = vunpack.c.0.s8 %v3903
    %v3905 = vlaneseq
    %v3906 = vshrl.u32 %v3905, 7
    %v3907 = vsub.s32 %v3904, %v3906
    %v3908 = vrot.slane %v3900, %v3907
    %v3910 = vunpack.c.l.s4 1934713408
    %v3911 = vunpack.c.0.s8 %v3910
    %v3912 = vlaneseq
    %v3913 = vshrl.u32 %v3912, 7
    %v3914 = vsub.s32 %v3911, %v3913
    %v3915 = vrot.slane %v3901, %v3914
    %v3916 = vcombine.low %v3892, %v3908
    %v3917 = vcombine.high %v3892, %v3908
    %v3918 = vcombine.low %v3899, %v3915
    %v3919 = vcombine.high %v3899, %v3915
    %v3920 = vcombine.low %v3528, %v3535
    %v3922 = vunpack.c.l.s4 1983009808
    %v3923 = vunpack.c.0.s8 %v3922
    %v3924 = vlaneseq
    %v3925 = vshrl.u32 %v3924, 7
    %v3926 = vsub.s32 %v3923, %v3925
    %v3927 = vrot.slane %v3920, %v3926
    %v3928 = vcombine.low %v3552, %v3553
    %v3930 = vunpack.c.l.s4 1983009808
    %v3931 = vunpack.c.0.s8 %v3930
    %v3932 = vlaneseq
    %v3933 = vshrl.u32 %v3932, 7
    %v3934 = vsub.s32 %v3931, %v3933
    %v3935 = vrot.slane %v3928, %v3934
    %v3936 = vcombine.low %v3544, %v3551
    %v3938 = vunpack.c.l.s4 1983009808
    %v3939 = vunpack.c.0.s8 %v3938
    %v3940 = vlaneseq
    %v3941 = vshrl.u32 %v3940, 7
    %v3942 = vsub.s32 %v3939, %v3941
    %v3943 = vrot.slane %v3936, %v3942
    %v3944 = vcombine.low %v3554, %v3555
    %v3946 = vunpack.c.l.s4 1983009808
    %v3947 = vunpack.c.0.s8 %v3946
    %v3948 = vlaneseq
    %v3949 = vshrl.u32 %v3948, 7
    %v3950 = vsub.s32 %v3947, %v3949
    %v3951 = vrot.slane %v3944, %v3950
    %v3952 = vcombine.low %v3927, %v3935
    %v3953 = vcombine.high %v3927, %v3935
    %v3955 = vunpack.c.l.s4 1934713408
    %v3956 = vunpack.c.0.s8 %v3955
    %v3957 = vlaneseq
    %v3958 = vshrl.u32 %v3957, 7
    %v3959 = vsub.s32 %v3956, %v3958
    %v3960 = vrot.slane %v3952, %v3959
    %v3962 = vunpack.c.l.s4 1934713408
    %v3963 = vunpack.c.0.s8 %v3962
    %v3964 = vlaneseq
    %v3965 = vshrl.u32 %v3964, 7
    %v3966 = vsub.s32 %v3963, %v3965
    %v3967 = vrot.slane %v3953, %v3966
    %v3968 = vcombine.low %v3943, %v3951
    %v3969 = vcombine.high %v3943, %v3951
    %v3971 = vunpack.c.l.s4 1934713408
    %v3972 = vunpack.c.0.s8 %v3971
    %v3973 = vlaneseq
    %v3974 = vshrl.u32 %v3973, 7
    %v3975 = vsub.s32 %v3972, %v3974
    %v3976 = vrot.slane %v3968, %v3975
    %v3978 = vunpack.c.l.s4 1934713408
    %v3979 = vunpack.c.0.s8 %v3978
    %v3980 = vlaneseq
    %v3981 = vshrl.u32 %v3980, 7
    %v3982 = vsub.s32 %v3979, %v3981
    %v3983 = vrot.slane %v3969, %v3982
    %v3984 = vcombine.low %v3960, %v3976
    %v3985 = vcombine.high %v3960, %v3976
    %v3986 = vcombine.low %v3967, %v3983
    %v3987 = vcombine.high %v3967, %v3983
    %v3988 = vpack.c.bf16 %v3984, %v3916
    %v3989 = vpack.c.bf16 %v3985, %v3917
    %v3990 = vpack.c.bf16 %v3986, %v3918
    %v3991 = vpack.c.bf16 %v3987, %v3919
    %v3992 = vcombine.low %v3616, %v3623
    %v3994 = vunpack.c.l.s4 1983009808
    %v3995 = vunpack.c.0.s8 %v3994
    %v3996 = vlaneseq
    %v3997 = vshrl.u32 %v3996, 7
    %v3998 = vsub.s32 %v3995, %v3997
    %v3999 = vrot.slane %v3992, %v3998
    %v4000 = vcombine.low %v3640, %v3641
    %v4002 = vunpack.c.l.s4 1983009808
    %v4003 = vunpack.c.0.s8 %v4002
    %v4004 = vlaneseq
    %v4005 = vshrl.u32 %v4004, 7
    %v4006 = vsub.s32 %v4003, %v4005
    %v4007 = vrot.slane %v4000, %v4006
    %v4008 = vcombine.low %v3632, %v3639
    %v4010 = vunpack.c.l.s4 1983009808
    %v4011 = vunpack.c.0.s8 %v4010
    %v4012 = vlaneseq
    %v4013 = vshrl.u32 %v4012, 7
    %v4014 = vsub.s32 %v4011, %v4013
    %v4015 = vrot.slane %v4008, %v4014
    %v4016 = vcombine.low %v3642, %v3643
    %v4018 = vunpack.c.l.s4 1983009808
    %v4019 = vunpack.c.0.s8 %v4018
    %v4020 = vlaneseq
    %v4021 = vshrl.u32 %v4020, 7
    %v4022 = vsub.s32 %v4019, %v4021
    %v4023 = vrot.slane %v4016, %v4022
    %v4024 = vcombine.low %v3999, %v4007
    %v4025 = vcombine.high %v3999, %v4007
    %v4027 = vunpack.c.l.s4 1934713408
    %v4028 = vunpack.c.0.s8 %v4027
    %v4029 = vlaneseq
    %v4030 = vshrl.u32 %v4029, 7
    %v4031 = vsub.s32 %v4028, %v4030
    %v4032 = vrot.slane %v4024, %v4031
    %v4034 = vunpack.c.l.s4 1934713408
    %v4035 = vunpack.c.0.s8 %v4034
    %v4036 = vlaneseq
    %v4037 = vshrl.u32 %v4036, 7
    %v4038 = vsub.s32 %v4035, %v4037
    %v4039 = vrot.slane %v4025, %v4038
    %v4040 = vcombine.low %v4015, %v4023
    %v4041 = vcombine.high %v4015, %v4023
    %v4043 = vunpack.c.l.s4 1934713408
    %v4044 = vunpack.c.0.s8 %v4043
    %v4045 = vlaneseq
    %v4046 = vshrl.u32 %v4045, 7
    %v4047 = vsub.s32 %v4044, %v4046
    %v4048 = vrot.slane %v4040, %v4047
    %v4050 = vunpack.c.l.s4 1934713408
    %v4051 = vunpack.c.0.s8 %v4050
    %v4052 = vlaneseq
    %v4053 = vshrl.u32 %v4052, 7
    %v4054 = vsub.s32 %v4051, %v4053
    %v4055 = vrot.slane %v4041, %v4054
    %v4056 = vcombine.low %v4032, %v4048
    %v4057 = vcombine.high %v4032, %v4048
    %v4058 = vcombine.low %v4039, %v4055
    %v4059 = vcombine.high %v4039, %v4055
    %v4060 = vcombine.low %v3684, %v3691
    %v4062 = vunpack.c.l.s4 1983009808
    %v4063 = vunpack.c.0.s8 %v4062
    %v4064 = vlaneseq
    %v4065 = vshrl.u32 %v4064, 7
    %v4066 = vsub.s32 %v4063, %v4065
    %v4067 = vrot.slane %v4060, %v4066
    %v4068 = vcombine.low %v3708, %v3709
    %v4070 = vunpack.c.l.s4 1983009808
    %v4071 = vunpack.c.0.s8 %v4070
    %v4072 = vlaneseq
    %v4073 = vshrl.u32 %v4072, 7
    %v4074 = vsub.s32 %v4071, %v4073
    %v4075 = vrot.slane %v4068, %v4074
    %v4076 = vcombine.low %v3700, %v3707
    %v4078 = vunpack.c.l.s4 1983009808
    %v4079 = vunpack.c.0.s8 %v4078
    %v4080 = vlaneseq
    %v4081 = vshrl.u32 %v4080, 7
    %v4082 = vsub.s32 %v4079, %v4081
    %v4083 = vrot.slane %v4076, %v4082
    %v4084 = vcombine.low %v3710, %v3711
    %v4086 = vunpack.c.l.s4 1983009808
    %v4087 = vunpack.c.0.s8 %v4086
    %v4088 = vlaneseq
    %v4089 = vshrl.u32 %v4088, 7
    %v4090 = vsub.s32 %v4087, %v4089
    %v4091 = vrot.slane %v4084, %v4090
    %v4092 = vcombine.low %v4067, %v4075
    %v4093 = vcombine.high %v4067, %v4075
    %v4095 = vunpack.c.l.s4 1934713408
    %v4096 = vunpack.c.0.s8 %v4095
    %v4097 = vlaneseq
    %v4098 = vshrl.u32 %v4097, 7
    %v4099 = vsub.s32 %v4096, %v4098
    %v4100 = vrot.slane %v4092, %v4099
    %v4102 = vunpack.c.l.s4 1934713408
    %v4103 = vunpack.c.0.s8 %v4102
    %v4104 = vlaneseq
    %v4105 = vshrl.u32 %v4104, 7
    %v4106 = vsub.s32 %v4103, %v4105
    %v4107 = vrot.slane %v4093, %v4106
    %v4108 = vcombine.low %v4083, %v4091
    %v4109 = vcombine.high %v4083, %v4091
    %v4111 = vunpack.c.l.s4 1934713408
    %v4112 = vunpack.c.0.s8 %v4111
    %v4113 = vlaneseq
    %v4114 = vshrl.u32 %v4113, 7
    %v4115 = vsub.s32 %v4112, %v4114
    %v4116 = vrot.slane %v4108, %v4115
    %v4118 = vunpack.c.l.s4 1934713408
    %v4119 = vunpack.c.0.s8 %v4118
    %v4120 = vlaneseq
    %v4121 = vshrl.u32 %v4120, 7
    %v4122 = vsub.s32 %v4119, %v4121
    %v4123 = vrot.slane %v4109, %v4122
    %v4124 = vcombine.low %v4100, %v4116
    %v4125 = vcombine.high %v4100, %v4116
    %v4126 = vcombine.low %v4107, %v4123
    %v4127 = vcombine.high %v4107, %v4123
    %v4128 = vpack.c.bf16 %v4124, %v4056
    %v4129 = vpack.c.bf16 %v4125, %v4057
    %v4130 = vpack.c.bf16 %v4126, %v4058
    %v4131 = vpack.c.bf16 %v4127, %v4059
    %v4133 = vsel %vm246, %v3848, 0
    %v4136 = vsel %vm246, %v3988, 0
    %4138 = vmatprep.subr.bf16.mxu0 0
    %4139 = vmatpush1.bf16.xpose.msra.mxu0 %v4136
    %4140 = vmatprep.subr.bf16.mxu0 0
    %4141 = vmatpush1.bf16.xpose.msra.mxu0 0
    %4142 = vmatprep.subr.bf16.mxu0 0
    %4143 = vmatpush1.bf16.xpose.msra.mxu0 0
    %4144 = vmatprep.subr.bf16.mxu0 0
    %4145 = vmatpush1.bf16.xpose.msra.mxu0 0
    %4146 = vmatprep.subr.bf16.mxu0 0
    %4147 = vmatpush1.bf16.xpose.msra.mxu0 0
    %4148 = vmatprep.subr.bf16.mxu0 0
    %4149 = vmatpush1.bf16.xpose.msra.mxu0 0
    %4150 = vmatprep.subr.bf16.mxu0 0
    %4151 = vmatpush1.bf16.xpose.msra.mxu0 0
    %4152 = vmatprep.subr.bf16.mxu0 0
    %4153 = vmatpush1.bf16.xpose.msra.mxu0 0
    %4154 = vmatprep.subr.bf16.mxu0 0
    %4155 = vmatpush1.bf16.xpose.msra.mxu0 0
    %4156 = vmatprep.subr.bf16.mxu0 0
    %4157 = vmatpush1.bf16.xpose.msra.mxu0 0
    %4158 = vmatprep.subr.bf16.mxu0 0
    %4159 = vmatpush1.bf16.xpose.msra.mxu0 0
    %4160 = vmatprep.subr.bf16.mxu0 0
    %4161 = vmatpush1.bf16.xpose.msra.mxu0 0
    %4162 = vmatprep.subr.bf16.mxu0 0
    %4163 = vmatpush1.bf16.xpose.msra.mxu0 0
    %4164 = vmatprep.subr.bf16.mxu0 0
    %4165 = vmatpush1.bf16.xpose.msra.mxu0 0
    %4166 = vmatprep.subr.bf16.mxu0 0
    %4167 = vmatpush1.bf16.xpose.msra.mxu0 0
    %4168 = vmatprep.subr.bf16.mxu0 0
    %4169 = vmatpush1.bf16.xpose.msra.mxu0 0
    %4170 = vmatprep.mubr.bf16.mxu0 0
    %4171 = vmatmul.mubr.bf16.gmra.mrb[0].mxu0 %v4133
    %v4172 = vpop.f32.mrb[0].mxu0
    %v4173 = vadd.f32 0.0, %v4172
    %v4174 = vpop.f32.mrb[0].mxu0
    %v4175 = vpop.f32.mrb[0].mxu0
    %v4176 = vadd.f32 0.0, %v4175
    %v4177 = vpop.f32.mrb[0].mxu0
    %4178 = vdwg.mxu0
    %v4180 = vsel %vm246, %v3849, 0
    %v4183 = vsel %vm246, %v3989, 0
    %4185 = vmatprep.subr.bf16.mxu0 0
    %4186 = vmatpush1.bf16.xpose.msra.mxu0 %v4183
    %4187 = vmatprep.subr.bf16.mxu0 0
    %4188 = vmatpush1.bf16.xpose.msra.mxu0 0
    %4189 = vmatprep.subr.bf16.mxu0 0
    %4190 = vmatpush1.bf16.xpose.msra.mxu0 0
    %4191 = vmatprep.subr.bf16.mxu0 0
    %4192 = vmatpush1.bf16.xpose.msra.mxu0 0
    %4193 = vmatprep.subr.bf16.mxu0 0
    %4194 = vmatpush1.bf16.xpose.msra.mxu0 0
    %4195 = vmatprep.subr.bf16.mxu0 0
    %4196 = vmatpush1.bf16.xpose.msra.mxu0 0
    %4197 = vmatprep.subr.bf16.mxu0 0
    %4198 = vmatpush1.bf16.xpose.msra.mxu0 0
    %4199 = vmatprep.subr.bf16.mxu0 0
    %4200 = vmatpush1.bf16.xpose.msra.mxu0 0
    %4201 = vmatprep.subr.bf16.mxu0 0
    %4202 = vmatpush1.bf16.xpose.msra.mxu0 0
    %4203 = vmatprep.subr.bf16.mxu0 0
    %4204 = vmatpush1.bf16.xpose.msra.mxu0 0
    %4205 = vmatprep.subr.bf16.mxu0 0
    %4206 = vmatpush1.bf16.xpose.msra.mxu0 0
    %4207 = vmatprep.subr.bf16.mxu0 0
    %4208 = vmatpush1.bf16.xpose.msra.mxu0 0
    %4209 = vmatprep.subr.bf16.mxu0 0
    %4210 = vmatpush1.bf16.xpose.msra.mxu0 0
    %4211 = vmatprep.subr.bf16.mxu0 0
    %4212 = vmatpush1.bf16.xpose.msra.mxu0 0
    %4213 = vmatprep.subr.bf16.mxu0 0
    %4214 = vmatpush1.bf16.xpose.msra.mxu0 0
    %4215 = vmatprep.subr.bf16.mxu0 0
    %4216 = vmatpush1.bf16.xpose.msra.mxu0 0
    %4217 = vmatprep.mubr.bf16.mxu0 0
    %4218 = vmatmul.mubr.bf16.gmra.mrb[0].mxu0 %v4180
    %v4219 = vpop.f32.mrb[0].mxu0
    %v4220 = vadd.f32 0.0, %v4219
    %v4221 = vpop.f32.mrb[0].mxu0
    %v4222 = vpop.f32.mrb[0].mxu0
    %v4223 = vadd.f32 0.0, %v4222
    %v4224 = vpop.f32.mrb[0].mxu0
    %4225 = vdwg.mxu0
    %v4227 = vsel %vm246, %v3850, 0
    %v4230 = vsel %vm246, %v3990, 0
    %4232 = vmatprep.subr.bf16.mxu0 0
    %4233 = vmatpush1.bf16.xpose.msra.mxu0 %v4230
    %4234 = vmatprep.subr.bf16.mxu0 0
    %4235 = vmatpush1.bf16.xpose.msra.mxu0 0
    %4236 = vmatprep.subr.bf16.mxu0 0
    %4237 = vmatpush1.bf16.xpose.msra.mxu0 0
    %4238 = vmatprep.subr.bf16.mxu0 0
    %4239 = vmatpush1.bf16.xpose.msra.mxu0 0
    %4240 = vmatprep.subr.bf16.mxu0 0
    %4241 = vmatpush1.bf16.xpose.msra.mxu0 0
    %4242 = vmatprep.subr.bf16.mxu0 0
    %4243 = vmatpush1.bf16.xpose.msra.mxu0 0
    %4244 = vmatprep.subr.bf16.mxu0 0
    %4245 = vmatpush1.bf16.xpose.msra.mxu0 0
    %4246 = vmatprep.subr.bf16.mxu0 0
    %4247 = vmatpush1.bf16.xpose.msra.mxu0 0
    %4248 = vmatprep.subr.bf16.mxu0 0
    %4249 = vmatpush1.bf16.xpose.msra.mxu0 0
    %4250 = vmatprep.subr.bf16.mxu0 0
    %4251 = vmatpush1.bf16.xpose.msra.mxu0 0
    %4252 = vmatprep.subr.bf16.mxu0 0
    %4253 = vmatpush1.bf16.xpose.msra.mxu0 0
    %4254 = vmatprep.subr.bf16.mxu0 0
    %4255 = vmatpush1.bf16.xpose.msra.mxu0 0
    %4256 = vmatprep.subr.bf16.mxu0 0
    %4257 = vmatpush1.bf16.xpose.msra.mxu0 0
    %4258 = vmatprep.subr.bf16.mxu0 0
    %4259 = vmatpush1.bf16.xpose.msra.mxu0 0
    %4260 = vmatprep.subr.bf16.mxu0 0
    %4261 = vmatpush1.bf16.xpose.msra.mxu0 0
    %4262 = vmatprep.subr.bf16.mxu0 0
    %4263 = vmatpush1.bf16.xpose.msra.mxu0 0
    %4264 = vmatprep.mubr.bf16.mxu0 0
    %4265 = vmatmul.mubr.bf16.gmra.mrb[0].mxu0 %v4227
    %v4266 = vpop.f32.mrb[0].mxu0
    %v4267 = vadd.f32 0.0, %v4266
    %v4268 = vpop.f32.mrb[0].mxu0
    %v4269 = vpop.f32.mrb[0].mxu0
    %v4270 = vadd.f32 0.0, %v4269
    %v4271 = vpop.f32.mrb[0].mxu0
    %4272 = vdwg.mxu0
    %v4274 = vsel %vm246, %v3851, 0
    %v4277 = vsel %vm246, %v3991, 0
    %4279 = vmatprep.subr.bf16.mxu0 0
    %4280 = vmatpush1.bf16.xpose.msra.mxu0 %v4277
    %4281 = vmatprep.subr.bf16.mxu0 0
    %4282 = vmatpush1.bf16.xpose.msra.mxu0 0
    %4283 = vmatprep.subr.bf16.mxu0 0
    %4284 = vmatpush1.bf16.xpose.msra.mxu0 0
    %4285 = vmatprep.subr.bf16.mxu0 0
    %4286 = vmatpush1.bf16.xpose.msra.mxu0 0
    %4287 = vmatprep.subr.bf16.mxu0 0
    %4288 = vmatpush1.bf16.xpose.msra.mxu0 0
    %4289 = vmatprep.subr.bf16.mxu0 0
    %4290 = vmatpush1.bf16.xpose.msra.mxu0 0
    %4291 = vmatprep.subr.bf16.mxu0 0
    %4292 = vmatpush1.bf16.xpose.msra.mxu0 0
    %4293 = vmatprep.subr.bf16.mxu0 0
    %4294 = vmatpush1.bf16.xpose.msra.mxu0 0
    %4295 = vmatprep.subr.bf16.mxu0 0
    %4296 = vmatpush1.bf16.xpose.msra.mxu0 0
    %4297 = vmatprep.subr.bf16.mxu0 0
    %4298 = vmatpush1.bf16.xpose.msra.mxu0 0
    %4299 = vmatprep.subr.bf16.mxu0 0
    %4300 = vmatpush1.bf16.xpose.msra.mxu0 0
    %4301 = vmatprep.subr.bf16.mxu0 0
    %4302 = vmatpush1.bf16.xpose.msra.mxu0 0
    %4303 = vmatprep.subr.bf16.mxu0 0
    %4304 = vmatpush1.bf16.xpose.msra.mxu0 0
    %4305 = vmatprep.subr.bf16.mxu0 0
    %4306 = vmatpush1.bf16.xpose.msra.mxu0 0
    %4307 = vmatprep.subr.bf16.mxu0 0
    %4308 = vmatpush1.bf16.xpose.msra.mxu0 0
    %4309 = vmatprep.subr.bf16.mxu0 0
    %4310 = vmatpush1.bf16.xpose.msra.mxu0 0
    %4311 = vmatprep.mubr.bf16.mxu0 0
    %4312 = vmatmul.mubr.bf16.gmra.mrb[0].mxu0 %v4274
    %v4313 = vpop.f32.mrb[0].mxu0
    %v4314 = vadd.f32 0.0, %v4313
    %v4315 = vpop.f32.mrb[0].mxu0
    %v4316 = vpop.f32.mrb[0].mxu0
    %v4317 = vadd.f32 0.0, %v4316
    %v4318 = vpop.f32.mrb[0].mxu0
    %4319 = vdwg.mxu0
    %v4320 = vmul.f32 %v4173, 0.17677669
    %v4321 = vmul.f32 %v4176, 0.17677669
    %v4322 = vmul.f32 %v4220, 0.17677669
    %v4323 = vmul.f32 %v4223, 0.17677669
    %v4324 = vmul.f32 %v4267, 0.17677669
    %v4325 = vmul.f32 %v4270, 0.17677669
    %v4326 = vmul.f32 %v4314, 0.17677669
    %v4327 = vmul.f32 %v4317, 0.17677669
    %v4328 = vadd.f32 %v4320, %v488
    %v4329 = vadd.f32 %v4321, %v489
    %v4330 = vadd.f32 %v4322, %v488
    %v4331 = vadd.f32 %v4323, %v489
    %v4332 = vadd.f32 %v4324, %v488
    %v4333 = vadd.f32 %v4325, %v489
    %v4334 = vadd.f32 %v4326, %v488
    %v4335 = vadd.f32 %v4327, %v489
    %v4336 = vsel %vm1844, %v4328, -inf
    %4337 = vmax.xlane.f32.xlu0 %v4336
    %v4338 = vpop.xlane.xlu0 %4337
    %v4339 = vsel %vm1844, %v4329, -inf
    %4340 = vmax.xlane.f32.xlu0 %v4339
    %v4341 = vpop.xlane.xlu0 %4340
    %v4342 = vsel %vm1844, %v4330, -inf
    %4343 = vmax.xlane.f32.xlu0 %v4342
    %v4344 = vpop.xlane.xlu0 %4343
    %v4345 = vsel %vm1844, %v4331, -inf
    %4346 = vmax.xlane.f32.xlu0 %v4345
    %v4347 = vpop.xlane.xlu0 %4346
    %v4348 = vsel %vm1844, %v4332, -inf
    %4349 = vmax.xlane.f32.xlu0 %v4348
    %v4350 = vpop.xlane.xlu0 %4349
    %v4351 = vsel %vm1844, %v4333, -inf
    %4352 = vmax.xlane.f32.xlu0 %v4351
    %v4353 = vpop.xlane.xlu0 %4352
    %v4354 = vsel %vm1844, %v4334, -inf
    %4355 = vmax.xlane.f32.xlu0 %v4354
    %v4356 = vpop.xlane.xlu0 %4355
    %v4357 = vsel %vm1844, %v4335, -inf
    %4358 = vmax.xlane.f32.xlu0 %v4357
    %v4359 = vpop.xlane.xlu0 %4358
    %v4360 = vsub.f32 %v4328, %v4338
    %v4361 = vsub.f32 %v4329, %v4341
    %v4362 = vsub.f32 %v4330, %v4344
    %v4363 = vsub.f32 %v4331, %v4347
    %v4364 = vsub.f32 %v4332, %v4350
    %v4365 = vsub.f32 %v4333, %v4353
    %v4366 = vsub.f32 %v4334, %v4356
    %v4367 = vsub.f32 %v4335, %v4359
    %v4368 = vmul.f32 %v4360, 1.442695
    %v4369 = vpow.pop %v4368
    %v4370 = vmul.f32 %v4361, 1.442695
    %v4371 = vpow.pop %v4370
    %v4372 = vmul.f32 %v4362, 1.442695
    %v4373 = vpow.pop %v4372
    %v4374 = vmul.f32 %v4363, 1.442695
    %v4375 = vpow.pop %v4374
    %v4376 = vmul.f32 %v4364, 1.442695
    %v4377 = vpow.pop %v4376
    %v4378 = vmul.f32 %v4365, 1.442695
    %v4379 = vpow.pop %v4378
    %v4380 = vmul.f32 %v4366, 1.442695
    %v4381 = vpow.pop %v4380
    %v4382 = vmul.f32 %v4367, 1.442695
    %v4383 = vpow.pop %v4382
    %v4384 = vsel %vm1844, %v4369, 0.0
    %4385 = vadd.xlane.f32.xlu0 %v4384
    %v4386 = vpop.xlane.xlu0 %4385
    %v4387 = vsel %vm1844, %v4371, 0.0
    %4388 = vadd.xlane.f32.xlu0 %v4387
    %v4389 = vpop.xlane.xlu0 %4388
    %v4390 = vsel %vm1844, %v4373, 0.0
    %4391 = vadd.xlane.f32.xlu0 %v4390
    %v4392 = vpop.xlane.xlu0 %4391
    %v4393 = vsel %vm1844, %v4375, 0.0
    %4394 = vadd.xlane.f32.xlu0 %v4393
    %v4395 = vpop.xlane.xlu0 %4394
    %v4396 = vsel %vm1844, %v4377, 0.0
    %4397 = vadd.xlane.f32.xlu0 %v4396
    %v4398 = vpop.xlane.xlu0 %4397
    %v4399 = vsel %vm1844, %v4379, 0.0
    %4400 = vadd.xlane.f32.xlu0 %v4399
    %v4401 = vpop.xlane.xlu0 %4400
    %v4402 = vsel %vm1844, %v4381, 0.0
    %4403 = vadd.xlane.f32.xlu0 %v4402
    %v4404 = vpop.xlane.xlu0 %4403
    %v4405 = vsel %vm1844, %v4383, 0.0
    %4406 = vadd.xlane.f32.xlu0 %v4405
    %v4407 = vpop.xlane.xlu0 %4406
    %v4408 = vrcp.pop %v4386
    %v4409 = vmul.f32 %v4369, %v4408
    %v4410 = vrcp.pop %v4389
    %v4411 = vmul.f32 %v4371, %v4410
    %v4412 = vrcp.pop %v4392
    %v4413 = vmul.f32 %v4373, %v4412
    %v4414 = vrcp.pop %v4395
    %v4415 = vmul.f32 %v4375, %v4414
    %v4416 = vrcp.pop %v4398
    %v4417 = vmul.f32 %v4377, %v4416
    %v4418 = vrcp.pop %v4401
    %v4419 = vmul.f32 %v4379, %v4418
    %v4420 = vrcp.pop %v4404
    %v4421 = vmul.f32 %v4381, %v4420
    %v4422 = vrcp.pop %v4407
    %v4423 = vmul.f32 %v4383, %v4422
    %v4424 = vpack.c.bf16 %v4411, %v4409
    %v4425 = vpack.c.bf16 %v4415, %v4413
    %v4426 = vpack.c.bf16 %v4419, %v4417
    %v4427 = vpack.c.bf16 %v4423, %v4421
    %v4429 = vsel %vm1844, %v4424, 0
    %4431 = vmatprep.subr.bf16.mxu0 0
    %4432 = vmatpush1.bf16.msra.mxu0 %v4128
    %4433 = vmatprep.subr.bf16.mxu0 0
    %4434 = vmatpush1.bf16.msra.mxu0 0
    %4435 = vmatprep.subr.bf16.mxu0 0
    %4436 = vmatpush1.bf16.msra.mxu0 0
    %4437 = vmatprep.subr.bf16.mxu0 0
    %4438 = vmatpush1.bf16.msra.mxu0 0
    %4439 = vmatprep.subr.bf16.mxu0 0
    %4440 = vmatpush1.bf16.msra.mxu0 0
    %4441 = vmatprep.subr.bf16.mxu0 0
    %4442 = vmatpush1.bf16.msra.mxu0 0
    %4443 = vmatprep.subr.bf16.mxu0 0
    %4444 = vmatpush1.bf16.msra.mxu0 0
    %4445 = vmatprep.subr.bf16.mxu0 0
    %4446 = vmatpush1.bf16.msra.mxu0 0
    %4447 = vmatprep.subr.bf16.mxu0 0
    %4448 = vmatpush1.bf16.msra.mxu0 0
    %4449 = vmatprep.subr.bf16.mxu0 0
    %4450 = vmatpush1.bf16.msra.mxu0 0
    %4451 = vmatprep.subr.bf16.mxu0 0
    %4452 = vmatpush1.bf16.msra.mxu0 0
    %4453 = vmatprep.subr.bf16.mxu0 0
    %4454 = vmatpush1.bf16.msra.mxu0 0
    %4455 = vmatprep.subr.bf16.mxu0 0
    %4456 = vmatpush1.bf16.msra.mxu0 0
    %4457 = vmatprep.subr.bf16.mxu0 0
    %4458 = vmatpush1.bf16.msra.mxu0 0
    %4459 = vmatprep.subr.bf16.mxu0 0
    %4460 = vmatpush1.bf16.msra.mxu0 0
    %4461 = vmatprep.subr.bf16.mxu0 0
    %4462 = vmatpush1.bf16.msra.mxu0 0
    %4463 = vmatprep.mubr.bf16.mxu0 0
    %4464 = vmatmul.mubr.bf16.gmra.mrb[0].mxu0 %v4429
    %v4465 = vpop.f32.mrb[0].mxu0
    %v4466 = vadd.f32 0.0, %v4465
    %v4467 = vpop.f32.mrb[0].mxu0
    %v4468 = vpop.f32.mrb[0].mxu0
    %v4469 = vadd.f32 0.0, %v4468
    %v4470 = vpop.f32.mrb[0].mxu0
    %4471 = vdwg.mxu0
    %v4473 = vsel %vm1844, %v4425, 0
    %4475 = vmatprep.subr.bf16.mxu0 0
    %4476 = vmatpush1.bf16.msra.mxu0 %v4129
    %4477 = vmatprep.subr.bf16.mxu0 0
    %4478 = vmatpush1.bf16.msra.mxu0 0
    %4479 = vmatprep.subr.bf16.mxu0 0
    %4480 = vmatpush1.bf16.msra.mxu0 0
    %4481 = vmatprep.subr.bf16.mxu0 0
    %4482 = vmatpush1.bf16.msra.mxu0 0
    %4483 = vmatprep.subr.bf16.mxu0 0
    %4484 = vmatpush1.bf16.msra.mxu0 0
    %4485 = vmatprep.subr.bf16.mxu0 0
    %4486 = vmatpush1.bf16.msra.mxu0 0
    %4487 = vmatprep.subr.bf16.mxu0 0
    %4488 = vmatpush1.bf16.msra.mxu0 0
    %4489 = vmatprep.subr.bf16.mxu0 0
    %4490 = vmatpush1.bf16.msra.mxu0 0
    %4491 = vmatprep.subr.bf16.mxu0 0
    %4492 = vmatpush1.bf16.msra.mxu0 0
    %4493 = vmatprep.subr.bf16.mxu0 0
    %4494 = vmatpush1.bf16.msra.mxu0 0
    %4495 = vmatprep.subr.bf16.mxu0 0
    %4496 = vmatpush1.bf16.msra.mxu0 0
    %4497 = vmatprep.subr.bf16.mxu0 0
    %4498 = vmatpush1.bf16.msra.mxu0 0
    %4499 = vmatprep.subr.bf16.mxu0 0
    %4500 = vmatpush1.bf16.msra.mxu0 0
    %4501 = vmatprep.subr.bf16.mxu0 0
    %4502 = vmatpush1.bf16.msra.mxu0 0
    %4503 = vmatprep.subr.bf16.mxu0 0
    %4504 = vmatpush1.bf16.msra.mxu0 0
    %4505 = vmatprep.subr.bf16.mxu0 0
    %4506 = vmatpush1.bf16.msra.mxu0 0
    %4507 = vmatprep.mubr.bf16.mxu0 0
    %4508 = vmatmul.mubr.bf16.gmra.mrb[0].mxu0 %v4473
    %v4509 = vpop.f32.mrb[0].mxu0
    %v4510 = vadd.f32 0.0, %v4509
    %v4511 = vpop.f32.mrb[0].mxu0
    %v4512 = vpop.f32.mrb[0].mxu0
    %v4513 = vadd.f32 0.0, %v4512
    %v4514 = vpop.f32.mrb[0].mxu0
    %4515 = vdwg.mxu0
    %v4517 = vsel %vm1844, %v4426, 0
    %4519 = vmatprep.subr.bf16.mxu0 0
    %4520 = vmatpush1.bf16.msra.mxu0 %v4130
    %4521 = vmatprep.subr.bf16.mxu0 0
    %4522 = vmatpush1.bf16.msra.mxu0 0
    %4523 = vmatprep.subr.bf16.mxu0 0
    %4524 = vmatpush1.bf16.msra.mxu0 0
    %4525 = vmatprep.subr.bf16.mxu0 0
    %4526 = vmatpush1.bf16.msra.mxu0 0
    %4527 = vmatprep.subr.bf16.mxu0 0
    %4528 = vmatpush1.bf16.msra.mxu0 0
    %4529 = vmatprep.subr.bf16.mxu0 0
    %4530 = vmatpush1.bf16.msra.mxu0 0
    %4531 = vmatprep.subr.bf16.mxu0 0
    %4532 = vmatpush1.bf16.msra.mxu0 0
    %4533 = vmatprep.subr.bf16.mxu0 0
    %4534 = vmatpush1.bf16.msra.mxu0 0
    %4535 = vmatprep.subr.bf16.mxu0 0
    %4536 = vmatpush1.bf16.msra.mxu0 0
    %4537 = vmatprep.subr.bf16.mxu0 0
    %4538 = vmatpush1.bf16.msra.mxu0 0
    %4539 = vmatprep.subr.bf16.mxu0 0
    %4540 = vmatpush1.bf16.msra.mxu0 0
    %4541 = vmatprep.subr.bf16.mxu0 0
    %4542 = vmatpush1.bf16.msra.mxu0 0
    %4543 = vmatprep.subr.bf16.mxu0 0
    %4544 = vmatpush1.bf16.msra.mxu0 0
    %4545 = vmatprep.subr.bf16.mxu0 0
    %4546 = vmatpush1.bf16.msra.mxu0 0
    %4547 = vmatprep.subr.bf16.mxu0 0
    %4548 = vmatpush1.bf16.msra.mxu0 0
    %4549 = vmatprep.subr.bf16.mxu0 0
    %4550 = vmatpush1.bf16.msra.mxu0 0
    %4551 = vmatprep.mubr.bf16.mxu0 0
    %4552 = vmatmul.mubr.bf16.gmra.mrb[0].mxu0 %v4517
    %v4553 = vpop.f32.mrb[0].mxu0
    %v4554 = vadd.f32 0.0, %v4553
    %v4555 = vpop.f32.mrb[0].mxu0
    %v4556 = vpop.f32.mrb[0].mxu0
    %v4557 = vadd.f32 0.0, %v4556
    %v4558 = vpop.f32.mrb[0].mxu0
    %4559 = vdwg.mxu0
    %v4561 = vsel %vm1844, %v4427, 0
    %4563 = vmatprep.subr.bf16.mxu0 0
    %4564 = vmatpush1.bf16.msra.mxu0 %v4131
    %4565 = vmatprep.subr.bf16.mxu0 0
    %4566 = vmatpush1.bf16.msra.mxu0 0
    %4567 = vmatprep.subr.bf16.mxu0 0
    %4568 = vmatpush1.bf16.msra.mxu0 0
    %4569 = vmatprep.subr.bf16.mxu0 0
    %4570 = vmatpush1.bf16.msra.mxu0 0
    %4571 = vmatprep.subr.bf16.mxu0 0
    %4572 = vmatpush1.bf16.msra.mxu0 0
    %4573 = vmatprep.subr.bf16.mxu0 0
    %4574 = vmatpush1.bf16.msra.mxu0 0
    %4575 = vmatprep.subr.bf16.mxu0 0
    %4576 = vmatpush1.bf16.msra.mxu0 0
    %4577 = vmatprep.subr.bf16.mxu0 0
    %4578 = vmatpush1.bf16.msra.mxu0 0
    %4579 = vmatprep.subr.bf16.mxu0 0
    %4580 = vmatpush1.bf16.msra.mxu0 0
    %4581 = vmatprep.subr.bf16.mxu0 0
    %4582 = vmatpush1.bf16.msra.mxu0 0
    %4583 = vmatprep.subr.bf16.mxu0 0
    %4584 = vmatpush1.bf16.msra.mxu0 0
    %4585 = vmatprep.subr.bf16.mxu0 0
    %4586 = vmatpush1.bf16.msra.mxu0 0
    %4587 = vmatprep.subr.bf16.mxu0 0
    %4588 = vmatpush1.bf16.msra.mxu0 0
    %4589 = vmatprep.subr.bf16.mxu0 0
    %4590 = vmatpush1.bf16.msra.mxu0 0
    %4591 = vmatprep.subr.bf16.mxu0 0
    %4592 = vmatpush1.bf16.msra.mxu0 0
    %4593 = vmatprep.subr.bf16.mxu0 0
    %4594 = vmatpush1.bf16.msra.mxu0 0
    %4595 = vmatprep.mubr.bf16.mxu0 0
    %4596 = vmatmul.mubr.bf16.gmra.mrb[0].mxu0 %v4561
    %v4597 = vpop.f32.mrb[0].mxu0
    %v4598 = vadd.f32 0.0, %v4597
    %v4599 = vpop.f32.mrb[0].mxu0
    %v4600 = vpop.f32.mrb[0].mxu0
    %v4601 = vadd.f32 0.0, %v4600
    %v4602 = vpop.f32.mrb[0].mxu0
    %4603 = vdwg.mxu0
    %v4604 = vcombine.low %v4466, %v4554
    %v4605 = vcombine.high %v4466, %v4554
    %v4607 = vunpack.c.l.s4 1983009808
    %v4608 = vunpack.c.0.s8 %v4607
    %v4609 = vlaneseq
    %v4610 = vshrl.u32 %v4609, 7
    %v4611 = vsub.s32 %v4608, %v4610
    %v4612 = vrot.slane %v4604, %v4611
    %v4614 = vunpack.c.l.s4 1983009808
    %v4615 = vunpack.c.0.s8 %v4614
    %v4616 = vlaneseq
    %v4617 = vshrl.u32 %v4616, 7
    %v4618 = vsub.s32 %v4615, %v4617
    %v4619 = vrot.slane %v4605, %v4618
    %v4620 = vcombine.low %v4510, %v4598
    %v4621 = vcombine.high %v4510, %v4598
    %v4623 = vunpack.c.l.s4 1983009808
    %v4624 = vunpack.c.0.s8 %v4623
    %v4625 = vlaneseq
    %v4626 = vshrl.u32 %v4625, 7
    %v4627 = vsub.s32 %v4624, %v4626
    %v4628 = vrot.slane %v4620, %v4627
    %v4630 = vunpack.c.l.s4 1983009808
    %v4631 = vunpack.c.0.s8 %v4630
    %v4632 = vlaneseq
    %v4633 = vshrl.u32 %v4632, 7
    %v4634 = vsub.s32 %v4631, %v4633
    %v4635 = vrot.slane %v4621, %v4634
    %v4636 = vcombine.low %v4612, %v4628
    %v4637 = vcombine.high %v4612, %v4628
    %v4639 = vunpack.c.l.s4 1934713408
    %v4640 = vunpack.c.0.s8 %v4639
    %v4641 = vlaneseq
    %v4642 = vshrl.u32 %v4641, 7
    %v4643 = vsub.s32 %v4640, %v4642
    %v4644 = vrot.slane %v4636, %v4643
    %v4646 = vunpack.c.l.s4 1934713408
    %v4647 = vunpack.c.0.s8 %v4646
    %v4648 = vlaneseq
    %v4649 = vshrl.u32 %v4648, 7
    %v4650 = vsub.s32 %v4647, %v4649
    %v4651 = vrot.slane %v4637, %v4650
    %v4652 = vcombine.low %v4619, %v4635
    %v4653 = vcombine.high %v4619, %v4635
    %v4655 = vunpack.c.l.s4 1934713408
    %v4656 = vunpack.c.0.s8 %v4655
    %v4657 = vlaneseq
    %v4658 = vshrl.u32 %v4657, 7
    %v4659 = vsub.s32 %v4656, %v4658
    %v4660 = vrot.slane %v4652, %v4659
    %v4662 = vunpack.c.l.s4 1934713408
    %v4663 = vunpack.c.0.s8 %v4662
    %v4664 = vlaneseq
    %v4665 = vshrl.u32 %v4664, 7
    %v4666 = vsub.s32 %v4663, %v4665
    %v4667 = vrot.slane %v4653, %v4666
    %v4668 = vcombine.high %v4644, 0.0
    %v4669 = vcombine.high %v4651, 0.0
    %v4670 = vcombine.high %v4660, 0.0
    %v4671 = vcombine.high %v4667, 0.0
    %v4672 = vcombine.low %v4469, %v4557
    %v4673 = vcombine.high %v4469, %v4557
    %v4675 = vunpack.c.l.s4 1983009808
    %v4676 = vunpack.c.0.s8 %v4675
    %v4677 = vlaneseq
    %v4678 = vshrl.u32 %v4677, 7
    %v4679 = vsub.s32 %v4676, %v4678
    %v4680 = vrot.slane %v4672, %v4679
    %v4682 = vunpack.c.l.s4 1983009808
    %v4683 = vunpack.c.0.s8 %v4682
    %v4684 = vlaneseq
    %v4685 = vshrl.u32 %v4684, 7
    %v4686 = vsub.s32 %v4683, %v4685
    %v4687 = vrot.slane %v4673, %v4686
    %v4688 = vcombine.low %v4513, %v4601
    %v4689 = vcombine.high %v4513, %v4601
    %v4691 = vunpack.c.l.s4 1983009808
    %v4692 = vunpack.c.0.s8 %v4691
    %v4693 = vlaneseq
    %v4694 = vshrl.u32 %v4693, 7
    %v4695 = vsub.s32 %v4692, %v4694
    %v4696 = vrot.slane %v4688, %v4695
    %v4698 = vunpack.c.l.s4 1983009808
    %v4699 = vunpack.c.0.s8 %v4698
    %v4700 = vlaneseq
    %v4701 = vshrl.u32 %v4700, 7
    %v4702 = vsub.s32 %v4699, %v4701
    %v4703 = vrot.slane %v4689, %v4702
    %v4704 = vcombine.low %v4680, %v4696
    %v4705 = vcombine.high %v4680, %v4696
    %v4707 = vunpack.c.l.s4 1934713408
    %v4708 = vunpack.c.0.s8 %v4707
    %v4709 = vlaneseq
    %v4710 = vshrl.u32 %v4709, 7
    %v4711 = vsub.s32 %v4708, %v4710
    %v4712 = vrot.slane %v4704, %v4711
    %v4714 = vunpack.c.l.s4 1934713408
    %v4715 = vunpack.c.0.s8 %v4714
    %v4716 = vlaneseq
    %v4717 = vshrl.u32 %v4716, 7
    %v4718 = vsub.s32 %v4715, %v4717
    %v4719 = vrot.slane %v4705, %v4718
    %v4720 = vcombine.low %v4687, %v4703
    %v4721 = vcombine.high %v4687, %v4703
    %v4723 = vunpack.c.l.s4 1934713408
    %v4724 = vunpack.c.0.s8 %v4723
    %v4725 = vlaneseq
    %v4726 = vshrl.u32 %v4725, 7
    %v4727 = vsub.s32 %v4724, %v4726
    %v4728 = vrot.slane %v4720, %v4727
    %v4730 = vunpack.c.l.s4 1934713408
    %v4731 = vunpack.c.0.s8 %v4730
    %v4732 = vlaneseq
    %v4733 = vshrl.u32 %v4732, 7
    %v4734 = vsub.s32 %v4731, %v4733
    %v4735 = vrot.slane %v4721, %v4734
    %v4736 = vcombine.high %v4712, 0.0
    %v4737 = vcombine.high %v4719, 0.0
    %v4738 = vcombine.high %v4728, 0.0
    %v4739 = vcombine.high %v4735, 0.0
    %v4740 = vcombine.low %v4644, %v4651
    %v4742 = vunpack.c.l.s4 1983009808
    %v4743 = vunpack.c.0.s8 %v4742
    %v4744 = vlaneseq
    %v4745 = vshrl.u32 %v4744, 7
    %v4746 = vsub.s32 %v4743, %v4745
    %v4747 = vrot.slane %v4740, %v4746
    %v4748 = vcombine.low %v4668, %v4669
    %v4750 = vunpack.c.l.s4 1983009808
    %v4751 = vunpack.c.0.s8 %v4750
    %v4752 = vlaneseq
    %v4753 = vshrl.u32 %v4752, 7
    %v4754 = vsub.s32 %v4751, %v4753
    %v4755 = vrot.slane %v4748, %v4754
    %v4756 = vcombine.low %v4660, %v4667
    %v4758 = vunpack.c.l.s4 1983009808
    %v4759 = vunpack.c.0.s8 %v4758
    %v4760 = vlaneseq
    %v4761 = vshrl.u32 %v4760, 7
    %v4762 = vsub.s32 %v4759, %v4761
    %v4763 = vrot.slane %v4756, %v4762
    %v4764 = vcombine.low %v4670, %v4671
    %v4766 = vunpack.c.l.s4 1983009808
    %v4767 = vunpack.c.0.s8 %v4766
    %v4768 = vlaneseq
    %v4769 = vshrl.u32 %v4768, 7
    %v4770 = vsub.s32 %v4767, %v4769
    %v4771 = vrot.slane %v4764, %v4770
    %v4772 = vcombine.low %v4747, %v4755
    %v4773 = vcombine.high %v4747, %v4755
    %v4775 = vunpack.c.l.s4 1934713408
    %v4776 = vunpack.c.0.s8 %v4775
    %v4777 = vlaneseq
    %v4778 = vshrl.u32 %v4777, 7
    %v4779 = vsub.s32 %v4776, %v4778
    %v4780 = vrot.slane %v4772, %v4779
    %v4782 = vunpack.c.l.s4 1934713408
    %v4783 = vunpack.c.0.s8 %v4782
    %v4784 = vlaneseq
    %v4785 = vshrl.u32 %v4784, 7
    %v4786 = vsub.s32 %v4783, %v4785
    %v4787 = vrot.slane %v4773, %v4786
    %v4788 = vcombine.low %v4763, %v4771
    %v4789 = vcombine.high %v4763, %v4771
    %v4791 = vunpack.c.l.s4 1934713408
    %v4792 = vunpack.c.0.s8 %v4791
    %v4793 = vlaneseq
    %v4794 = vshrl.u32 %v4793, 7
    %v4795 = vsub.s32 %v4792, %v4794
    %v4796 = vrot.slane %v4788, %v4795
    %v4798 = vunpack.c.l.s4 1934713408
    %v4799 = vunpack.c.0.s8 %v4798
    %v4800 = vlaneseq
    %v4801 = vshrl.u32 %v4800, 7
    %v4802 = vsub.s32 %v4799, %v4801
    %v4803 = vrot.slane %v4789, %v4802
    %v4804 = vcombine.low %v4780, %v4796
    %v4805 = vcombine.high %v4780, %v4796
    %v4806 = vcombine.low %v4787, %v4803
    %v4807 = vcombine.high %v4787, %v4803
    %v4808 = vcombine.low %v4712, %v4719
    %v4810 = vunpack.c.l.s4 1983009808
    %v4811 = vunpack.c.0.s8 %v4810
    %v4812 = vlaneseq
    %v4813 = vshrl.u32 %v4812, 7
    %v4814 = vsub.s32 %v4811, %v4813
    %v4815 = vrot.slane %v4808, %v4814
    %v4816 = vcombine.low %v4736, %v4737
    %v4818 = vunpack.c.l.s4 1983009808
    %v4819 = vunpack.c.0.s8 %v4818
    %v4820 = vlaneseq
    %v4821 = vshrl.u32 %v4820, 7
    %v4822 = vsub.s32 %v4819, %v4821
    %v4823 = vrot.slane %v4816, %v4822
    %v4824 = vcombine.low %v4728, %v4735
    %v4826 = vunpack.c.l.s4 1983009808
    %v4827 = vunpack.c.0.s8 %v4826
    %v4828 = vlaneseq
    %v4829 = vshrl.u32 %v4828, 7
    %v4830 = vsub.s32 %v4827, %v4829
    %v4831 = vrot.slane %v4824, %v4830
    %v4832 = vcombine.low %v4738, %v4739
    %v4834 = vunpack.c.l.s4 1983009808
    %v4835 = vunpack.c.0.s8 %v4834
    %v4836 = vlaneseq
    %v4837 = vshrl.u32 %v4836, 7
    %v4838 = vsub.s32 %v4835, %v4837
    %v4839 = vrot.slane %v4832, %v4838
    %v4840 = vcombine.low %v4815, %v4823
    %v4841 = vcombine.high %v4815, %v4823
    %v4843 = vunpack.c.l.s4 1934713408
    %v4844 = vunpack.c.0.s8 %v4843
    %v4845 = vlaneseq
    %v4846 = vshrl.u32 %v4845, 7
    %v4847 = vsub.s32 %v4844, %v4846
    %v4848 = vrot.slane %v4840, %v4847
    %v4850 = vunpack.c.l.s4 1934713408
    %v4851 = vunpack.c.0.s8 %v4850
    %v4852 = vlaneseq
    %v4853 = vshrl.u32 %v4852, 7
    %v4854 = vsub.s32 %v4851, %v4853
    %v4855 = vrot.slane %v4841, %v4854
    %v4856 = vcombine.low %v4831, %v4839
    %v4857 = vcombine.high %v4831, %v4839
    %v4859 = vunpack.c.l.s4 1934713408
    %v4860 = vunpack.c.0.s8 %v4859
    %v4861 = vlaneseq
    %v4862 = vshrl.u32 %v4861, 7
    %v4863 = vsub.s32 %v4860, %v4862
    %v4864 = vrot.slane %v4856, %v4863
    %v4866 = vunpack.c.l.s4 1934713408
    %v4867 = vunpack.c.0.s8 %v4866
    %v4868 = vlaneseq
    %v4869 = vshrl.u32 %v4868, 7
    %v4870 = vsub.s32 %v4867, %v4869
    %v4871 = vrot.slane %v4857, %v4870
    %v4872 = vcombine.low %v4848, %v4864
    %v4873 = vcombine.high %v4848, %v4864
    %v4874 = vcombine.low %v4855, %v4871
    %v4875 = vcombine.high %v4855, %v4871
    %4878 = vrot.lane.b32.xlu0 %v4805, 32
    %v4879 = vpop.permute.xlu0 %4878
    %4880 = vrot.lane.b32.xlu0 %v4873, 32
    %v4881 = vpop.permute.xlu0 %4880
    %4886 = vrot.lane.b32.xlu0 %v4806, 64
    %v4887 = vpop.permute.xlu0 %4886
    %4888 = vrot.lane.b32.xlu0 %v4874, 64
    %v4889 = vpop.permute.xlu0 %4888
    %4894 = vrot.lane.b32.xlu0 %v4807, 96
    %v4895 = vpop.permute.xlu0 %4894
    %4896 = vrot.lane.b32.xlu0 %v4875, 96
    %v4897 = vpop.permute.xlu0 %4896
    %v4900 = vsel %vm246, %v4804, %v4879
    %v4901 = vsel %vm246, %v4872, %v4881
    %v4902 = vsel %vm2411, %v4900, %v4887
    %v4903 = vsel %vm2411, %v4901, %v4889
    %v4904 = vsel %vm2414, %v4902, %v4895
    %v4905 = vsel %vm2414, %v4903, %v4897
    %s4906 = scalar_lea.vmem [#allocation10], 64
    %v4907 = vld [vmem:[%s4906] sm:$0xf]
    %v4908 = vld [vmem:[%s4906 + $0x4] sm:$0xf]
    %v4909 = vld [vmem:[%s4906 + $0x8] sm:$0xf]
    %v4910 = vld [vmem:[%s4906 + $0xc] sm:$0xf]
    %v4911 = vld [vmem:[%s4906 + $0x10] sm:$0xf]
    %v4912 = vld [vmem:[%s4906 + $0x14] sm:$0xf]
    %v4913 = vld [vmem:[%s4906 + $0x18] sm:$0xf]
    %v4914 = vld [vmem:[%s4906 + $0x1c] sm:$0xf]
    %v4915 = vld [vmem:[%s4906 + $0x20] sm:$0xf]
    %v4916 = vld [vmem:[%s4906 + $0x24] sm:$0xf]
    %v4917 = vld [vmem:[%s4906 + $0x28] sm:$0xf]
    %v4918 = vld [vmem:[%s4906 + $0x2c] sm:$0xf]
    %v4919 = vld [vmem:[%s4906 + $0x30] sm:$0xf]
    %v4920 = vld [vmem:[%s4906 + $0x34] sm:$0xf]
    %v4921 = vld [vmem:[%s4906 + $0x38] sm:$0xf]
    %v4922 = vld [vmem:[%s4906 + $0x3c] sm:$0xf]
    %s4923 = scalar_lea.vmem [#allocation11], 1
    %v4924 = vld [vmem:[%s4923] sm:$0x1]
    %v4925 = vpack.c.bf16 %v4905, %v4904
    %v4927 = vlaneseq
    %v4928 = vshrl.u32 %v4927, 7
    %v4929 = vsub.s32 0, %v4928
    %v4930 = vrot.slane %v4924, %v4929
    %v4948 = vunpack.c.l.b16 %v4907
    %v4949 = vunpack.c.l.b16 %v4908
    %v4950 = vunpack.c.l.b16 %v4909
    %v4951 = vunpack.c.l.b16 %v4910
    %v4952 = vunpack.c.l.b16 %v4911
    %v4953 = vunpack.c.l.b16 %v4912
    %v4954 = vunpack.c.l.b16 %v4913
    %v4955 = vunpack.c.l.b16 %v4914
    %v4956 = vunpack.c.l.b16 %v4915
    %v4957 = vunpack.c.l.b16 %v4916
    %v4958 = vunpack.c.l.b16 %v4917
    %v4959 = vunpack.c.l.b16 %v4918
    %v4960 = vunpack.c.l.b16 %v4919
    %v4961 = vunpack.c.l.b16 %v4920
    %v4962 = vunpack.c.l.b16 %v4921
    %v4963 = vunpack.c.l.b16 %v4922
    %v4964 = vpack.c.b16 %v4949, %v4948
    %v4965 = vpack.c.b16 %v4951, %v4950
    %v4966 = vpack.c.b16 %v4953, %v4952
    %v4967 = vpack.c.b16 %v4955, %v4954
    %v4968 = vpack.c.b16 %v4957, %v4956
    %v4969 = vpack.c.b16 %v4959, %v4958
    %v4970 = vpack.c.b16 %v4961, %v4960
    %v4971 = vpack.c.b16 %v4963, %v4962
    %4980 = vmatprep.subr.bf16.mxu0 0
    %4981 = vmatpush1.bf16.msra.mxu0 %v4964
    %4982 = vmatprep.subr.bf16.mxu0 0
    %4983 = vmatpush1.bf16.msra.mxu0 %v4965
    %4984 = vmatprep.subr.bf16.mxu0 0
    %4985 = vmatpush1.bf16.msra.mxu0 %v4966
    %4986 = vmatprep.subr.bf16.mxu0 0
    %4987 = vmatpush1.bf16.msra.mxu0 %v4967
    %4988 = vmatprep.subr.bf16.mxu0 0
    %4989 = vmatpush1.bf16.msra.mxu0 %v4968
    %4990 = vmatprep.subr.bf16.mxu0 0
    %4991 = vmatpush1.bf16.msra.mxu0 %v4969
    %4992 = vmatprep.subr.bf16.mxu0 0
    %4993 = vmatpush1.bf16.msra.mxu0 %v4970
    %4994 = vmatprep.subr.bf16.mxu0 0
    %4995 = vmatpush1.bf16.msra.mxu0 %v4971
    %4996 = vmatprep.subr.bf16.mxu0 0
    %4997 = vmatpush1.bf16.msra.mxu0 0
    %4998 = vmatprep.subr.bf16.mxu0 0
    %4999 = vmatpush1.bf16.msra.mxu0 0
    %5000 = vmatprep.subr.bf16.mxu0 0
    %5001 = vmatpush1.bf16.msra.mxu0 0
    %5002 = vmatprep.subr.bf16.mxu0 0
    %5003 = vmatpush1.bf16.msra.mxu0 0
    %5004 = vmatprep.subr.bf16.mxu0 0
    %5005 = vmatpush1.bf16.msra.mxu0 0
    %5006 = vmatprep.subr.bf16.mxu0 0
    %5007 = vmatpush1.bf16.msra.mxu0 0
    %5008 = vmatprep.subr.bf16.mxu0 0
    %5009 = vmatpush1.bf16.msra.mxu0 0
    %5010 = vmatprep.subr.bf16.mxu0 0
    %5011 = vmatpush1.bf16.msra.mxu0 0
    %5012 = vmatprep.mubr.bf16.mxu0 0
    %5013 = vmatmul.mubr.bf16.gmra.mrb[0].mxu0 %v4925
    %v5014 = vpop.f32.mrb[0].mxu0
    %v5015 = vadd.f32 %v4930, %v5014
    %v5016 = vpop.f32.mrb[0].mxu0
    %v5017 = vpop.f32.mrb[0].mxu0
    %v5018 = vadd.f32 %v4930, %v5017
    %v5019 = vpop.f32.mrb[0].mxu0
    %5020 = vdwg.mxu0
    %v5021 = vadd.f32 %v2978, %v5015
    %v5022 = vadd.f32 %v2979, %v5018
    %s5023 = scalar_lea.vmem %s10, 1
    %v5024 = vld [vmem:[%s5023] sm:$0x1]
    %s5025 = scalar_lea.vmem %s11, 1
    %v5026 = vld [vmem:[%s5025] sm:$0x1]
    %5027 = vadd.xlane.f32.xlu0 %v5021
    %v5028 = vpop.xlane.xlu0 %5027
    %5029 = vadd.xlane.f32.xlu0 %v5022
    %v5030 = vpop.xlane.xlu0 %5029
    %v5031 = vmul.f32 %v5028, %v334
    %v5032 = vmul.f32 %v5030, %v334
    %v5033 = vsub.f32 %v5021, %v5031
    %v5034 = vsub.f32 %v5022, %v5032
    %v5035 = vmul.f32 %v5033, %v5033
    %v5036 = vmul.f32 %v5034, %v5034
    %5037 = vadd.xlane.f32.xlu0 %v5035
    %v5038 = vpop.xlane.xlu0 %5037
    %5039 = vadd.xlane.f32.xlu0 %v5036
    %v5040 = vpop.xlane.xlu0 %5039
    %v5041 = vmul.f32 %v5038, %v334
    %v5042 = vmul.f32 %v5040, %v334
    %v5043 = vadd.f32 %v5041, 1e-12
    %v5044 = vadd.f32 %v5042, 1e-12
    %v5045 = vrsqrt.pop %v5043
    %v5046 = vrsqrt.pop %v5044
    %v5047 = vmul.f32 %v5033, %v5045
    %v5048 = vmul.f32 %v5034, %v5046
    %v5050 = vlaneseq
    %v5051 = vshrl.u32 %v5050, 7
    %v5052 = vsub.s32 0, %v5051
    %v5053 = vrot.slane %v5024, %v5052
    %v5055 = vmul.f32 %v5047, %v5053
    %v5056 = vmul.f32 %v5048, %v5053
    %v5058 = vlaneseq
    %v5059 = vshrl.u32 %v5058, 7
    %v5060 = vsub.s32 0, %v5059
    %v5061 = vrot.slane %v5026, %v5060
    %v5063 = vadd.f32 %v5055, %v5061
    %v5064 = vadd.f32 %v5056, %v5061
    %s5065 = scalar_lea.vmem [#allocation13], 128
    %v5066 = vld [vmem:[%s5065] sm:$0xff]
    %v5067 = vld [vmem:[%s5065 + $0x8] sm:$0xff]
    %v5068 = vld [vmem:[%s5065 + $0x10] sm:$0xff]
    %v5069 = vld [vmem:[%s5065 + $0x18] sm:$0xff]
    %v5070 = vld [vmem:[%s5065 + $0x20] sm:$0xff]
    %v5071 = vld [vmem:[%s5065 + $0x28] sm:$0xff]
    %v5072 = vld [vmem:[%s5065 + $0x30] sm:$0xff]
    %v5073 = vld [vmem:[%s5065 + $0x38] sm:$0xff]
    %v5074 = vld [vmem:[%s5065 + $0x40] sm:$0xff]
    %v5075 = vld [vmem:[%s5065 + $0x48] sm:$0xff]
    %v5076 = vld [vmem:[%s5065 + $0x50] sm:$0xff]
    %v5077 = vld [vmem:[%s5065 + $0x58] sm:$0xff]
    %v5078 = vld [vmem:[%s5065 + $0x60] sm:$0xff]
    %v5079 = vld [vmem:[%s5065 + $0x68] sm:$0xff]
    %v5080 = vld [vmem:[%s5065 + $0x70] sm:$0xff]
    %v5081 = vld [vmem:[%s5065 + $0x78] sm:$0xff]
    %s5082 = scalar_lea.vmem [#allocation14], 2
    %v5083 = vld [vmem:[%s5082] sm:$0x3]
    %v5084 = vpack.c.bf16 %v5064, %v5063
    %v5086 = vlaneseq
    %v5087 = vshrl.u32 %v5086, 7
    %v5088 = vsub.s32 0, %v5087
    %v5089 = vrot.slane %v5083, %v5088
    %v5090 = vlaneseq
    %v5091 = vshrl.u32 %v5090, 7
    %v5092 = vsub.s32 1, %v5091
    %v5093 = vrot.slane %v5083, %v5092
    %v5112 = vunpack.c.l.b16 %v5066
    %v5113 = vunpack.c.h.b16 %v5066
    %v5114 = vunpack.c.l.b16 %v5067
    %v5115 = vunpack.c.h.b16 %v5067
    %v5116 = vunpack.c.l.b16 %v5068
    %v5117 = vunpack.c.h.b16 %v5068
    %v5118 = vunpack.c.l.b16 %v5069
    %v5119 = vunpack.c.h.b16 %v5069
    %v5120 = vunpack.c.l.b16 %v5070
    %v5121 = vunpack.c.h.b16 %v5070
    %v5122 = vunpack.c.l.b16 %v5071
    %v5123 = vunpack.c.h.b16 %v5071
    %v5124 = vunpack.c.l.b16 %v5072
    %v5125 = vunpack.c.h.b16 %v5072
    %v5126 = vunpack.c.l.b16 %v5073
    %v5127 = vunpack.c.h.b16 %v5073
    %v5128 = vunpack.c.l.b16 %v5074
    %v5129 = vunpack.c.h.b16 %v5074
    %v5130 = vunpack.c.l.b16 %v5075
    %v5131 = vunpack.c.h.b16 %v5075
    %v5132 = vunpack.c.l.b16 %v5076
    %v5133 = vunpack.c.h.b16 %v5076
    %v5134 = vunpack.c.l.b16 %v5077
    %v5135 = vunpack.c.h.b16 %v5077
    %v5136 = vunpack.c.l.b16 %v5078
    %v5137 = vunpack.c.h.b16 %v5078
    %v5138 = vunpack.c.l.b16 %v5079
    %v5139 = vunpack.c.h.b16 %v5079
    %v5140 = vunpack.c.l.b16 %v5080
    %v5141 = vunpack.c.h.b16 %v5080
    %v5142 = vunpack.c.l.b16 %v5081
    %v5143 = vunpack.c.h.b16 %v5081
    %v5144 = vpack.c.b16 %v5114, %v5112
    %v5145 = vpack.c.b16 %v5115, %v5113
    %v5146 = vpack.c.b16 %v5118, %v5116
    %v5147 = vpack.c.b16 %v5119, %v5117
    %v5148 = vpack.c.b16 %v5122, %v5120
    %v5149 = vpack.c.b16 %v5123, %v5121
    %v5150 = vpack.c.b16 %v5126, %v5124
    %v5151 = vpack.c.b16 %v5127, %v5125
    %v5152 = vpack.c.b16 %v5130, %v5128
    %v5153 = vpack.c.b16 %v5131, %v5129
    %v5154 = vpack.c.b16 %v5134, %v5132
    %v5155 = vpack.c.b16 %v5135, %v5133
    %v5156 = vpack.c.b16 %v5138, %v5136
    %v5157 = vpack.c.b16 %v5139, %v5137
    %v5158 = vpack.c.b16 %v5142, %v5140
    %v5159 = vpack.c.b16 %v5143, %v5141
    %5176 = vmatprep.subr.bf16.mxu0 %v5145
    %5177 = vmatpush1.bf16.msra.mxu0 %v5144
    %5178 = vmatprep.subr.bf16.mxu0 %v5147
    %5179 = vmatpush1.bf16.msra.mxu0 %v5146
    %5180 = vmatprep.subr.bf16.mxu0 %v5149
    %5181 = vmatpush1.bf16.msra.mxu0 %v5148
    %5182 = vmatprep.subr.bf16.mxu0 %v5151
    %5183 = vmatpush1.bf16.msra.mxu0 %v5150
    %5184 = vmatprep.subr.bf16.mxu0 %v5153
    %5185 = vmatpush1.bf16.msra.mxu0 %v5152
    %5186 = vmatprep.subr.bf16.mxu0 %v5155
    %5187 = vmatpush1.bf16.msra.mxu0 %v5154
    %5188 = vmatprep.subr.bf16.mxu0 %v5157
    %5189 = vmatpush1.bf16.msra.mxu0 %v5156
    %5190 = vmatprep.subr.bf16.mxu0 %v5159
    %5191 = vmatpush1.bf16.msra.mxu0 %v5158
    %5192 = vmatprep.subr.bf16.mxu0 0
    %5193 = vmatpush1.bf16.msra.mxu0 0
    %5194 = vmatprep.subr.bf16.mxu0 0
    %5195 = vmatpush1.bf16.msra.mxu0 0
    %5196 = vmatprep.subr.bf16.mxu0 0
    %5197 = vmatpush1.bf16.msra.mxu0 0
    %5198 = vmatprep.subr.bf16.mxu0 0
    %5199 = vmatpush1.bf16.msra.mxu0 0
    %5200 = vmatprep.subr.bf16.mxu0 0
    %5201 = vmatpush1.bf16.msra.mxu0 0
    %5202 = vmatprep.subr.bf16.mxu0 0
    %5203 = vmatpush1.bf16.msra.mxu0 0
    %5204 = vmatprep.subr.bf16.mxu0 0
    %5205 = vmatpush1.bf16.msra.mxu0 0
    %5206 = vmatprep.subr.bf16.mxu0 0
    %5207 = vmatpush1.bf16.msra.mxu0 0
    %5208 = vmatprep.mubr.bf16.mxu0 0
    %5209 = vmatmul.mubr.bf16.gmra.mrb[0].mxu0 %v5084
    %v5210 = vpop.f32.mrb[0].mxu0
    %v5211 = vadd.f32 %v5089, %v5210
    %v5212 = vpop.f32.mrb[0].mxu0
    %v5213 = vadd.f32 %v5093, %v5212
    %v5214 = vpop.f32.mrb[0].mxu0
    %v5215 = vadd.f32 %v5089, %v5214
    %v5216 = vpop.f32.mrb[0].mxu0
    %v5217 = vadd.f32 %v5093, %v5216
    %5218 = vdwg.mxu0
    %v5219 = vmul.f32 %v5211, %v5211
    %v5220 = vmul.f32 %v5213, %v5213
    %v5221 = vmul.f32 %v5215, %v5215
    %v5222 = vmul.f32 %v5217, %v5217
    %v5223 = vmul.f32 %v5211, %v5219
    %v5224 = vmul.f32 %v5213, %v5220
    %v5225 = vmul.f32 %v5215, %v5221
    %v5226 = vmul.f32 %v5217, %v5222
    %v5227 = vmul.f32 %v5223, 0.044715
    %v5228 = vmul.f32 %v5224, 0.044715
    %v5229 = vmul.f32 %v5225, 0.044715
    %v5230 = vmul.f32 %v5226, 0.044715
    %v5231 = vadd.f32 %v5211, %v5227
    %v5232 = vadd.f32 %v5213, %v5228
    %v5233 = vadd.f32 %v5215, %v5229
    %v5234 = vadd.f32 %v5217, %v5230
    %v5235 = vmul.f32 %v5231, 0.7978846
    %v5236 = vmul.f32 %v5232, 0.7978846
    %v5237 = vmul.f32 %v5233, 0.7978846
    %v5238 = vmul.f32 %v5234, 0.7978846
    %v5239 = vtanh.pop %v5235
    %v5240 = vtanh.pop %v5236
    %v5241 = vtanh.pop %v5237
    %v5242 = vtanh.pop %v5238
    %v5243 = vadd.f32 %v5239, 1.0
    %v5244 = vadd.f32 %v5240, 1.0
    %v5245 = vadd.f32 %v5241, 1.0
    %v5246 = vadd.f32 %v5242, 1.0
    %v5247 = vmul.f32 %v5243, 0.5
    %v5248 = vmul.f32 %v5244, 0.5
    %v5249 = vmul.f32 %v5245, 0.5
    %v5250 = vmul.f32 %v5246, 0.5
    %v5251 = vmul.f32 %v5211, %v5247
    %v5252 = vmul.f32 %v5213, %v5248
    %v5253 = vmul.f32 %v5215, %v5249
    %v5254 = vmul.f32 %v5217, %v5250
    %s5255 = scalar_lea.vmem [#allocation16], 128
    %v5256 = vld [vmem:[%s5255] sm:$0xf]
    %v5257 = vld [vmem:[%s5255 + $0x4] sm:$0xf]
    %v5258 = vld [vmem:[%s5255 + $0x8] sm:$0xf]
    %v5259 = vld [vmem:[%s5255 + $0xc] sm:$0xf]
    %v5260 = vld [vmem:[%s5255 + $0x10] sm:$0xf]
    %v5261 = vld [vmem:[%s5255 + $0x14] sm:$0xf]
    %v5262 = vld [vmem:[%s5255 + $0x18] sm:$0xf]
    %v5263 = vld [vmem:[%s5255 + $0x1c] sm:$0xf]
    %v5264 = vld [vmem:[%s5255 + $0x20] sm:$0xf]
    %v5265 = vld [vmem:[%s5255 + $0x24] sm:$0xf]
    %v5266 = vld [vmem:[%s5255 + $0x28] sm:$0xf]
    %v5267 = vld [vmem:[%s5255 + $0x2c] sm:$0xf]
    %v5268 = vld [vmem:[%s5255 + $0x30] sm:$0xf]
    %v5269 = vld [vmem:[%s5255 + $0x34] sm:$0xf]
    %v5270 = vld [vmem:[%s5255 + $0x38] sm:$0xf]
    %v5271 = vld [vmem:[%s5255 + $0x3c] sm:$0xf]
    %v5272 = vld [vmem:[%s5255 + $0x40] sm:$0xf]
    %v5273 = vld [vmem:[%s5255 + $0x44] sm:$0xf]
    %v5274 = vld [vmem:[%s5255 + $0x48] sm:$0xf]
    %v5275 = vld [vmem:[%s5255 + $0x4c] sm:$0xf]
    %v5276 = vld [vmem:[%s5255 + $0x50] sm:$0xf]
    %v5277 = vld [vmem:[%s5255 + $0x54] sm:$0xf]
    %v5278 = vld [vmem:[%s5255 + $0x58] sm:$0xf]
    %v5279 = vld [vmem:[%s5255 + $0x5c] sm:$0xf]
    %v5280 = vld [vmem:[%s5255 + $0x60] sm:$0xf]
    %v5281 = vld [vmem:[%s5255 + $0x64] sm:$0xf]
    %v5282 = vld [vmem:[%s5255 + $0x68] sm:$0xf]
    %v5283 = vld [vmem:[%s5255 + $0x6c] sm:$0xf]
    %v5284 = vld [vmem:[%s5255 + $0x70] sm:$0xf]
    %v5285 = vld [vmem:[%s5255 + $0x74] sm:$0xf]
    %v5286 = vld [vmem:[%s5255 + $0x78] sm:$0xf]
    %v5287 = vld [vmem:[%s5255 + $0x7c] sm:$0xf]
    %s5288 = scalar_lea.vmem [#allocation17], 1
    %v5289 = vld [vmem:[%s5288] sm:$0x1]
    %v5290 = vpack.c.bf16 %v5253, %v5251
    %v5291 = vpack.c.bf16 %v5254, %v5252
    %v5293 = vlaneseq
    %v5294 = vshrl.u32 %v5293, 7
    %v5295 = vsub.s32 0, %v5294
    %v5296 = vrot.slane %v5289, %v5295
    %v5330 = vunpack.c.l.b16 %v5256
    %v5331 = vunpack.c.l.b16 %v5257
    %v5332 = vunpack.c.l.b16 %v5258
    %v5333 = vunpack.c.l.b16 %v5259
    %v5334 = vunpack.c.l.b16 %v5260
    %v5335 = vunpack.c.l.b16 %v5261
    %v5336 = vunpack.c.l.b16 %v5262
    %v5337 = vunpack.c.l.b16 %v5263
    %v5338 = vunpack.c.l.b16 %v5264
    %v5339 = vunpack.c.l.b16 %v5265
    %v5340 = vunpack.c.l.b16 %v5266
    %v5341 = vunpack.c.l.b16 %v5267
    %v5342 = vunpack.c.l.b16 %v5268
    %v5343 = vunpack.c.l.b16 %v5269
    %v5344 = vunpack.c.l.b16 %v5270
    %v5345 = vunpack.c.l.b16 %v5271
    %v5346 = vunpack.c.l.b16 %v5272
    %v5347 = vunpack.c.l.b16 %v5273
    %v5348 = vunpack.c.l.b16 %v5274
    %v5349 = vunpack.c.l.b16 %v5275
    %v5350 = vunpack.c.l.b16 %v5276
    %v5351 = vunpack.c.l.b16 %v5277
    %v5352 = vunpack.c.l.b16 %v5278
    %v5353 = vunpack.c.l.b16 %v5279
    %v5354 = vunpack.c.l.b16 %v5280
    %v5355 = vunpack.c.l.b16 %v5281
    %v5356 = vunpack.c.l.b16 %v5282
    %v5357 = vunpack.c.l.b16 %v5283
    %v5358 = vunpack.c.l.b16 %v5284
    %v5359 = vunpack.c.l.b16 %v5285
    %v5360 = vunpack.c.l.b16 %v5286
    %v5361 = vunpack.c.l.b16 %v5287
    %v5362 = vpack.c.b16 %v5331, %v5330
    %v5363 = vpack.c.b16 %v5333, %v5332
    %v5364 = vpack.c.b16 %v5335, %v5334
    %v5365 = vpack.c.b16 %v5337, %v5336
    %v5366 = vpack.c.b16 %v5339, %v5338
    %v5367 = vpack.c.b16 %v5341, %v5340
    %v5368 = vpack.c.b16 %v5343, %v5342
    %v5369 = vpack.c.b16 %v5345, %v5344
    %v5370 = vpack.c.b16 %v5347, %v5346
    %v5371 = vpack.c.b16 %v5349, %v5348
    %v5372 = vpack.c.b16 %v5351, %v5350
    %v5373 = vpack.c.b16 %v5353, %v5352
    %v5374 = vpack.c.b16 %v5355, %v5354
    %v5375 = vpack.c.b16 %v5357, %v5356
    %v5376 = vpack.c.b16 %v5359, %v5358
    %v5377 = vpack.c.b16 %v5361, %v5360
    %5394 = vmatprep.subr.bf16.mxu0 0
    %5395 = vmatpush1.bf16.msra.mxu0 %v5362
    %5396 = vmatprep.subr.bf16.mxu0 0
    %5397 = vmatpush1.bf16.msra.mxu0 %v5363
    %5398 = vmatprep.subr.bf16.mxu0 0
    %5399 = vmatpush1.bf16.msra.mxu0 %v5364
    %5400 = vmatprep.subr.bf16.mxu0 0
    %5401 = vmatpush1.bf16.msra.mxu0 %v5365
    %5402 = vmatprep.subr.bf16.mxu0 0
    %5403 = vmatpush1.bf16.msra.mxu0 %v5366
    %5404 = vmatprep.subr.bf16.mxu0 0
    %5405 = vmatpush1.bf16.msra.mxu0 %v5367
    %5406 = vmatprep.subr.bf16.mxu0 0
    %5407 = vmatpush1.bf16.msra.mxu0 %v5368
    %5408 = vmatprep.subr.bf16.mxu0 0
    %5409 = vmatpush1.bf16.msra.mxu0 %v5369
    %5410 = vmatprep.subr.bf16.mxu0 0
    %5411 = vmatpush1.bf16.msra.mxu0 %v5370
    %5412 = vmatprep.subr.bf16.mxu0 0
    %5413 = vmatpush1.bf16.msra.mxu0 %v5371
    %5414 = vmatprep.subr.bf16.mxu0 0
    %5415 = vmatpush1.bf16.msra.mxu0 %v5372
    %5416 = vmatprep.subr.bf16.mxu0 0
    %5417 = vmatpush1.bf16.msra.mxu0 %v5373
    %5418 = vmatprep.subr.bf16.mxu0 0
    %5419 = vmatpush1.bf16.msra.mxu0 %v5374
    %5420 = vmatprep.subr.bf16.mxu0 0
    %5421 = vmatpush1.bf16.msra.mxu0 %v5375
    %5422 = vmatprep.subr.bf16.mxu0 0
    %5423 = vmatpush1.bf16.msra.mxu0 %v5376
    %5424 = vmatprep.subr.bf16.mxu0 0
    %5425 = vmatpush1.bf16.msra.mxu0 %v5377
    %5426 = vmatprep.mubr.bf16.mxu0 %v5291
    %5427 = vmatmul.mubr.bf16.gmra.mrb[0].mxu0 %v5290
    %v5428 = vpop.f32.mrb[0].mxu0
    %v5429 = vadd.f32 %v5296, %v5428
    %v5430 = vpop.f32.mrb[0].mxu0
    %v5431 = vpop.f32.mrb[0].mxu0
    %v5432 = vadd.f32 %v5296, %v5431
    %v5433 = vpop.f32.mrb[0].mxu0
    %5434 = vdwg.mxu0
    %v5435 = vadd.f32 %v5063, %v5429
    %v5436 = vadd.f32 %v5064, %v5432
    %s5437 = scalar_lea.vmem %s16, 1
    %v5438 = vld [vmem:[%s5437] sm:$0x1]
    %s5439 = scalar_lea.vmem %s17, 1
    %v5440 = vld [vmem:[%s5439] sm:$0x1]
    %5441 = vadd.xlane.f32.xlu0 %v5435
    %v5442 = vpop.xlane.xlu0 %5441
    %5443 = vadd.xlane.f32.xlu0 %v5436
    %v5444 = vpop.xlane.xlu0 %5443
    %v5445 = vmul.f32 %v5442, %v334
    %v5446 = vmul.f32 %v5444, %v334
    %v5447 = vsub.f32 %v5435, %v5445
    %v5448 = vsub.f32 %v5436, %v5446
    %v5449 = vmul.f32 %v5447, %v5447
    %v5450 = vmul.f32 %v5448, %v5448
    %5451 = vadd.xlane.f32.xlu0 %v5449
    %v5452 = vpop.xlane.xlu0 %5451
    %5453 = vadd.xlane.f32.xlu0 %v5450
    %v5454 = vpop.xlane.xlu0 %5453
    %v5455 = vmul.f32 %v5452, %v334
    %v5456 = vmul.f32 %v5454, %v334
    %v5457 = vadd.f32 %v5455, 1e-12
    %v5458 = vadd.f32 %v5456, 1e-12
    %v5459 = vrsqrt.pop %v5457
    %v5460 = vrsqrt.pop %v5458
    %v5461 = vmul.f32 %v5447, %v5459
    %v5462 = vmul.f32 %v5448, %v5460
    %v5464 = vlaneseq
    %v5465 = vshrl.u32 %v5464, 7
    %v5466 = vsub.s32 0, %v5465
    %v5467 = vrot.slane %v5438, %v5466
    %v5469 = vmul.f32 %v5461, %v5467
    %v5470 = vmul.f32 %v5462, %v5467
    %v5472 = vlaneseq
    %v5473 = vshrl.u32 %v5472, 7
    %v5474 = vsub.s32 0, %v5473
    %v5475 = vrot.slane %v5440, %v5474
    %v5477 = vadd.f32 %v5469, %v5475
    %v5478 = vadd.f32 %v5470, %v5475
    %v5479 = vsel %vm1844, %v399, 0
    %5481 = vmatprep.subr.mxu0 0.0
    %5482 = vmatpush1.msra.mxu0 %v5477
    %5483 = vmatprep.subr.mxu0 0.0
    %5484 = vmatpush1.msra.mxu0 %v5478
    %5485 = vmatprep.subr.mxu0 0.0
    %5486 = vmatpush1.msra.mxu0 0.0
    %5487 = vmatprep.subr.mxu0 0.0
    %5488 = vmatpush1.msra.mxu0 0.0
    %5489 = vmatprep.subr.mxu0 0.0
    %5490 = vmatpush1.msra.mxu0 0.0
    %5491 = vmatprep.subr.mxu0 0.0
    %5492 = vmatpush1.msra.mxu0 0.0
    %5493 = vmatprep.subr.mxu0 0.0
    %5494 = vmatpush1.msra.mxu0 0.0
    %5495 = vmatprep.subr.mxu0 0.0
    %5496 = vmatpush1.msra.mxu0 0.0
    %5497 = vmatprep.subr.mxu0 0.0
    %5498 = vmatpush1.msra.mxu0 0.0
    %5499 = vmatprep.subr.mxu0 0.0
    %5500 = vmatpush1.msra.mxu0 0.0
    %5501 = vmatprep.subr.mxu0 0.0
    %5502 = vmatpush1.msra.mxu0 0.0
    %5503 = vmatprep.subr.mxu0 0.0
    %5504 = vmatpush1.msra.mxu0 0.0
    %5505 = vmatprep.subr.mxu0 0.0
    %5506 = vmatpush1.msra.mxu0 0.0
    %5507 = vmatprep.subr.mxu0 0.0
    %5508 = vmatpush1.msra.mxu0 0.0
    %5509 = vmatprep.subr.mxu0 0.0
    %5510 = vmatpush1.msra.mxu0 0.0
    %5511 = vmatprep.subr.mxu0 0.0
    %5512 = vmatpush1.msra.mxu0 0.0
    %5513 = vmatprep.subr.mxu0 0.0
    %5514 = vmatpush1.msra.mxu0 0.0
    %5515 = vmatprep.subr.mxu0 0.0
    %5516 = vmatpush1.msra.mxu0 0.0
    %5517 = vmatprep.subr.mxu0 0.0
    %5518 = vmatpush1.msra.mxu0 0.0
    %5519 = vmatprep.subr.mxu0 0.0
    %5520 = vmatpush1.msra.mxu0 0.0
    %5521 = vmatprep.subr.mxu0 0.0
    %5522 = vmatpush1.msra.mxu0 0.0
    %5523 = vmatprep.subr.mxu0 0.0
    %5524 = vmatpush1.msra.mxu0 0.0
    %5525 = vmatprep.subr.mxu0 0.0
    %5526 = vmatpush1.msra.mxu0 0.0
    %5527 = vmatprep.subr.mxu0 0.0
    %5528 = vmatpush1.msra.mxu0 0.0
    %5529 = vmatprep.subr.mxu0 0.0
    %5530 = vmatpush1.msra.mxu0 0.0
    %5531 = vmatprep.subr.mxu0 0.0
    %5532 = vmatpush1.msra.mxu0 0.0
    %5533 = vmatprep.subr.mxu0 0.0
    %5534 = vmatpush1.msra.mxu0 0.0
    %5535 = vmatprep.subr.mxu0 0.0
    %5536 = vmatpush1.msra.mxu0 0.0
    %5537 = vmatprep.subr.mxu0 0.0
    %5538 = vmatpush1.msra.mxu0 0.0
    %5539 = vmatprep.subr.mxu0 0.0
    %5540 = vmatpush1.msra.mxu0 0.0
    %5541 = vmatprep.subr.mxu0 0.0
    %5542 = vmatpush1.msra.mxu0 0.0
    %5543 = vmatprep.subr.mxu0 0.0
    %5544 = vmatpush1.msra.mxu0 0.0
    %5545 = vmatprep.mubr.f32.mxu0 0.0
    %5546 = vmatmul.mubr.f32.gmra.mrb[0].mxu0 %v5479
    %v5547 = vpop.f32.mrb[0].mxu0
    %v5548 = vadd.f32 0.0, %v5547
    %v5549 = vpop.f32.mrb[0].mxu0
    %5550 = vdwg.mxu0
    %vm5551 = vcmask 123904
    %v5552 = vsel %vm5551, %v399, 0.0
    %5553 = vadd.xlane.f32.xlu0 %v5552
    %v5554 = vpop.xlane.xlu0 %5553
    %v5555 = vmax.f32 %v5554, 1e-09
    %v5556 = vrcp.pop %v5555
    %v5557 = vmul.f32 %v5548, %v5556
    %v5558 = vld [vmem:[#allocation19] sm:$0xf]
    %v5559 = vld [vmem:[#allocation19 + $0x4] sm:$0xf]
    %v5560 = vld [vmem:[#allocation19 + $0x8] sm:$0xf]
    %v5561 = vld [vmem:[#allocation19 + $0xc] sm:$0xf]
    %v5562 = vld [vmem:[#allocation19 + $0x10] sm:$0xf]
    %v5563 = vld [vmem:[#allocation19 + $0x14] sm:$0xf]
    %v5564 = vld [vmem:[#allocation19 + $0x18] sm:$0xf]
    %v5565 = vld [vmem:[#allocation19 + $0x1c] sm:$0xf]
    %v5566 = vld [vmem:[#allocation19 + $0x20] sm:$0xf]
    %v5567 = vld [vmem:[#allocation19 + $0x24] sm:$0xf]
    %v5568 = vld [vmem:[#allocation19 + $0x28] sm:$0xf]
    %v5569 = vld [vmem:[#allocation19 + $0x2c] sm:$0xf]
    %v5570 = vld [vmem:[#allocation19 + $0x30] sm:$0xf]
    %v5571 = vld [vmem:[#allocation19 + $0x34] sm:$0xf]
    %v5572 = vld [vmem:[#allocation19 + $0x38] sm:$0xf]
    %v5573 = vld [vmem:[#allocation19 + $0x3c] sm:$0xf]
    %v5574 = vld [vmem:[#allocation20] sm:$0x1]
    %v5575 = vpack.c.bf16 %v5557, %v5557
    %v5577 = vlaneseq
    %v5578 = vshrl.u32 %v5577, 7
    %v5579 = vsub.s32 0, %v5578
    %v5580 = vrot.slane %v5574, %v5579
    %v5598 = vunpack.c.l.b16 %v5558
    %v5599 = vunpack.c.l.b16 %v5559
    %v5600 = vunpack.c.l.b16 %v5560
    %v5601 = vunpack.c.l.b16 %v5561
    %v5602 = vunpack.c.l.b16 %v5562
    %v5603 = vunpack.c.l.b16 %v5563
    %v5604 = vunpack.c.l.b16 %v5564
    %v5605 = vunpack.c.l.b16 %v5565
    %v5606 = vunpack.c.l.b16 %v5566
    %v5607 = vunpack.c.l.b16 %v5567
    %v5608 = vunpack.c.l.b16 %v5568
    %v5609 = vunpack.c.l.b16 %v5569
    %v5610 = vunpack.c.l.b16 %v5570
    %v5611 = vunpack.c.l.b16 %v5571
    %v5612 = vunpack.c.l.b16 %v5572
    %v5613 = vunpack.c.l.b16 %v5573
    %v5614 = vpack.c.b16 %v5599, %v5598
    %v5615 = vpack.c.b16 %v5601, %v5600
    %v5616 = vpack.c.b16 %v5603, %v5602
    %v5617 = vpack.c.b16 %v5605, %v5604
    %v5618 = vpack.c.b16 %v5607, %v5606
    %v5619 = vpack.c.b16 %v5609, %v5608
    %v5620 = vpack.c.b16 %v5611, %v5610
    %v5621 = vpack.c.b16 %v5613, %v5612
    %5630 = vmatprep.subr.bf16.mxu0 0
    %5631 = vmatpush1.bf16.msra.mxu0 %v5614
    %5632 = vmatprep.subr.bf16.mxu0 0
    %5633 = vmatpush1.bf16.msra.mxu0 %v5615
    %5634 = vmatprep.subr.bf16.mxu0 0
    %5635 = vmatpush1.bf16.msra.mxu0 %v5616
    %5636 = vmatprep.subr.bf16.mxu0 0
    %5637 = vmatpush1.bf16.msra.mxu0 %v5617
    %5638 = vmatprep.subr.bf16.mxu0 0
    %5639 = vmatpush1.bf16.msra.mxu0 %v5618
    %5640 = vmatprep.subr.bf16.mxu0 0
    %5641 = vmatpush1.bf16.msra.mxu0 %v5619
    %5642 = vmatprep.subr.bf16.mxu0 0
    %5643 = vmatpush1.bf16.msra.mxu0 %v5620
    %5644 = vmatprep.subr.bf16.mxu0 0
    %5645 = vmatpush1.bf16.msra.mxu0 %v5621
    %5646 = vmatprep.subr.bf16.mxu0 0
    %5647 = vmatpush1.bf16.msra.mxu0 0
    %5648 = vmatprep.subr.bf16.mxu0 0
    %5649 = vmatpush1.bf16.msra.mxu0 0
    %5650 = vmatprep.subr.bf16.mxu0 0
    %5651 = vmatpush1.bf16.msra.mxu0 0
    %5652 = vmatprep.subr.bf16.mxu0 0
    %5653 = vmatpush1.bf16.msra.mxu0 0
    %5654 = vmatprep.subr.bf16.mxu0 0
    %5655 = vmatpush1.bf16.msra.mxu0 0
    %5656 = vmatprep.subr.bf16.mxu0 0
    %5657 = vmatpush1.bf16.msra.mxu0 0
    %5658 = vmatprep.subr.bf16.mxu0 0
    %5659 = vmatpush1.bf16.msra.mxu0 0
    %5660 = vmatprep.subr.bf16.mxu0 0
    %5661 = vmatpush1.bf16.msra.mxu0 0
    %5662 = vmatprep.mubr.bf16.mxu0 0
    %5663 = vmatmul.mubr.bf16.gmra.mrb[0].mxu0 %v5575
    %v5664 = vpop.f32.mrb[0].mxu0
    %v5665 = vadd.f32 %v5580, %v5664
    %v5666 = vpop.f32.mrb[0].mxu0
    %v5667 = vpop.f32.mrb[0].mxu0
    %v5668 = vpop.f32.mrb[0].mxu0
    %5669 = vdwg.mxu0
    %5670 = vst [vmem:[#allocation22] sm:$0x3] %v5665
    // Predicated region
    $region130: #{sentence_transformer_with_head.1} parent=1 // pred_check
      _
    $region131: #{sentence_transformer_with_head.1} parent=1 // pred_check_branch
      %5672 = sbr.rel (0) target = $region133
    $region132: #{sentence_transformer_with_head.1} parent=1 // pred_region
      %s5674 = ssub.s32 32, 32
      %5675 = vsyncadd [#allocation4], %s5674
      %s5677 = sshll.u32 [#allocation22], 4
      %s5678 = int_to_ptr.vmem [resolvable:$true] %s5677
      %5680 = dma.vmem_to_hbm [thread:$0]  %s5678, 32, %s20, [#allocation4]
    $region133: #{sentence_transformer_with_head.1} parent=1 // pred_fallthru
      _
    // Predicated region
    $region134: #{sentence_transformer_with_head.1} parent=1 // pred_check
      _
    $region135: #{sentence_transformer_with_head.1} parent=1 // pred_check_branch
      %5682 = sbr.rel (0) target = $region137
    $region136: #{sentence_transformer_with_head.1} parent=1 // pred_region
      %5683 = dma.done [#allocation4], 32
    $region137: #{sentence_transformer_with_head.1} parent=1 // pred_fallthru
      _
    %5684 = vsyncpa [#allocation3], 1
    %5685 = vsyncpa [#allocation6], 1
    %5686 = vsyncpa [#allocation9], 1
    %5687 = vsyncpa [#allocation12], 1
    %5688 = vsyncpa [#allocation15], 1
    %5689 = vsyncpa [#allocation18], 1
    %5690 = vsyncpa [#allocation21], 1
    %5691 = vsyncpa [#allocation4], 1

</llo_original>
